<compile_context>
chip_gen: v5e
topology: v5e:2x2
jax: 0.10.0
libtpu: 0.0.40
codegen_flags: <defaults>
</compile_context>

<pallas_src>
import functools

import jax
import jax.numpy as jnp
from jax.experimental import pallas as pl
from jax.experimental.pallas import tpu as pltpu

_LANE = 128  # lane width: Cout is padded to a multiple of this -> lane-dense stores


def _round_up(v, m):
    return ((v + m - 1) // m) * m


def _vmem_limit_bytes():
    # Generation-aware scoped-VMEM budget: ~half of physical VMEM (64 MiB/TC on v7x,
    # 128 MiB on v5e/v6e), with a conservative fallback when no TPU is queryable.
    try:
        cap = pltpu.get_tpu_info().vmem_capacity_bytes
        return max(32 * 1024 * 1024, min(cap // 2, 100 * 1024 * 1024))
    except Exception:
        return 32 * 1024 * 1024


# ---------------------------------------------------------------------------
# Fused Conv2d + bias + ReLU (+ MaxPool 3x3/2) kernel.
# ---------------------------------------------------------------------------
def _conv_block_kernel(x_ref, w_ref, b_ref, o_ref, acc_ref, *,
                       KH2, KW2, Ws, Hk, Wo, pool, Hp, Wp):
    """One (image, Cout-tile) grid step.

    x_ref  : (1, Hs*Ws, Cs)      bf16  flattened, space-to-depth'ed, zero-padded input
    w_ref  : (KH2, KW2, Cs, TN)  bf16  folded weights for this Cout tile
    b_ref  : (1, TN)             f32
    o_ref  : (1, Hout, Wout, TN) bf16  pooled (Hp,Wp) or conv (Ho,Wo) output
    acc_ref: (Hk*Ws, TN)         f32   VMEM scratch accumulator
    """
    L = Hk * Ws
    cout_t = acc_ref.shape[-1]

    # Conv as KH2*KW2 shifted-window matmuls; each patch is a contiguous 2-D slice of the
    # flattened input (no per-tap reshape).  f32 accumulation in VMEM scratch.
    for i0 in range(KH2):
        for j0 in range(KW2):
            patch = x_ref[0, pl.ds(i0 * Ws + j0, L), :]                  # (L, Cs)
            contrib = jnp.dot(patch, w_ref[i0, j0],
                              preferred_element_type=jnp.float32)        # (L, TN)
            if i0 == 0 and j0 == 0:
                acc_ref[...] = contrib
            else:
                acc_ref[...] += contrib

    # Finalize once: bias + ReLU on the f32 accumulator, then (optionally) the fused
    # 3x3/stride-2 max-pool on the VMEM-resident activation, single bf16 store.
    y = jnp.maximum(acc_ref[...] + b_ref[...], 0.0)                      # (L, TN) f32
    y = y.reshape(Hk, Ws, cout_t)                                        # one relayout/step

    if pool:
        W2, H2 = 2 * Wp, 2 * Hp
        # Horizontal max over the 3 dw shifts (contiguous slices), then vertical max over
        # the 3 dh shifts, then a single even-index subsample in each spatial dim.
        hm = jnp.maximum(jnp.maximum(y[:, 0:W2, :], y[:, 1:W2 + 1, :]), y[:, 2:W2 + 2, :])
        vm = jnp.maximum(jnp.maximum(hm[0:H2], hm[1:H2 + 1]), hm[2:H2 + 2])
        vm = vm.reshape(Hp, 2, W2, cout_t)[:, 0]                         # even rows
        vm = vm.reshape(Hp, Wp, 2, cout_t)[:, :, 0]                      # even cols
        o_ref[0] = vm.astype(o_ref.dtype)
    else:
        o_ref[0] = y[:, 0:Wo, :].astype(o_ref.dtype)


def conv2d_block_pallas(x, weight, bias, *, stride, padding, pool, out_dtype=jnp.float32):
    """x: (N, Cin, H, W) f32 NCHW; weight: (Cout, Cin, KH, KW); bias: (Cout,).
    Returns ReLU(conv(x) + bias) (optionally max-pooled 3x3/2) as NCHW `out_dtype`."""
    N, Cin, H, W = x.shape
    Cout, _, KH, KW = weight.shape
    s, p = int(stride), int(padding)

    Hpad, Wpad = H + 2 * p, W + 2 * p
    Ho = (Hpad - KH) // s + 1
    Wo = (Wpad - KW) // s + 1
    if pool:
        assert Ho >= 3 and Wo >= 3, "MaxPool2d(3,2) needs conv output >= 3x3"
        Hp, Wp = (Ho - 3) // 2 + 1, (Wo - 3) // 2 + 1
    else:
        Hp, Wp = Ho, Wo  # unused by the kernel's no-pool branch

    # Space-to-depth fold of the stride phases into the contraction dim.
    KH2, KW2 = -(-KH // s), -(-KW // s)
    Cs = s * s * Cin

    # Rows of conv output materialized in the kernel (pool reads rows up to 2*Hp+1),
    # padded input geometry (Ws covers the KW2 halo and the pool's column slices; Hs has
    # one extra halo row because the flattened per-tap slices span Hk*Ws rows).
    Hk = (2 * Hp + 2) if pool else Ho
    Ws = max(Wo + KW2 - 1, (2 * Wp + 2) if pool else 0)
    Hs = Hk + KH2
    Hr, Wr = Hs * s, Ws * s

    # ---- Input: NHWC bf16, zero-pad, space-to-depth (skipped for stride 1), flatten.
    xh = jnp.transpose(x, (0, 2, 3, 1)).astype(jnp.bfloat16)
    xh = jnp.pad(xh, ((0, 0), (p, Hr - H - p), (p, Wr - W - p), (0, 0)))
    if s > 1:
        xh = xh.reshape(N, Hs, s, Ws, s, Cin).transpose(0, 1, 3, 2, 4, 5)
    x2d = xh.reshape(N, Hs * Ws, Cs)

    # ---- Weights: (KH,KW,Cin,Cout) -> folded (KH2,KW2,Cs,Coutp) bf16; bias (1,Coutp) f32.
    Coutp = _round_up(Cout, _LANE)
    TN = 256 if (Coutp % 256 == 0) else Coutp        # 256-wide output tiles on v6e/v7x MXU
    n_ct = Coutp // TN

    wt = jnp.transpose(weight, (2, 3, 1, 0)).astype(jnp.bfloat16)        # (KH,KW,Cin,Cout)
    wt = jnp.pad(wt, ((0, KH2 * s - KH), (0, KW2 * s - KW), (0, 0), (0, Coutp - Cout)))
    if s > 1:
        wt = wt.reshape(KH2, s, KW2, s, Cin, Coutp).transpose(0, 2, 1, 3, 4, 5)
    w2 = wt.reshape(KH2, KW2, Cs, Coutp)
    b2 = jnp.pad(bias.astype(jnp.float32), (0, Coutp - Cout)).reshape(1, Coutp)

    Hout, Wout = (Hp, Wp) if pool else (Ho, Wo)

    kernel = functools.partial(_conv_block_kernel, KH2=KH2, KW2=KW2, Ws=Ws, Hk=Hk,
                               Wo=Wo, pool=pool, Hp=Hp, Wp=Wp)
    flops = 2 * N * n_ct * KH2 * KW2 * (Hk * Ws) * Cs * TN
    bytes_accessed = (x2d.size * 2 + w2.size * 2 + b2.size * 4
                      + N * Hout * Wout * Coutp * 2)

    y = pl.pallas_call(
        kernel,
        out_shape=jax.ShapeDtypeStruct((N, Hout, Wout, Coutp), jnp.bfloat16),
        grid=(N, n_ct),
        in_specs=[
            pl.BlockSpec((1, Hs * Ws, Cs), lambda n, c: (n, 0, 0)),
            pl.BlockSpec((KH2, KW2, Cs, TN), lambda n, c: (0, 0, 0, c)),
            pl.BlockSpec((1, TN), lambda n, c: (0, c)),
        ],
        out_specs=pl.BlockSpec((1, Hout, Wout, TN), lambda n, c: (n, 0, 0, c)),
        scratch_shapes=[pltpu.VMEM((Hk * Ws, TN), jnp.float32)],
        compiler_params=pltpu.CompilerParams(
            dimension_semantics=("parallel", "parallel"),
            vmem_limit_bytes=_vmem_limit_bytes(),
        ),
        cost_estimate=pl.CostEstimate(flops=flops, transcendentals=0,
                                      bytes_accessed=bytes_accessed),
    )(x2d, w2, b2)

    y = y[..., :Cout]                                         # drop Cout lane padding
    return jnp.transpose(y, (0, 3, 1, 2)).astype(out_dtype)   # NHWC -> NCHW


# ---------------------------------------------------------------------------
# ConvBlock.forward equivalent.
# ---------------------------------------------------------------------------
def conv_block_forward(x, weight, bias, current_layer, *, padding, stride):
    """conv(pad, stride) -> ReLU -> MaxPool(3, 2) iff current_layer in {0, 1, 4}; NCHW."""
    # TODO(synk): the PyTorch module's debug print and in-place weight/bias reassignment
    # are host-side bookkeeping with no kernel equivalent; weights/bias are passed in.
    pool = current_layer in (0, 1, 4)
    return conv2d_block_pallas(x, weight, bias, stride=stride, padding=padding, pool=pool)


# ---------------------------------------------------------------------------
# Demo / self-check against a pure-JAX f32 reference.
# ---------------------------------------------------------------------------
def _reference(x, weight, bias, *, stride, padding, pool):
    ref = jax.lax.conv_general_dilated(
        x, weight, window_strides=(stride, stride),
        padding=((padding, padding), (padding, padding)),
        dimension_numbers=("NCHW", "OIHW", "NCHW"))
    ref = jnp.maximum(ref + bias[None, :, None, None], 0.0)
    if pool:
        ref = jax.lax.reduce_window(
            ref, -jnp.inf, jax.lax.max,
            window_dimensions=(1, 1, 3, 3), window_strides=(1, 1, 2, 2), padding="VALID")
    return ref


if __name__ == "__main__":
    def run_case(name, N, Cin, H, W, Cout, K, pad, strd, layer, key):
        kx, kw, kb = jax.random.split(key, 3)
        x = jax.random.normal(kx, (N, Cin, H, W), dtype=jnp.float32)
        weight = jax.random.normal(kw, (Cout, Cin, K, K), dtype=jnp.float32) * 0.1
        bias = jax.random.normal(kb, (Cout,), dtype=jnp.float32) * 0.1

        out = conv_block_forward(x, weight, bias, layer, padding=pad, stride=strd)
        out = jax.block_until_ready(out)

        pool = layer in (0, 1, 4)
        ref = _reference(x, weight, bias, stride=strd, padding=pad, pool=pool)
        assert out.shape == ref.shape, (name, out.shape, ref.shape)
        # bf16 operands / f32 accumulation -> bf16-level tolerance vs. the f32 reference.
        assert jnp.allclose(out, ref, rtol=3e-2, atol=3e-2), (
            name, float(jnp.max(jnp.abs(out - ref))))

    key = jax.random.PRNGKey(0)
    k1, k2, k3 = jax.random.split(key, 3)
    # Layer-4 style: 3x3 / pad 1 / stride 1, followed by max-pool.
    run_case("pool_s1",   2, 4, 16, 16, 8,  3, 1, 1, 4, k1)
    # Middle layer: same conv, no pool.
    run_case("nopool_s1", 2, 4, 16, 16, 8,  3, 1, 1, 2, k2)
    # Layer-0 style: strided conv (exercises the space-to-depth fold) + pool.
    run_case("pool_s4",   1, 3, 20, 20, 16, 5, 2, 4, 0, k3)

    print("KERNEL_OK")
</pallas_src>

<mosaic_0001>
module attributes {stable_mosaic.version = 11 : i64} {
  func.func @_conv_block_kernel(%arg0: i32, %arg1: i32, %arg2: memref<1x342x4xbf16, #tpu.memory_space<vmem>>, %arg3: memref<3x3x4x128xbf16, #tpu.memory_space<vmem>>, %arg4: memref<1x128xf32, #tpu.memory_space<vmem>>, %arg5: memref<1x7x7x128xbf16, #tpu.memory_space<vmem>>, %arg6: memref<288x128xf32, #tpu.memory_space<vmem>>) attributes {dimension_semantics = [#tpu.dimension_semantics<parallel>, #tpu.dimension_semantics<parallel>], iteration_bounds = array<i64: 2, 1>, scalar_prefetch = 0 : i64, scratch_operands = 1 : i64, tpu.core_type = #tpu.core_type<tc>, window_params = [{transform_indices = @transform_0, window_bounds = array<i64: 1, 342, 4>}, {transform_indices = @transform_1, window_bounds = array<i64: 3, 3, 4, 128>}, {transform_indices = @transform_2, window_bounds = array<i64: 1, 128>}, {transform_indices = @transform_3, window_bounds = array<i64: 1, 7, 7, 128>}]} {
    %c0 = arith.constant 0 : index
    %c0_0 = arith.constant 0 : index
    %c0_1 = arith.constant 0 : index
    %0 = vector.load %arg2[%c0, %c0_0, %c0_1] : memref<1x342x4xbf16, #tpu.memory_space<vmem>>, vector<1x288x4xbf16>
    %1 = vector.shape_cast %0 : vector<1x288x4xbf16> to vector<288x4xbf16>
    %c0_2 = arith.constant 0 : index
    %c0_3 = arith.constant 0 : index
    %c0_4 = arith.constant 0 : index
    %c0_5 = arith.constant 0 : index
    %2 = vector.load %arg3[%c0_2, %c0_3, %c0_4, %c0_5] : memref<3x3x4x128xbf16, #tpu.memory_space<vmem>>, vector<1x1x4x128xbf16>
    %3 = vector.shape_cast %2 : vector<1x1x4x128xbf16> to vector<4x128xbf16>
    %cst = arith.constant dense<0.000000e+00> : vector<288x128xf32>
    %4 = tpu.matmul %1, %3, %cst {dimension_numbers = #tpu.dot_dimension_numbers<[1], [0], [0], [1], [0, 0, 1, 1], [], []>} : vector<288x4xbf16>, vector<4x128xbf16>, vector<288x128xf32> -> vector<288x128xf32>
    %c0_6 = arith.constant 0 : index
    %c0_7 = arith.constant 0 : index
    %5 = vector.load %arg6[%c0_6, %c0_7] : memref<288x128xf32, #tpu.memory_space<vmem>>, vector<288x128xf32>
    tpu.vector_store %arg6[%c0_6, %c0_7], %4 {strides = array<i32>} : memref<288x128xf32, #tpu.memory_space<vmem>>, vector<288x128xf32>,
    %c0_8 = arith.constant 0 : index
    %c1 = arith.constant 1 : index
    %c0_9 = arith.constant 0 : index
    %6 = vector.load %arg2[%c0_8, %c1, %c0_9] : memref<1x342x4xbf16, #tpu.memory_space<vmem>>, vector<1x288x4xbf16>
    %7 = vector.shape_cast %6 : vector<1x288x4xbf16> to vector<288x4xbf16>
    %c0_10 = arith.constant 0 : index
    %c1_11 = arith.constant 1 : index
    %c0_12 = arith.constant 0 : index
    %c0_13 = arith.constant 0 : index
    %8 = vector.load %arg3[%c0_10, %c1_11, %c0_12, %c0_13] : memref<3x3x4x128xbf16, #tpu.memory_space<vmem>>, vector<1x1x4x128xbf16>
    %9 = vector.shape_cast %8 : vector<1x1x4x128xbf16> to vector<4x128xbf16>
    %cst_14 = arith.constant dense<0.000000e+00> : vector<288x128xf32>
    %10 = tpu.matmul %7, %9, %cst_14 {dimension_numbers = #tpu.dot_dimension_numbers<[1], [0], [0], [1], [0, 0, 1, 1], [], []>} : vector<288x4xbf16>, vector<4x128xbf16>, vector<288x128xf32> -> vector<288x128xf32>
    %c0_15 = arith.constant 0 : index
    %c0_16 = arith.constant 0 : index
    %11 = vector.load %arg6[%c0_15, %c0_16] : memref<288x128xf32, #tpu.memory_space<vmem>>, vector<288x128xf32>
    %12 = arith.addf %11, %10 : vector<288x128xf32>
    %c0_17 = arith.constant 0 : index
    %c0_18 = arith.constant 0 : index
    %13 = vector.load %arg6[%c0_17, %c0_18] : memref<288x128xf32, #tpu.memory_space<vmem>>, vector<288x128xf32>
    tpu.vector_store %arg6[%c0_17, %c0_18], %12 {strides = array<i32>} : memref<288x128xf32, #tpu.memory_space<vmem>>, vector<288x128xf32>,
    %c0_19 = arith.constant 0 : index
    %c2 = arith.constant 2 : index
    %c0_20 = arith.constant 0 : index
    %14 = vector.load %arg2[%c0_19, %c2, %c0_20] : memref<1x342x4xbf16, #tpu.memory_space<vmem>>, vector<1x288x4xbf16>
    %15 = vector.shape_cast %14 : vector<1x288x4xbf16> to vector<288x4xbf16>
    %c0_21 = arith.constant 0 : index
    %c2_22 = arith.constant 2 : index
    %c0_23 = arith.constant 0 : index
    %c0_24 = arith.constant 0 : index
    %16 = vector.load %arg3[%c0_21, %c2_22, %c0_23, %c0_24] : memref<3x3x4x128xbf16, #tpu.memory_space<vmem>>, vector<1x1x4x128xbf16>
    %17 = vector.shape_cast %16 : vector<1x1x4x128xbf16> to vector<4x128xbf16>
    %cst_25 = arith.constant dense<0.000000e+00> : vector<288x128xf32>
    %18 = tpu.matmul %15, %17, %cst_25 {dimension_numbers = #tpu.dot_dimension_numbers<[1], [0], [0], [1], [0, 0, 1, 1], [], []>} : vector<288x4xbf16>, vector<4x128xbf16>, vector<288x128xf32> -> vector<288x128xf32>
    %c0_26 = arith.constant 0 : index
    %c0_27 = arith.constant 0 : index
    %19 = vector.load %arg6[%c0_26, %c0_27] : memref<288x128xf32, #tpu.memory_space<vmem>>, vector<288x128xf32>
    %20 = arith.addf %19, %18 : vector<288x128xf32>
    %c0_28 = arith.constant 0 : index
    %c0_29 = arith.constant 0 : index
    %21 = vector.load %arg6[%c0_28, %c0_29] : memref<288x128xf32, #tpu.memory_space<vmem>>, vector<288x128xf32>
    tpu.vector_store %arg6[%c0_28, %c0_29], %20 {strides = array<i32>} : memref<288x128xf32, #tpu.memory_space<vmem>>, vector<288x128xf32>,
    %c0_30 = arith.constant 0 : index
    %c18 = arith.constant 18 : index
    %c0_31 = arith.constant 0 : index
    %22 = vector.load %arg2[%c0_30, %c18, %c0_31] : memref<1x342x4xbf16, #tpu.memory_space<vmem>>, vector<1x288x4xbf16>
    %23 = vector.shape_cast %22 : vector<1x288x4xbf16> to vector<288x4xbf16>
    %c1_32 = arith.constant 1 : index
    %c0_33 = arith.constant 0 : index
    %c0_34 = arith.constant 0 : index
    %c0_35 = arith.constant 0 : index
    %24 = vector.load %arg3[%c1_32, %c0_33, %c0_34, %c0_35] : memref<3x3x4x128xbf16, #tpu.memory_space<vmem>>, vector<1x1x4x128xbf16>
    %25 = vector.shape_cast %24 : vector<1x1x4x128xbf16> to vector<4x128xbf16>
    %cst_36 = arith.constant dense<0.000000e+00> : vector<288x128xf32>
    %26 = tpu.matmul %23, %25, %cst_36 {dimension_numbers = #tpu.dot_dimension_numbers<[1], [0], [0], [1], [0, 0, 1, 1], [], []>} : vector<288x4xbf16>, vector<4x128xbf16>, vector<288x128xf32> -> vector<288x128xf32>
    %c0_37 = arith.constant 0 : index
    %c0_38 = arith.constant 0 : index
    %27 = vector.load %arg6[%c0_37, %c0_38] : memref<288x128xf32, #tpu.memory_space<vmem>>, vector<288x128xf32>
    %28 = arith.addf %27, %26 : vector<288x128xf32>
    %c0_39 = arith.constant 0 : index
    %c0_40 = arith.constant 0 : index
    %29 = vector.load %arg6[%c0_39, %c0_40] : memref<288x128xf32, #tpu.memory_space<vmem>>, vector<288x128xf32>
    tpu.vector_store %arg6[%c0_39, %c0_40], %28 {strides = array<i32>} : memref<288x128xf32, #tpu.memory_space<vmem>>, vector<288x128xf32>,
    %c0_41 = arith.constant 0 : index
    %c19 = arith.constant 19 : index
    %c0_42 = arith.constant 0 : index
    %30 = vector.load %arg2[%c0_41, %c19, %c0_42] : memref<1x342x4xbf16, #tpu.memory_space<vmem>>, vector<1x288x4xbf16>
    %31 = vector.shape_cast %30 : vector<1x288x4xbf16> to vector<288x4xbf16>
    %c1_43 = arith.constant 1 : index
    %c1_44 = arith.constant 1 : index
    %c0_45 = arith.constant 0 : index
    %c0_46 = arith.constant 0 : index
    %32 = vector.load %arg3[%c1_43, %c1_44, %c0_45, %c0_46] : memref<3x3x4x128xbf16, #tpu.memory_space<vmem>>, vector<1x1x4x128xbf16>
    %33 = vector.shape_cast %32 : vector<1x1x4x128xbf16> to vector<4x128xbf16>
    %cst_47 = arith.constant dense<0.000000e+00> : vector<288x128xf32>
    %34 = tpu.matmul %31, %33, %cst_47 {dimension_numbers = #tpu.dot_dimension_numbers<[1], [0], [0], [1], [0, 0, 1, 1], [], []>} : vector<288x4xbf16>, vector<4x128xbf16>, vector<288x128xf32> -> vector<288x128xf32>
    %c0_48 = arith.constant 0 : index
    %c0_49 = arith.constant 0 : index
    %35 = vector.load %arg6[%c0_48, %c0_49] : memref<288x128xf32, #tpu.memory_space<vmem>>, vector<288x128xf32>
    %36 = arith.addf %35, %34 : vector<288x128xf32>
    %c0_50 = arith.constant 0 : index
    %c0_51 = arith.constant 0 : index
    %37 = vector.load %arg6[%c0_50, %c0_51] : memref<288x128xf32, #tpu.memory_space<vmem>>, vector<288x128xf32>
    tpu.vector_store %arg6[%c0_50, %c0_51], %36 {strides = array<i32>} : memref<288x128xf32, #tpu.memory_space<vmem>>, vector<288x128xf32>,
    %c0_52 = arith.constant 0 : index
    %c20 = arith.constant 20 : index
    %c0_53 = arith.constant 0 : index
    %38 = vector.load %arg2[%c0_52, %c20, %c0_53] : memref<1x342x4xbf16, #tpu.memory_space<vmem>>, vector<1x288x4xbf16>
    %39 = vector.shape_cast %38 : vector<1x288x4xbf16> to vector<288x4xbf16>
    %c1_54 = arith.constant 1 : index
    %c2_55 = arith.constant 2 : index
    %c0_56 = arith.constant 0 : index
    %c0_57 = arith.constant 0 : index
    %40 = vector.load %arg3[%c1_54, %c2_55, %c0_56, %c0_57] : memref<3x3x4x128xbf16, #tpu.memory_space<vmem>>, vector<1x1x4x128xbf16>
    %41 = vector.shape_cast %40 : vector<1x1x4x128xbf16> to vector<4x128xbf16>
    %cst_58 = arith.constant dense<0.000000e+00> : vector<288x128xf32>
    %42 = tpu.matmul %39, %41, %cst_58 {dimension_numbers = #tpu.dot_dimension_numbers<[1], [0], [0], [1], [0, 0, 1, 1], [], []>} : vector<288x4xbf16>, vector<4x128xbf16>, vector<288x128xf32> -> vector<288x128xf32>
    %c0_59 = arith.constant 0 : index
    %c0_60 = arith.constant 0 : index
    %43 = vector.load %arg6[%c0_59, %c0_60] : memref<288x128xf32, #tpu.memory_space<vmem>>, vector<288x128xf32>
    %44 = arith.addf %43, %42 : vector<288x128xf32>
    %c0_61 = arith.constant 0 : index
    %c0_62 = arith.constant 0 : index
    %45 = vector.load %arg6[%c0_61, %c0_62] : memref<288x128xf32, #tpu.memory_space<vmem>>, vector<288x128xf32>
    tpu.vector_store %arg6[%c0_61, %c0_62], %44 {strides = array<i32>} : memref<288x128xf32, #tpu.memory_space<vmem>>, vector<288x128xf32>,
    %c0_63 = arith.constant 0 : index
    %c36 = arith.constant 36 : index
    %c0_64 = arith.constant 0 : index
    %46 = vector.load %arg2[%c0_63, %c36, %c0_64] : memref<1x342x4xbf16, #tpu.memory_space<vmem>>, vector<1x288x4xbf16>
    %47 = vector.shape_cast %46 : vector<1x288x4xbf16> to vector<288x4xbf16>
    %c2_65 = arith.constant 2 : index
    %c0_66 = arith.constant 0 : index
    %c0_67 = arith.constant 0 : index
    %c0_68 = arith.constant 0 : index
    %48 = vector.load %arg3[%c2_65, %c0_66, %c0_67, %c0_68] : memref<3x3x4x128xbf16, #tpu.memory_space<vmem>>, vector<1x1x4x128xbf16>
    %49 = vector.shape_cast %48 : vector<1x1x4x128xbf16> to vector<4x128xbf16>
    %cst_69 = arith.constant dense<0.000000e+00> : vector<288x128xf32>
    %50 = tpu.matmul %47, %49, %cst_69 {dimension_numbers = #tpu.dot_dimension_numbers<[1], [0], [0], [1], [0, 0, 1, 1], [], []>} : vector<288x4xbf16>, vector<4x128xbf16>, vector<288x128xf32> -> vector<288x128xf32>
    %c0_70 = arith.constant 0 : index
    %c0_71 = arith.constant 0 : index
    %51 = vector.load %arg6[%c0_70, %c0_71] : memref<288x128xf32, #tpu.memory_space<vmem>>, vector<288x128xf32>
    %52 = arith.addf %51, %50 : vector<288x128xf32>
    %c0_72 = arith.constant 0 : index
    %c0_73 = arith.constant 0 : index
    %53 = vector.load %arg6[%c0_72, %c0_73] : memref<288x128xf32, #tpu.memory_space<vmem>>, vector<288x128xf32>
    tpu.vector_store %arg6[%c0_72, %c0_73], %52 {strides = array<i32>} : memref<288x128xf32, #tpu.memory_space<vmem>>, vector<288x128xf32>,
    %c0_74 = arith.constant 0 : index
    %c37 = arith.constant 37 : index
    %c0_75 = arith.constant 0 : index
    %54 = vector.load %arg2[%c0_74, %c37, %c0_75] : memref<1x342x4xbf16, #tpu.memory_space<vmem>>, vector<1x288x4xbf16>
    %55 = vector.shape_cast %54 : vector<1x288x4xbf16> to vector<288x4xbf16>
    %c2_76 = arith.constant 2 : index
    %c1_77 = arith.constant 1 : index
    %c0_78 = arith.constant 0 : index
    %c0_79 = arith.constant 0 : index
    %56 = vector.load %arg3[%c2_76, %c1_77, %c0_78, %c0_79] : memref<3x3x4x128xbf16, #tpu.memory_space<vmem>>, vector<1x1x4x128xbf16>
    %57 = vector.shape_cast %56 : vector<1x1x4x128xbf16> to vector<4x128xbf16>
    %cst_80 = arith.constant dense<0.000000e+00> : vector<288x128xf32>
    %58 = tpu.matmul %55, %57, %cst_80 {dimension_numbers = #tpu.dot_dimension_numbers<[1], [0], [0], [1], [0, 0, 1, 1], [], []>} : vector<288x4xbf16>, vector<4x128xbf16>, vector<288x128xf32> -> vector<288x128xf32>
    %c0_81 = arith.constant 0 : index
    %c0_82 = arith.constant 0 : index
    %59 = vector.load %arg6[%c0_81, %c0_82] : memref<288x128xf32, #tpu.memory_space<vmem>>, vector<288x128xf32>
    %60 = arith.addf %59, %58 : vector<288x128xf32>
    %c0_83 = arith.constant 0 : index
    %c0_84 = arith.constant 0 : index
    %61 = vector.load %arg6[%c0_83, %c0_84] : memref<288x128xf32, #tpu.memory_space<vmem>>, vector<288x128xf32>
    tpu.vector_store %arg6[%c0_83, %c0_84], %60 {strides = array<i32>} : memref<288x128xf32, #tpu.memory_space<vmem>>, vector<288x128xf32>,
    %c0_85 = arith.constant 0 : index
    %c38 = arith.constant 38 : index
    %c0_86 = arith.constant 0 : index
    %62 = vector.load %arg2[%c0_85, %c38, %c0_86] : memref<1x342x4xbf16, #tpu.memory_space<vmem>>, vector<1x288x4xbf16>
    %63 = vector.shape_cast %62 : vector<1x288x4xbf16> to vector<288x4xbf16>
    %c2_87 = arith.constant 2 : index
    %c2_88 = arith.constant 2 : index
    %c0_89 = arith.constant 0 : index
    %c0_90 = arith.constant 0 : index
    %64 = vector.load %arg3[%c2_87, %c2_88, %c0_89, %c0_90] : memref<3x3x4x128xbf16, #tpu.memory_space<vmem>>, vector<1x1x4x128xbf16>
    %65 = vector.shape_cast %64 : vector<1x1x4x128xbf16> to vector<4x128xbf16>
    %cst_91 = arith.constant dense<0.000000e+00> : vector<288x128xf32>
    %66 = tpu.matmul %63, %65, %cst_91 {dimension_numbers = #tpu.dot_dimension_numbers<[1], [0], [0], [1], [0, 0, 1, 1], [], []>} : vector<288x4xbf16>, vector<4x128xbf16>, vector<288x128xf32> -> vector<288x128xf32>
    %c0_92 = arith.constant 0 : index
    %c0_93 = arith.constant 0 : index
    %67 = vector.load %arg6[%c0_92, %c0_93] : memref<288x128xf32, #tpu.memory_space<vmem>>, vector<288x128xf32>
    %68 = arith.addf %67, %66 : vector<288x128xf32>
    %c0_94 = arith.constant 0 : index
    %c0_95 = arith.constant 0 : index
    %69 = vector.load %arg6[%c0_94, %c0_95] : memref<288x128xf32, #tpu.memory_space<vmem>>, vector<288x128xf32>
    tpu.vector_store %arg6[%c0_94, %c0_95], %68 {strides = array<i32>} : memref<288x128xf32, #tpu.memory_space<vmem>>, vector<288x128xf32>,
    %c0_96 = arith.constant 0 : index
    %c0_97 = arith.constant 0 : index
    %70 = vector.load %arg6[%c0_96, %c0_97] : memref<288x128xf32, #tpu.memory_space<vmem>>, vector<288x128xf32>
    %c0_98 = arith.constant 0 : index
    %c0_99 = arith.constant 0 : index
    %71 = vector.load %arg4[%c0_98, %c0_99] : memref<1x128xf32, #tpu.memory_space<vmem>>, vector<1x128xf32>
    %72 = vector.broadcast %71 : vector<1x128xf32> to vector<288x128xf32>
    %73 = arith.addf %70, %72 : vector<288x128xf32>
    %cst_100 = arith.constant 0.000000e+00 : f32
    %74 = vector.broadcast %cst_100 : f32 to vector<288x128xf32>
    %75 = arith.maximumf %73, %74 : vector<288x128xf32>
    %76 = vector.shape_cast %75 : vector<288x128xf32> to vector<16x18x128xf32>
    %77 = vector.extract_strided_slice %76 {offsets = [0, 0, 0], sizes = [16, 14, 128], strides = [1, 1, 1]} : vector<16x18x128xf32> to vector<16x14x128xf32>
    %78 = vector.extract_strided_slice %76 {offsets = [0, 1, 0], sizes = [16, 14, 128], strides = [1, 1, 1]} : vector<16x18x128xf32> to vector<16x14x128xf32>
    %79 = arith.maximumf %77, %78 : vector<16x14x128xf32>
    %80 = vector.extract_strided_slice %76 {offsets = [0, 2, 0], sizes = [16, 14, 128], strides = [1, 1, 1]} : vector<16x18x128xf32> to vector<16x14x128xf32>
    %81 = arith.maximumf %79, %80 : vector<16x14x128xf32>
    %82 = vector.extract_strided_slice %81 {offsets = [0, 0, 0], sizes = [14, 14, 128], strides = [1, 1, 1]} : vector<16x14x128xf32> to vector<14x14x128xf32>
    %83 = vector.extract_strided_slice %81 {offsets = [1, 0, 0], sizes = [14, 14, 128], strides = [1, 1, 1]} : vector<16x14x128xf32> to vector<14x14x128xf32>
    %84 = arith.maximumf %82, %83 : vector<14x14x128xf32>
    %85 = vector.extract_strided_slice %81 {offsets = [2, 0, 0], sizes = [14, 14, 128], strides = [1, 1, 1]} : vector<16x14x128xf32> to vector<14x14x128xf32>
    %86 = arith.maximumf %84, %85 : vector<14x14x128xf32>
    %87 = vector.shape_cast %86 : vector<14x14x128xf32> to vector<7x2x14x128xf32>
    %88 = vector.extract_strided_slice %87 {offsets = [0, 0, 0, 0], sizes = [7, 1, 14, 128], strides = [1, 1, 1, 1]} : vector<7x2x14x128xf32> to vector<7x1x14x128xf32>
    %89 = vector.shape_cast %88 : vector<7x1x14x128xf32> to vector<7x14x128xf32>
    %90 = vector.shape_cast %89 : vector<7x14x128xf32> to vector<7x7x2x128xf32>
    %91 = vector.extract_strided_slice %90 {offsets = [0, 0, 0, 0], sizes = [7, 7, 1, 128], strides = [1, 1, 1, 1]} : vector<7x7x2x128xf32> to vector<7x7x1x128xf32>
    %92 = vector.shape_cast %91 : vector<7x7x1x128xf32> to vector<7x7x128xf32>
    %93 = arith.truncf %92 : vector<7x7x128xf32> to vector<7x7x128xbf16>
    %c0_101 = arith.constant 0 : index
    %c0_102 = arith.constant 0 : index
    %c0_103 = arith.constant 0 : index
    %c0_104 = arith.constant 0 : index
    %94 = vector.load %arg5[%c0_101, %c0_102, %c0_103, %c0_104] : memref<1x7x7x128xbf16, #tpu.memory_space<vmem>>, vector<1x7x7x128xbf16>
    %95 = vector.shape_cast %94 : vector<1x7x7x128xbf16> to vector<7x7x128xbf16>
    %96 = vector.shape_cast %93 : vector<7x7x128xbf16> to vector<1x7x7x128xbf16>
    tpu.vector_store %arg5[%c0_101, %c0_102, %c0_103, %c0_104], %96 {strides = array<i32>} : memref<1x7x7x128xbf16, #tpu.memory_space<vmem>>, vector<1x7x7x128xbf16>,
    return
  }
  func.func @transform_0(%arg0: i32, %arg1: i32) -> (i32, i32, i32) {
    %c0_i32 = arith.constant 0 : i32
    %c0_i32_0 = arith.constant 0 : i32
    %c0_i32_1 = arith.constant 0 : i32
    return %arg0, %c0_i32, %c0_i32_0 : i32, i32, i32
  }
  func.func @transform_1(%arg0: i32, %arg1: i32) -> (i32, i32, i32, i32) {
    %c0_i32 = arith.constant 0 : i32
    %c0_i32_0 = arith.constant 0 : i32
    %c0_i32_1 = arith.constant 0 : i32
    %c0_i32_2 = arith.constant 0 : i32
    return %c0_i32, %c0_i32_0, %c0_i32_1, %arg1 : i32, i32, i32, i32
  }
  func.func @transform_2(%arg0: i32, %arg1: i32) -> (i32, i32) {
    %c0_i32 = arith.constant 0 : i32
    %c0_i32_0 = arith.constant 0 : i32
    return %c0_i32, %arg1 : i32, i32
  }
  func.func @transform_3(%arg0: i32, %arg1: i32) -> (i32, i32, i32, i32) {
    %c0_i32 = arith.constant 0 : i32
    %c0_i32_0 = arith.constant 0 : i32
    %c0_i32_1 = arith.constant 0 : i32
    return %arg0, %c0_i32, %c0_i32_0, %arg1 : i32, i32, i32, i32
  }
}

</mosaic_0001>

<llo_original>
// kernel: tpu_custom_call.1
$region0: #{tpu_custom_call.1}
  #allocation0 [shape = 'u32[]', space=smem, size = 0x4, offset = 0x4, fixed_abs, tag = 'smem constant byte address 0x4 - core index']
  #allocation1 [shape = 'u32[72,128]{1,0:T(1,128)}', space=vmem, size = 0x9000, scoped, tag = 'internal scratch']
  #allocation2 [shape = 'f32[288,128]{1,0:T(8,128)}', space=vmem, size = 0x24000, scoped, tag = 'scratch operand']
  %s0 = inlined_call_operand.vmem [shape: bf16[2,342,4], index: 0, kind: input, shape index: {}]
  %s1 = inlined_call_operand.vmem [shape: bf16[3,3,4,128], index: 1, kind: input, shape index: {}]
  %s2 = inlined_call_operand.vmem [shape: f32[1,128], index: 2, kind: input, shape index: {}]
  %s3 = inlined_call_operand.vmem [shape: bf16[2,7,7,128], index: 3, kind: output, shape index: {}]
  %s4 = sld [smem:[#allocation0]]
  $region45: #{tpu_custom_call.1} parent=0
    _
  %s6 = ssub.s32 1, %s4
  %s7 = scalar_select 0, %s6, %s4
  loop: start=0, step=1, limit=4
  $region2: #{tpu_custom_call.1} parent=0 // loop_pre_header
    _
  $region3: #{tpu_custom_call.1} parent=0 // loop_header
    %s9 = sphi 0, %s13
    %p10 = scmp.ge.s32.totalorder %s9, 4
    %s16 = sphi 0, %s28
    %s17 = sphi 0, %s24
    %s18 = sphi 0, %s16
    %s19 = sphi 0, %s17
    %s20 = sphi 0, %s18
    %s21 = sphi 0, %s19
    %s31 = sphi 0, %s33
    %s34 = sphi 0, %s31
    %s35 = sphi 0, %s34
    %s51 = sphi 0, %s35
    %s57 = sphi 0, %s59
    %s60 = sphi 0, %s57
    %s61 = sphi 0, %s60
    %s77 = sphi 0, %s61
    %s83 = sphi 0, %s85
    %s86 = sphi 0, %s83
    %s87 = sphi 0, %s86
    %s103 = sphi 0, %s87
    %s111 = sphi 0, %s113
    %s114 = sphi 0, %s111
    %s115 = sphi 0, %s114
    %s131 = sphi 0, %s115
  $region4: #{tpu_custom_call.1} parent=0 // loop_header_branch
    %12 = sbr.rel (%p10) target = $region8
  $region5: #{tpu_custom_call.1} parent=0 // loop_body
    %s14 = ssub.s32 %s9, 1
    %s15 = ssub.s32 %s9, 2
    %s22 = sadd.s32 1, %s17
    %p23 = scmp.ge.s32.totalorder %s22, 1
    %s24 = scalar_select %p23, 0, %s22
    %s25 = sadd.s32 1, %s16
    %s26 = scalar_select %p23, %s25, %s16
    %p27 = scmp.ge.s32.totalorder %s26, 2
    %s28 = scalar_select %p27, 0, %s26
    %s29 = ssub.s32 %s16, %s28
    %p30 = scmp.eq.s32.totalorder %s29, 0
    %s32 = sadd.s32 %s31, 1
    %s33 = scalar_select %p30, %s31, %s32
    %p36 = pneg %p30
    %p37 = scmp.eq.s32.totalorder %s9, 1
    %p38 = por %p36, %p37
    %p39 = scmp.ne.s32.totalorder %s31, %s34
    %p40 = scmp.eq.s32.totalorder %s9, 0
    %p41 = por %p39, %p40
    %p42 = scmp.ne.s32.totalorder %s31, %s34
    %p43 = scmp.eq.s32.totalorder %s14, 1
    %p44 = por %p42, %p43
    %p45 = scmp.ne.s32.totalorder %s34, %s35
    %p46 = scmp.eq.s32.totalorder %s14, 0
    %p47 = por %p45, %p46
    %p48 = scmp.ne.s32.totalorder %s34, %s35
    %p49 = scmp.eq.s32.totalorder %s15, 1
    %p50 = por %p48, %p49
    %p52 = scmp.ne.s32.totalorder %s35, %s51
    %p53 = scmp.eq.s32.totalorder %s15, 0
    %p54 = por %p52, %p53
    %s55 = ssub.s32 %s17, %s24
    %p56 = scmp.eq.s32.totalorder %s55, 0
    %s58 = sadd.s32 %s57, 1
    %s59 = scalar_select %p56, %s57, %s58
    %p62 = pneg %p56
    %p63 = scmp.eq.s32.totalorder %s9, 1
    %p64 = por %p62, %p63
    %p65 = scmp.ne.s32.totalorder %s57, %s60
    %p66 = scmp.eq.s32.totalorder %s9, 0
    %p67 = por %p65, %p66
    %p68 = scmp.ne.s32.totalorder %s57, %s60
    %p69 = scmp.eq.s32.totalorder %s14, 1
    %p70 = por %p68, %p69
    %p71 = scmp.ne.s32.totalorder %s60, %s61
    %p72 = scmp.eq.s32.totalorder %s14, 0
    %p73 = por %p71, %p72
    %p74 = scmp.ne.s32.totalorder %s60, %s61
    %p75 = scmp.eq.s32.totalorder %s15, 1
    %p76 = por %p74, %p75
    %p78 = scmp.ne.s32.totalorder %s61, %s77
    %p79 = scmp.eq.s32.totalorder %s15, 0
    %p80 = por %p78, %p79
    %s81 = ssub.s32 %s17, %s24
    %p82 = scmp.eq.s32.totalorder %s81, 0
    %s84 = sadd.s32 %s83, 1
    %s85 = scalar_select %p82, %s83, %s84
    %p88 = pneg %p82
    %p89 = scmp.eq.s32.totalorder %s9, 1
    %p90 = por %p88, %p89
    %p91 = scmp.ne.s32.totalorder %s83, %s86
    %p92 = scmp.eq.s32.totalorder %s9, 0
    %p93 = por %p91, %p92
    %p94 = scmp.ne.s32.totalorder %s83, %s86
    %p95 = scmp.eq.s32.totalorder %s14, 1
    %p96 = por %p94, %p95
    %p97 = scmp.ne.s32.totalorder %s86, %s87
    %p98 = scmp.eq.s32.totalorder %s14, 0
    %p99 = por %p97, %p98
    %p100 = scmp.ne.s32.totalorder %s86, %s87
    %p101 = scmp.eq.s32.totalorder %s15, 1
    %p102 = por %p100, %p101
    %p104 = scmp.ne.s32.totalorder %s87, %s103
    %p105 = scmp.eq.s32.totalorder %s15, 0
    %p106 = por %p104, %p105
    %s107 = ssub.s32 %s16, %s28
    %s108 = ssub.s32 %s17, %s24
    %s109 = sor.u32 %s107, %s108
    %p110 = scmp.eq.s32.totalorder %s109, 0
    %s112 = sadd.s32 %s111, 1
    %s113 = scalar_select %p110, %s111, %s112
    %p116 = pneg %p110
    %p117 = scmp.eq.s32.totalorder %s9, 1
    %p118 = por %p116, %p117
    %p119 = scmp.ne.s32.totalorder %s111, %s114
    %p120 = scmp.eq.s32.totalorder %s9, 0
    %p121 = por %p119, %p120
    %p122 = scmp.ne.s32.totalorder %s111, %s114
    %p123 = scmp.eq.s32.totalorder %s14, 1
    %p124 = por %p122, %p123
    %p125 = scmp.ne.s32.totalorder %s114, %s115
    %p126 = scmp.eq.s32.totalorder %s14, 0
    %p127 = por %p125, %p126
    %p128 = scmp.ne.s32.totalorder %s114, %s115
    %p129 = scmp.eq.s32.totalorder %s15, 1
    %p130 = por %p128, %p129
    %p132 = scmp.ne.s32.totalorder %s115, %s131
    %p133 = scmp.eq.s32.totalorder %s15, 0
    %p134 = por %p132, %p133
    %p135 = scmp.le.s32.totalorder 1, %s9
    %p136 = scmp.lt.s32.totalorder %s9, 3
    %p137 = pnand %p135, %p136
    %p138 = pneg %p137
    // Predicated region
    $region9: #{tpu_custom_call.1} parent=5 // pred_check
      _
    $region10: #{tpu_custom_call.1} parent=5 // pred_check_branch
      %140 = sbr.rel (%p137) target = $region12
    $region11: #{tpu_custom_call.1} parent=5 // pred_region
      %s141 = ssub.s32 %s9, 1
      // Predicated region
      $region13: #{tpu_custom_call.1} parent=11 // pred_check
        %p142 = pneg %p73
      $region14: #{tpu_custom_call.1} parent=11 // pred_check_branch
        %144 = sbr.rel (%p142) target = $region16
      $region15: #{tpu_custom_call.1} parent=11 // pred_region
        %p145 = scmp.lt.s32.totalorder %s19, 0
        %s146 = scalar_select %p145, %s19, 0
        %s147 = smul.addr %s146, 2
        %s148 = scalar_lea.vmem %s1, %s147
      $region16: #{tpu_custom_call.1} parent=11 // pred_fallthru
        _
      // Predicated region
      $region17: #{tpu_custom_call.1} parent=11 // pred_check
        %p149 = pneg %p99
      $region18: #{tpu_custom_call.1} parent=11 // pred_check_branch
        %151 = sbr.rel (%p149) target = $region20
      $region19: #{tpu_custom_call.1} parent=11 // pred_region
        %p152 = scmp.lt.s32.totalorder %s19, 0
        %s153 = scalar_select %p152, %s19, 0
        %s154 = scalar_lea.vmem %s2, %s153
      $region20: #{tpu_custom_call.1} parent=11 // pred_fallthru
        _
    $region12: #{tpu_custom_call.1} parent=5 // pred_fallthru
      _
    %p155 = scmp.lt.s32.totalorder %s9, 2
    // Predicated region
    $region21: #{tpu_custom_call.1} parent=5 // pred_check
      %p156 = pneg %p155
    $region22: #{tpu_custom_call.1} parent=5 // pred_check_branch
      %158 = sbr.rel (%p156) target = $region24
    $region23: #{tpu_custom_call.1} parent=5 // pred_region
      // Predicated region
      $region25: #{tpu_custom_call.1} parent=23 // pred_check
        %p159 = pneg %p41
      $region26: #{tpu_custom_call.1} parent=23 // pred_check_branch
        %161 = sbr.rel (%p159) target = $region28
      $region27: #{tpu_custom_call.1} parent=23 // pred_region
        %p162 = scmp.lt.s32.totalorder %s16, 1
        %s163 = scalar_select %p162, %s16, 1
        %s164 = smul.addr %s163, 43
        %s165 = smul.addr %s164, 4
        %s166 = scalar_lea.vmem %s0, %s165
      $region28: #{tpu_custom_call.1} parent=23 // pred_fallthru
        _
    $region24: #{tpu_custom_call.1} parent=5 // pred_fallthru
      _
    %p167 = scmp.le.s32.totalorder 1, %s9
    %p168 = scmp.lt.s32.totalorder %s9, 3
    %p169 = pnand %p167, %p168
    %p170 = pneg %p169
    // Predicated region
    $region29: #{tpu_custom_call.1} parent=5 // pred_check
      _
    $region30: #{tpu_custom_call.1} parent=5 // pred_check_branch
      %172 = sbr.rel (%p169) target = $region32
    $region31: #{tpu_custom_call.1} parent=5 // pred_region
      %s173 = ssub.s32 %s9, 1
      %p174 = scmp.lt.s32.totalorder %s18, 1
      %s175 = scalar_select %p174, %s18, 1
      %s176 = smul.addr %s175, 43
      %s177 = smul.addr %s176, 4
      %s178 = scalar_lea.vmem %s0, %s177
      %p179 = pneg %p47
      %p180 = pneg %p44
      %p181 = scmp.lt.s32.totalorder %s19, 0
      %s182 = scalar_select %p181, %s19, 0
      %s183 = smul.addr %s182, 2
      %s184 = scalar_lea.vmem %s1, %s183
      %p185 = pneg %p73
      %p186 = pneg %p70
      %p187 = scmp.lt.s32.totalorder %s19, 0
      %s188 = scalar_select %p187, %s19, 0
      %s189 = scalar_lea.vmem %s2, %s188
      %p190 = pneg %p99
      %p191 = pneg %p96
      %p192 = pneg %p127
      %p193 = pneg %p124
      %p194 = scmp.lt.s32.totalorder %s18, 1
      %s195 = scalar_select %p194, %s18, 1
      %p196 = scmp.lt.s32.totalorder %s19, 0
      %s197 = scalar_select %p196, %s19, 0
      %s198 = smul.addr %s195, 7
      %s199 = sadd.s32 %s197, %s198
      %s200 = smul.addr %s199, 4
      %s201 = scalar_lea.vmem %s3, %s200
      %p202 = scmp.lt.s32.totalorder %s18, 1
      %s203 = scalar_select %p202, %s18, 1
      %s204 = smul.addr %s203, 43
      %s205 = smul.addr %s204, 4
      %s206 = scalar_lea.vmem %s0, %s205
      %p207 = scmp.lt.s32.totalorder %s19, 0
      %s208 = scalar_select %p207, %s19, 0
      %s209 = smul.addr %s208, 2
      %s210 = scalar_lea.vmem %s1, %s209
      %p211 = scmp.lt.s32.totalorder %s19, 0
      %s212 = scalar_select %p211, %s19, 0
      %s213 = scalar_lea.vmem %s2, %s212
      %p214 = scmp.lt.s32.totalorder %s18, 1
      %s215 = scalar_select %p214, %s18, 1
      %p216 = scmp.lt.s32.totalorder %s19, 0
      %s217 = scalar_select %p216, %s19, 0
      %s218 = smul.addr %s215, 7
      %s219 = sadd.s32 %s217, %s218
      %s220 = smul.addr %s219, 4
      %s221 = scalar_lea.vmem %s3, %s220
      %v223 = vld [vmem:[%s206] sm:$0xf]
      %v224 = vld [vmem:[%s206 + $0x4] sm:$0xf]
      %v225 = vld [vmem:[%s206 + $0x8] sm:$0xf]
      %v226 = vld [vmem:[%s206 + $0xc] sm:$0xf]
      %v227 = vld [vmem:[%s206 + $0x10] sm:$0xf]
      %v228 = vld [vmem:[%s206 + $0x14] sm:$0xf]
      %v229 = vld [vmem:[%s206 + $0x18] sm:$0xf]
      %v230 = vld [vmem:[%s206 + $0x1c] sm:$0xf]
      %v231 = vld [vmem:[%s206 + $0x20] sm:$0xf]
      %v232 = vld [vmem:[%s206 + $0x24] sm:$0xf]
      %v233 = vld [vmem:[%s206 + $0x28] sm:$0xf]
      %v234 = vld [vmem:[%s206 + $0x2c] sm:$0xf]
      %v235 = vld [vmem:[%s206 + $0x30] sm:$0xf]
      %v236 = vld [vmem:[%s206 + $0x34] sm:$0xf]
      %v237 = vld [vmem:[%s206 + $0x38] sm:$0xf]
      %v238 = vld [vmem:[%s206 + $0x3c] sm:$0xf]
      %v239 = vld [vmem:[%s206 + $0x40] sm:$0xf]
      %v240 = vld [vmem:[%s206 + $0x44] sm:$0xf]
      %v241 = vld [vmem:[%s206 + $0x48] sm:$0xf]
      %v242 = vld [vmem:[%s206 + $0x4c] sm:$0xf]
      %v243 = vld [vmem:[%s206 + $0x50] sm:$0xf]
      %v244 = vld [vmem:[%s206 + $0x54] sm:$0xf]
      %v245 = vld [vmem:[%s206 + $0x58] sm:$0xf]
      %v246 = vld [vmem:[%s206 + $0x5c] sm:$0xf]
      %v247 = vld [vmem:[%s206 + $0x60] sm:$0xf]
      %v248 = vld [vmem:[%s206 + $0x64] sm:$0xf]
      %v249 = vld [vmem:[%s206 + $0x68] sm:$0xf]
      %v250 = vld [vmem:[%s206 + $0x6c] sm:$0xf]
      %v251 = vld [vmem:[%s206 + $0x70] sm:$0xf]
      %v252 = vld [vmem:[%s206 + $0x74] sm:$0xf]
      %v253 = vld [vmem:[%s206 + $0x78] sm:$0xf]
      %v254 = vld [vmem:[%s206 + $0x7c] sm:$0xf]
      %v255 = vld [vmem:[%s206 + $0x80] sm:$0xf]
      %v256 = vld [vmem:[%s206 + $0x84] sm:$0xf]
      %v257 = vld [vmem:[%s206 + $0x88] sm:$0xf]
      %v258 = vld [vmem:[%s206 + $0x8c] sm:$0xf]
      %v259 = vld [vmem:[%s210] sm:$0x3]
      %v296 = vunpack.c.l.b16 %v223
      %v297 = vunpack.c.l.b16 %v224
      %v298 = vunpack.c.l.b16 %v225
      %v299 = vunpack.c.l.b16 %v226
      %v300 = vunpack.c.l.b16 %v227
      %v301 = vunpack.c.l.b16 %v228
      %v302 = vunpack.c.l.b16 %v229
      %v303 = vunpack.c.l.b16 %v230
      %v304 = vunpack.c.l.b16 %v231
      %v305 = vunpack.c.l.b16 %v232
      %v306 = vunpack.c.l.b16 %v233
      %v307 = vunpack.c.l.b16 %v234
      %v308 = vunpack.c.l.b16 %v235
      %v309 = vunpack.c.l.b16 %v236
      %v310 = vunpack.c.l.b16 %v237
      %v311 = vunpack.c.l.b16 %v238
      %v312 = vunpack.c.l.b16 %v239
      %v313 = vunpack.c.l.b16 %v240
      %v314 = vunpack.c.l.b16 %v241
      %v315 = vunpack.c.l.b16 %v242
      %v316 = vunpack.c.l.b16 %v243
      %v317 = vunpack.c.l.b16 %v244
      %v318 = vunpack.c.l.b16 %v245
      %v319 = vunpack.c.l.b16 %v246
      %v320 = vunpack.c.l.b16 %v247
      %v321 = vunpack.c.l.b16 %v248
      %v322 = vunpack.c.l.b16 %v249
      %v323 = vunpack.c.l.b16 %v250
      %v324 = vunpack.c.l.b16 %v251
      %v325 = vunpack.c.l.b16 %v252
      %v326 = vunpack.c.l.b16 %v253
      %v327 = vunpack.c.l.b16 %v254
      %v328 = vunpack.c.l.b16 %v255
      %v329 = vunpack.c.l.b16 %v256
      %v330 = vunpack.c.l.b16 %v257
      %v331 = vunpack.c.l.b16 %v258
      %v332 = vpack.c.b16 %v297, %v296
      %v333 = vpack.c.b16 %v299, %v298
      %v334 = vpack.c.b16 %v301, %v300
      %v335 = vpack.c.b16 %v303, %v302
      %v336 = vpack.c.b16 %v305, %v304
      %v337 = vpack.c.b16 %v307, %v306
      %v338 = vpack.c.b16 %v309, %v308
      %v339 = vpack.c.b16 %v311, %v310
      %v340 = vpack.c.b16 %v313, %v312
      %v341 = vpack.c.b16 %v315, %v314
      %v342 = vpack.c.b16 %v317, %v316
      %v343 = vpack.c.b16 %v319, %v318
      %v344 = vpack.c.b16 %v321, %v320
      %v345 = vpack.c.b16 %v323, %v322
      %v346 = vpack.c.b16 %v325, %v324
      %v347 = vpack.c.b16 %v327, %v326
      %v348 = vpack.c.b16 %v329, %v328
      %v349 = vpack.c.b16 %v331, %v330
      %vm350 = vcmask 31744
      %v352 = vsel %vm350, %v332, 0
      %v355 = vsel %vm350, %v333, 0
      %v358 = vsel %vm350, %v334, 0
      %v361 = vsel %vm350, %v335, 0
      %v364 = vsel %vm350, %v336, 0
      %v367 = vsel %vm350, %v337, 0
      %v370 = vsel %vm350, %v338, 0
      %v373 = vsel %vm350, %v339, 0
      %v376 = vsel %vm350, %v340, 0
      %v379 = vsel %vm350, %v341, 0
      %v382 = vsel %vm350, %v342, 0
      %v385 = vsel %vm350, %v343, 0
      %v388 = vsel %vm350, %v344, 0
      %v391 = vsel %vm350, %v345, 0
      %v394 = vsel %vm350, %v346, 0
      %v397 = vsel %vm350, %v347, 0
      %v400 = vsel %vm350, %v348, 0
      %v403 = vsel %vm350, %v349, 0
      %vm405 = vcmask 1041408
      %v407 = vsel %vm405, %v259, 0
      %409 = vmatpush.bf16.msra.mxu0 0
      %410 = vmatpush.bf16.msra.mxu0 0
      %411 = vmatpush.bf16.msra.mxu0 0
      %412 = vmatpush.bf16.msra.mxu0 0
      %413 = vmatpush.bf16.msra.mxu0 0
      %414 = vmatpush.bf16.msra.mxu0 0
      %415 = vmatpush.bf16.msra.mxu0 0
      %416 = vmatpush.bf16.msra.mxu0 %v407
      %417 = vmatmul.bf16.gmra.mxu0 %v352
      %v418 = vpop.f32.mrf.mxu0
      %v419 = vadd.f32 0.0, %v418
      %v420 = vpop.f32.mrf.mxu0
      %v421 = vadd.f32 0.0, %v420
      %422 = vmatmul.bf16.gmra.mxu0 %v355
      %v423 = vpop.f32.mrf.mxu0
      %v424 = vadd.f32 0.0, %v423
      %v425 = vpop.f32.mrf.mxu0
      %v426 = vadd.f32 0.0, %v425
      %427 = vmatmul.bf16.gmra.mxu0 %v358
      %v428 = vpop.f32.mrf.mxu0
      %v429 = vadd.f32 0.0, %v428
      %v430 = vpop.f32.mrf.mxu0
      %v431 = vadd.f32 0.0, %v430
      %432 = vmatmul.bf16.gmra.mxu0 %v361
      %v433 = vpop.f32.mrf.mxu0
      %v434 = vadd.f32 0.0, %v433
      %v435 = vpop.f32.mrf.mxu0
      %v436 = vadd.f32 0.0, %v435
      %437 = vmatmul.bf16.gmra.mxu0 %v364
      %v438 = vpop.f32.mrf.mxu0
      %v439 = vadd.f32 0.0, %v438
      %v440 = vpop.f32.mrf.mxu0
      %v441 = vadd.f32 0.0, %v440
      %442 = vmatmul.bf16.gmra.mxu0 %v367
      %v443 = vpop.f32.mrf.mxu0
      %v444 = vadd.f32 0.0, %v443
      %v445 = vpop.f32.mrf.mxu0
      %v446 = vadd.f32 0.0, %v445
      %447 = vmatmul.bf16.gmra.mxu0 %v370
      %v448 = vpop.f32.mrf.mxu0
      %v449 = vadd.f32 0.0, %v448
      %v450 = vpop.f32.mrf.mxu0
      %v451 = vadd.f32 0.0, %v450
      %452 = vmatmul.bf16.gmra.mxu0 %v373
      %v453 = vpop.f32.mrf.mxu0
      %v454 = vadd.f32 0.0, %v453
      %v455 = vpop.f32.mrf.mxu0
      %v456 = vadd.f32 0.0, %v455
      %457 = vmatmul.bf16.gmra.mxu0 %v376
      %v458 = vpop.f32.mrf.mxu0
      %v459 = vadd.f32 0.0, %v458
      %v460 = vpop.f32.mrf.mxu0
      %v461 = vadd.f32 0.0, %v460
      %462 = vmatmul.bf16.gmra.mxu0 %v379
      %v463 = vpop.f32.mrf.mxu0
      %v464 = vadd.f32 0.0, %v463
      %v465 = vpop.f32.mrf.mxu0
      %v466 = vadd.f32 0.0, %v465
      %467 = vmatmul.bf16.gmra.mxu0 %v382
      %v468 = vpop.f32.mrf.mxu0
      %v469 = vadd.f32 0.0, %v468
      %v470 = vpop.f32.mrf.mxu0
      %v471 = vadd.f32 0.0, %v470
      %472 = vmatmul.bf16.gmra.mxu0 %v385
      %v473 = vpop.f32.mrf.mxu0
      %v474 = vadd.f32 0.0, %v473
      %v475 = vpop.f32.mrf.mxu0
      %v476 = vadd.f32 0.0, %v475
      %477 = vmatmul.bf16.gmra.mxu0 %v388
      %v478 = vpop.f32.mrf.mxu0
      %v479 = vadd.f32 0.0, %v478
      %v480 = vpop.f32.mrf.mxu0
      %v481 = vadd.f32 0.0, %v480
      %482 = vmatmul.bf16.gmra.mxu0 %v391
      %v483 = vpop.f32.mrf.mxu0
      %v484 = vadd.f32 0.0, %v483
      %v485 = vpop.f32.mrf.mxu0
      %v486 = vadd.f32 0.0, %v485
      %487 = vmatmul.bf16.gmra.mxu0 %v394
      %v488 = vpop.f32.mrf.mxu0
      %v489 = vadd.f32 0.0, %v488
      %v490 = vpop.f32.mrf.mxu0
      %v491 = vadd.f32 0.0, %v490
      %492 = vmatmul.bf16.gmra.mxu0 %v397
      %v493 = vpop.f32.mrf.mxu0
      %v494 = vadd.f32 0.0, %v493
      %v495 = vpop.f32.mrf.mxu0
      %v496 = vadd.f32 0.0, %v495
      %497 = vmatmul.bf16.gmra.mxu0 %v400
      %v498 = vpop.f32.mrf.mxu0
      %v499 = vadd.f32 0.0, %v498
      %v500 = vpop.f32.mrf.mxu0
      %v501 = vadd.f32 0.0, %v500
      %502 = vmatmul.bf16.gmra.mxu0 %v403
      %v503 = vpop.f32.mrf.mxu0
      %v504 = vadd.f32 0.0, %v503
      %v505 = vpop.f32.mrf.mxu0
      %v506 = vadd.f32 0.0, %v505
      %507 = vdwg.mxu0
      %508 = vst [vmem:[#allocation2] sm:$0xff] %v419
      %509 = vst [vmem:[#allocation2 + $0x8] sm:$0xff] %v421
      %510 = vst [vmem:[#allocation2 + $0x10] sm:$0xff] %v424
      %511 = vst [vmem:[#allocation2 + $0x18] sm:$0xff] %v426
      %512 = vst [vmem:[#allocation2 + $0x20] sm:$0xff] %v429
      %513 = vst [vmem:[#allocation2 + $0x28] sm:$0xff] %v431
      %514 = vst [vmem:[#allocation2 + $0x30] sm:$0xff] %v434
      %515 = vst [vmem:[#allocation2 + $0x38] sm:$0xff] %v436
      %516 = vst [vmem:[#allocation2 + $0x40] sm:$0xff] %v439
      %517 = vst [vmem:[#allocation2 + $0x48] sm:$0xff] %v441
      %518 = vst [vmem:[#allocation2 + $0x50] sm:$0xff] %v444
      %519 = vst [vmem:[#allocation2 + $0x58] sm:$0xff] %v446
      %520 = vst [vmem:[#allocation2 + $0x60] sm:$0xff] %v449
      %521 = vst [vmem:[#allocation2 + $0x68] sm:$0xff] %v451
      %522 = vst [vmem:[#allocation2 + $0x70] sm:$0xff] %v454
      %523 = vst [vmem:[#allocation2 + $0x78] sm:$0xff] %v456
      %524 = vst [vmem:[#allocation2 + $0x80] sm:$0xff] %v459
      %525 = vst [vmem:[#allocation2 + $0x88] sm:$0xff] %v461
      %526 = vst [vmem:[#allocation2 + $0x90] sm:$0xff] %v464
      %527 = vst [vmem:[#allocation2 + $0x98] sm:$0xff] %v466
      %528 = vst [vmem:[#allocation2 + $0xa0] sm:$0xff] %v469
      %529 = vst [vmem:[#allocation2 + $0xa8] sm:$0xff] %v471
      %530 = vst [vmem:[#allocation2 + $0xb0] sm:$0xff] %v474
      %531 = vst [vmem:[#allocation2 + $0xb8] sm:$0xff] %v476
      %532 = vst [vmem:[#allocation2 + $0xc0] sm:$0xff] %v479
      %533 = vst [vmem:[#allocation2 + $0xc8] sm:$0xff] %v481
      %534 = vst [vmem:[#allocation2 + $0xd0] sm:$0xff] %v484
      %535 = vst [vmem:[#allocation2 + $0xd8] sm:$0xff] %v486
      %536 = vst [vmem:[#allocation2 + $0xe0] sm:$0xff] %v489
      %537 = vst [vmem:[#allocation2 + $0xe8] sm:$0xff] %v491
      %538 = vst [vmem:[#allocation2 + $0xf0] sm:$0xff] %v494
      %539 = vst [vmem:[#allocation2 + $0xf8] sm:$0xff] %v496
      %540 = vst [vmem:[#allocation2 + $0x100] sm:$0xff] %v499
      %541 = vst [vmem:[#allocation2 + $0x108] sm:$0xff] %v501
      %542 = vst [vmem:[#allocation2 + $0x110] sm:$0xff] %v504
      %543 = vst [vmem:[#allocation2 + $0x118] sm:$0xff] %v506
      %v544 = vld [vmem:[%s206] sm:$0xf]
      %v545 = vld [vmem:[%s206 + $0x4] sm:$0xf]
      %v546 = vld [vmem:[%s206 + $0x8] sm:$0xf]
      %v547 = vld [vmem:[%s206 + $0xc] sm:$0xf]
      %v548 = vld [vmem:[%s206 + $0x10] sm:$0xf]
      %v549 = vld [vmem:[%s206 + $0x14] sm:$0xf]
      %v550 = vld [vmem:[%s206 + $0x18] sm:$0xf]
      %v551 = vld [vmem:[%s206 + $0x1c] sm:$0xf]
      %v552 = vld [vmem:[%s206 + $0x20] sm:$0xf]
      %v553 = vld [vmem:[%s206 + $0x24] sm:$0xf]
      %v554 = vld [vmem:[%s206 + $0x28] sm:$0xf]
      %v555 = vld [vmem:[%s206 + $0x2c] sm:$0xf]
      %v556 = vld [vmem:[%s206 + $0x30] sm:$0xf]
      %v557 = vld [vmem:[%s206 + $0x34] sm:$0xf]
      %v558 = vld [vmem:[%s206 + $0x38] sm:$0xf]
      %v559 = vld [vmem:[%s206 + $0x3c] sm:$0xf]
      %v560 = vld [vmem:[%s206 + $0x40] sm:$0xf]
      %v561 = vld [vmem:[%s206 + $0x44] sm:$0xf]
      %v562 = vld [vmem:[%s206 + $0x48] sm:$0xf]
      %v563 = vld [vmem:[%s206 + $0x4c] sm:$0xf]
      %v564 = vld [vmem:[%s206 + $0x50] sm:$0xf]
      %v565 = vld [vmem:[%s206 + $0x54] sm:$0xf]
      %v566 = vld [vmem:[%s206 + $0x58] sm:$0xf]
      %v567 = vld [vmem:[%s206 + $0x5c] sm:$0xf]
      %v568 = vld [vmem:[%s206 + $0x60] sm:$0xf]
      %v569 = vld [vmem:[%s206 + $0x64] sm:$0xf]
      %v570 = vld [vmem:[%s206 + $0x68] sm:$0xf]
      %v571 = vld [vmem:[%s206 + $0x6c] sm:$0xf]
      %v572 = vld [vmem:[%s206 + $0x70] sm:$0xf]
      %v573 = vld [vmem:[%s206 + $0x74] sm:$0xf]
      %v574 = vld [vmem:[%s206 + $0x78] sm:$0xf]
      %v575 = vld [vmem:[%s206 + $0x7c] sm:$0xf]
      %v576 = vld [vmem:[%s206 + $0x80] sm:$0xf]
      %v577 = vld [vmem:[%s206 + $0x84] sm:$0xf]
      %v578 = vld [vmem:[%s206 + $0x88] sm:$0xf]
      %v579 = vld [vmem:[%s206 + $0x8c] sm:$0xf]
      %v580 = vld [vmem:[%s206 + $0x90] sm:$0x1]
      %s581 = scalar_lea.vmem %s210, 2
      %v582 = vld [vmem:[%s581] sm:$0x3]
      %v620 = vunpack.c.l.b16 %v544
      %v621 = vunpack.c.l.b16 %v545
      %v622 = vunpack.c.l.b16 %v546
      %v623 = vunpack.c.l.b16 %v547
      %v624 = vunpack.c.l.b16 %v548
      %v625 = vunpack.c.l.b16 %v549
      %v626 = vunpack.c.l.b16 %v550
      %v627 = vunpack.c.l.b16 %v551
      %v628 = vunpack.c.l.b16 %v552
      %v629 = vunpack.c.l.b16 %v553
      %v630 = vunpack.c.l.b16 %v554
      %v631 = vunpack.c.l.b16 %v555
      %v632 = vunpack.c.l.b16 %v556
      %v633 = vunpack.c.l.b16 %v557
      %v634 = vunpack.c.l.b16 %v558
      %v635 = vunpack.c.l.b16 %v559
      %v636 = vunpack.c.l.b16 %v560
      %v637 = vunpack.c.l.b16 %v561
      %v638 = vunpack.c.l.b16 %v562
      %v639 = vunpack.c.l.b16 %v563
      %v640 = vunpack.c.l.b16 %v564
      %v641 = vunpack.c.l.b16 %v565
      %v642 = vunpack.c.l.b16 %v566
      %v643 = vunpack.c.l.b16 %v567
      %v644 = vunpack.c.l.b16 %v568
      %v645 = vunpack.c.l.b16 %v569
      %v646 = vunpack.c.l.b16 %v570
      %v647 = vunpack.c.l.b16 %v571
      %v648 = vunpack.c.l.b16 %v572
      %v649 = vunpack.c.l.b16 %v573
      %v650 = vunpack.c.l.b16 %v574
      %v651 = vunpack.c.l.b16 %v575
      %v652 = vunpack.c.l.b16 %v576
      %v653 = vunpack.c.l.b16 %v577
      %v654 = vunpack.c.l.b16 %v578
      %v655 = vunpack.c.l.b16 %v579
      %v656 = vunpack.c.l.b16 %v580
      %v657 = vpack.c.b16 %v621, %v620
      %v658 = vpack.c.b16 %v623, %v622
      %v659 = vpack.c.b16 %v625, %v624
      %v660 = vpack.c.b16 %v627, %v626
      %v661 = vpack.c.b16 %v629, %v628
      %v662 = vpack.c.b16 %v631, %v630
      %v663 = vpack.c.b16 %v633, %v632
      %v664 = vpack.c.b16 %v635, %v634
      %v665 = vpack.c.b16 %v637, %v636
      %v666 = vpack.c.b16 %v639, %v638
      %v667 = vpack.c.b16 %v641, %v640
      %v668 = vpack.c.b16 %v643, %v642
      %v669 = vpack.c.b16 %v645, %v644
      %v670 = vpack.c.b16 %v647, %v646
      %v671 = vpack.c.b16 %v649, %v648
      %v672 = vpack.c.b16 %v651, %v650
      %v673 = vpack.c.b16 %v653, %v652
      %v674 = vpack.c.b16 %v655, %v654
      %v675 = vpack.c.b16 %v656, %v656
      %vm676 = vsmask.f32 7424
      %v678 = vshrl.u32 %v657, 16
      %v680 = vshll.u32 %v657, 16
      %v682 = vrot.slane %v680, 1
      %v683 = vor.u32 %v678, %v682
      %v685 = vshll.u32 %v658, 16
      %v687 = vrot.slane %v685, 1
      %v688 = vsel %vm676, %v683, %v687
      %v689 = vshrl.u32 %v658, 16
      %v691 = vor.u32 %v689, %v687
      %v693 = vshll.u32 %v659, 16
      %v695 = vrot.slane %v693, 1
      %v696 = vsel %vm676, %v691, %v695
      %v697 = vshrl.u32 %v659, 16
      %v699 = vor.u32 %v697, %v695
      %v701 = vshll.u32 %v660, 16
      %v703 = vrot.slane %v701, 1
      %v704 = vsel %vm676, %v699, %v703
      %v705 = vshrl.u32 %v660, 16
      %v707 = vor.u32 %v705, %v703
      %v709 = vshll.u32 %v661, 16
      %v711 = vrot.slane %v709, 1
      %v712 = vsel %vm676, %v707, %v711
      %v713 = vshrl.u32 %v661, 16
      %v715 = vor.u32 %v713, %v711
      %v717 = vshll.u32 %v662, 16
      %v719 = vrot.slane %v717, 1
      %v720 = vsel %vm676, %v715, %v719
      %v721 = vshrl.u32 %v662, 16
      %v723 = vor.u32 %v721, %v719
      %v725 = vshll.u32 %v663, 16
      %v727 = vrot.slane %v725, 1
      %v728 = vsel %vm676, %v723, %v727
      %v729 = vshrl.u32 %v663, 16
      %v731 = vor.u32 %v729, %v727
      %v733 = vshll.u32 %v664, 16
      %v735 = vrot.slane %v733, 1
      %v736 = vsel %vm676, %v731, %v735
      %v737 = vshrl.u32 %v664, 16
      %v739 = vor.u32 %v737, %v735
      %v741 = vshll.u32 %v665, 16
      %v743 = vrot.slane %v741, 1
      %v744 = vsel %vm676, %v739, %v743
      %v745 = vshrl.u32 %v665, 16
      %v747 = vor.u32 %v745, %v743
      %v749 = vshll.u32 %v666, 16
      %v751 = vrot.slane %v749, 1
      %v752 = vsel %vm676, %v747, %v751
      %v753 = vshrl.u32 %v666, 16
      %v755 = vor.u32 %v753, %v751
      %v757 = vshll.u32 %v667, 16
      %v759 = vrot.slane %v757, 1
      %v760 = vsel %vm676, %v755, %v759
      %v761 = vshrl.u32 %v667, 16
      %v763 = vor.u32 %v761, %v759
      %v765 = vshll.u32 %v668, 16
      %v767 = vrot.slane %v765, 1
      %v768 = vsel %vm676, %v763, %v767
      %v769 = vshrl.u32 %v668, 16
      %v771 = vor.u32 %v769, %v767
      %v773 = vshll.u32 %v669, 16
      %v775 = vrot.slane %v773, 1
      %v776 = vsel %vm676, %v771, %v775
      %v777 = vshrl.u32 %v669, 16
      %v779 = vor.u32 %v777, %v775
      %v781 = vshll.u32 %v670, 16
      %v783 = vrot.slane %v781, 1
      %v784 = vsel %vm676, %v779, %v783
      %v785 = vshrl.u32 %v670, 16
      %v787 = vor.u32 %v785, %v783
      %v789 = vshll.u32 %v671, 16
      %v791 = vrot.slane %v789, 1
      %v792 = vsel %vm676, %v787, %v791
      %v793 = vshrl.u32 %v671, 16
      %v795 = vor.u32 %v793, %v791
      %v797 = vshll.u32 %v672, 16
      %v799 = vrot.slane %v797, 1
      %v800 = vsel %vm676, %v795, %v799
      %v801 = vshrl.u32 %v672, 16
      %v803 = vor.u32 %v801, %v799
      %v805 = vshll.u32 %v673, 16
      %v807 = vrot.slane %v805, 1
      %v808 = vsel %vm676, %v803, %v807
      %v809 = vshrl.u32 %v673, 16
      %v811 = vor.u32 %v809, %v807
      %v813 = vshll.u32 %v674, 16
      %v815 = vrot.slane %v813, 1
      %v816 = vsel %vm676, %v811, %v815
      %v817 = vshrl.u32 %v674, 16
      %v819 = vor.u32 %v817, %v815
      %v821 = vshll.u32 %v675, 16
      %v823 = vrot.slane %v821, 1
      %v824 = vsel %vm676, %v819, %v823
      %v826 = vsel %vm350, %v688, 0
      %v829 = vsel %vm350, %v696, 0
      %v832 = vsel %vm350, %v704, 0
      %v835 = vsel %vm350, %v712, 0
      %v838 = vsel %vm350, %v720, 0
      %v841 = vsel %vm350, %v728, 0
      %v844 = vsel %vm350, %v736, 0
      %v847 = vsel %vm350, %v744, 0
      %v850 = vsel %vm350, %v752, 0
      %v853 = vsel %vm350, %v760, 0
      %v856 = vsel %vm350, %v768, 0
      %v859 = vsel %vm350, %v776, 0
      %v862 = vsel %vm350, %v784, 0
      %v865 = vsel %vm350, %v792, 0
      %v868 = vsel %vm350, %v800, 0
      %v871 = vsel %vm350, %v808, 0
      %v874 = vsel %vm350, %v816, 0
      %v877 = vsel %vm350, %v824, 0
      %v880 = vsel %vm405, %v582, 0
      %882 = vmatpush.bf16.msra.mxu0 0
      %883 = vmatpush.bf16.msra.mxu0 0
      %884 = vmatpush.bf16.msra.mxu0 0
      %885 = vmatpush.bf16.msra.mxu0 0
      %886 = vmatpush.bf16.msra.mxu0 0
      %887 = vmatpush.bf16.msra.mxu0 0
      %888 = vmatpush.bf16.msra.mxu0 0
      %889 = vmatpush.bf16.msra.mxu0 %v880
      %890 = vmatmul.bf16.gmra.mxu0 %v826
      %v891 = vpop.f32.mrf.mxu0
      %v892 = vadd.f32 0.0, %v891
      %v893 = vpop.f32.mrf.mxu0
      %v894 = vadd.f32 0.0, %v893
      %895 = vmatmul.bf16.gmra.mxu0 %v829
      %v896 = vpop.f32.mrf.mxu0
      %v897 = vadd.f32 0.0, %v896
      %v898 = vpop.f32.mrf.mxu0
      %v899 = vadd.f32 0.0, %v898
      %900 = vmatmul.bf16.gmra.mxu0 %v832
      %v901 = vpop.f32.mrf.mxu0
      %v902 = vadd.f32 0.0, %v901
      %v903 = vpop.f32.mrf.mxu0
      %v904 = vadd.f32 0.0, %v903
      %905 = vmatmul.bf16.gmra.mxu0 %v835
      %v906 = vpop.f32.mrf.mxu0
      %v907 = vadd.f32 0.0, %v906
      %v908 = vpop.f32.mrf.mxu0
      %v909 = vadd.f32 0.0, %v908
      %910 = vmatmul.bf16.gmra.mxu0 %v838
      %v911 = vpop.f32.mrf.mxu0
      %v912 = vadd.f32 0.0, %v911
      %v913 = vpop.f32.mrf.mxu0
      %v914 = vadd.f32 0.0, %v913
      %915 = vmatmul.bf16.gmra.mxu0 %v841
      %v916 = vpop.f32.mrf.mxu0
      %v917 = vadd.f32 0.0, %v916
      %v918 = vpop.f32.mrf.mxu0
      %v919 = vadd.f32 0.0, %v918
      %920 = vmatmul.bf16.gmra.mxu0 %v844
      %v921 = vpop.f32.mrf.mxu0
      %v922 = vadd.f32 0.0, %v921
      %v923 = vpop.f32.mrf.mxu0
      %v924 = vadd.f32 0.0, %v923
      %925 = vmatmul.bf16.gmra.mxu0 %v847
      %v926 = vpop.f32.mrf.mxu0
      %v927 = vadd.f32 0.0, %v926
      %v928 = vpop.f32.mrf.mxu0
      %v929 = vadd.f32 0.0, %v928
      %930 = vmatmul.bf16.gmra.mxu0 %v850
      %v931 = vpop.f32.mrf.mxu0
      %v932 = vadd.f32 0.0, %v931
      %v933 = vpop.f32.mrf.mxu0
      %v934 = vadd.f32 0.0, %v933
      %935 = vmatmul.bf16.gmra.mxu0 %v853
      %v936 = vpop.f32.mrf.mxu0
      %v937 = vadd.f32 0.0, %v936
      %v938 = vpop.f32.mrf.mxu0
      %v939 = vadd.f32 0.0, %v938
      %940 = vmatmul.bf16.gmra.mxu0 %v856
      %v941 = vpop.f32.mrf.mxu0
      %v942 = vadd.f32 0.0, %v941
      %v943 = vpop.f32.mrf.mxu0
      %v944 = vadd.f32 0.0, %v943
      %945 = vmatmul.bf16.gmra.mxu0 %v859
      %v946 = vpop.f32.mrf.mxu0
      %v947 = vadd.f32 0.0, %v946
      %v948 = vpop.f32.mrf.mxu0
      %v949 = vadd.f32 0.0, %v948
      %950 = vmatmul.bf16.gmra.mxu0 %v862
      %v951 = vpop.f32.mrf.mxu0
      %v952 = vadd.f32 0.0, %v951
      %v953 = vpop.f32.mrf.mxu0
      %v954 = vadd.f32 0.0, %v953
      %955 = vmatmul.bf16.gmra.mxu0 %v865
      %v956 = vpop.f32.mrf.mxu0
      %v957 = vadd.f32 0.0, %v956
      %v958 = vpop.f32.mrf.mxu0
      %v959 = vadd.f32 0.0, %v958
      %960 = vmatmul.bf16.gmra.mxu0 %v868
      %v961 = vpop.f32.mrf.mxu0
      %v962 = vadd.f32 0.0, %v961
      %v963 = vpop.f32.mrf.mxu0
      %v964 = vadd.f32 0.0, %v963
      %965 = vmatmul.bf16.gmra.mxu0 %v871
      %v966 = vpop.f32.mrf.mxu0
      %v967 = vadd.f32 0.0, %v966
      %v968 = vpop.f32.mrf.mxu0
      %v969 = vadd.f32 0.0, %v968
      %970 = vmatmul.bf16.gmra.mxu0 %v874
      %v971 = vpop.f32.mrf.mxu0
      %v972 = vadd.f32 0.0, %v971
      %v973 = vpop.f32.mrf.mxu0
      %v974 = vadd.f32 0.0, %v973
      %975 = vmatmul.bf16.gmra.mxu0 %v877
      %v976 = vpop.f32.mrf.mxu0
      %v977 = vadd.f32 0.0, %v976
      %v978 = vpop.f32.mrf.mxu0
      %v979 = vadd.f32 0.0, %v978
      %980 = vdwg.mxu0
      %v981 = vld [vmem:[#allocation2] sm:$0xff]
      %v982 = vld [vmem:[#allocation2 + $0x8] sm:$0xff]
      %v983 = vld [vmem:[#allocation2 + $0x10] sm:$0xff]
      %v984 = vld [vmem:[#allocation2 + $0x18] sm:$0xff]
      %v985 = vld [vmem:[#allocation2 + $0x20] sm:$0xff]
      %v986 = vld [vmem:[#allocation2 + $0x28] sm:$0xff]
      %v987 = vld [vmem:[#allocation2 + $0x30] sm:$0xff]
      %v988 = vld [vmem:[#allocation2 + $0x38] sm:$0xff]
      %v989 = vld [vmem:[#allocation2 + $0x40] sm:$0xff]
      %v990 = vld [vmem:[#allocation2 + $0x48] sm:$0xff]
      %v991 = vld [vmem:[#allocation2 + $0x50] sm:$0xff]
      %v992 = vld [vmem:[#allocation2 + $0x58] sm:$0xff]
      %v993 = vld [vmem:[#allocation2 + $0x60] sm:$0xff]
      %v994 = vld [vmem:[#allocation2 + $0x68] sm:$0xff]
      %v995 = vld [vmem:[#allocation2 + $0x70] sm:$0xff]
      %v996 = vld [vmem:[#allocation2 + $0x78] sm:$0xff]
      %v997 = vld [vmem:[#allocation2 + $0x80] sm:$0xff]
      %v998 = vld [vmem:[#allocation2 + $0x88] sm:$0xff]
      %v999 = vld [vmem:[#allocation2 + $0x90] sm:$0xff]
      %v1000 = vld [vmem:[#allocation2 + $0x98] sm:$0xff]
      %v1001 = vld [vmem:[#allocation2 + $0xa0] sm:$0xff]
      %v1002 = vld [vmem:[#allocation2 + $0xa8] sm:$0xff]
      %v1003 = vld [vmem:[#allocation2 + $0xb0] sm:$0xff]
      %v1004 = vld [vmem:[#allocation2 + $0xb8] sm:$0xff]
      %v1005 = vld [vmem:[#allocation2 + $0xc0] sm:$0xff]
      %v1006 = vld [vmem:[#allocation2 + $0xc8] sm:$0xff]
      %v1007 = vld [vmem:[#allocation2 + $0xd0] sm:$0xff]
      %v1008 = vld [vmem:[#allocation2 + $0xd8] sm:$0xff]
      %v1009 = vld [vmem:[#allocation2 + $0xe0] sm:$0xff]
      %v1010 = vld [vmem:[#allocation2 + $0xe8] sm:$0xff]
      %v1011 = vld [vmem:[#allocation2 + $0xf0] sm:$0xff]
      %v1012 = vld [vmem:[#allocation2 + $0xf8] sm:$0xff]
      %v1013 = vld [vmem:[#allocation2 + $0x100] sm:$0xff]
      %v1014 = vld [vmem:[#allocation2 + $0x108] sm:$0xff]
      %v1015 = vld [vmem:[#allocation2 + $0x110] sm:$0xff]
      %v1016 = vld [vmem:[#allocation2 + $0x118] sm:$0xff]
      %v1017 = vadd.f32 %v981, %v892
      %v1018 = vadd.f32 %v982, %v894
      %v1019 = vadd.f32 %v983, %v897
      %v1020 = vadd.f32 %v984, %v899
      %v1021 = vadd.f32 %v985, %v902
      %v1022 = vadd.f32 %v986, %v904
      %v1023 = vadd.f32 %v987, %v907
      %v1024 = vadd.f32 %v988, %v909
      %v1025 = vadd.f32 %v989, %v912
      %v1026 = vadd.f32 %v990, %v914
      %v1027 = vadd.f32 %v991, %v917
      %v1028 = vadd.f32 %v992, %v919
      %v1029 = vadd.f32 %v993, %v922
      %v1030 = vadd.f32 %v994, %v924
      %v1031 = vadd.f32 %v995, %v927
      %v1032 = vadd.f32 %v996, %v929
      %v1033 = vadd.f32 %v997, %v932
      %v1034 = vadd.f32 %v998, %v934
      %v1035 = vadd.f32 %v999, %v937
      %v1036 = vadd.f32 %v1000, %v939
      %v1037 = vadd.f32 %v1001, %v942
      %v1038 = vadd.f32 %v1002, %v944
      %v1039 = vadd.f32 %v1003, %v947
      %v1040 = vadd.f32 %v1004, %v949
      %v1041 = vadd.f32 %v1005, %v952
      %v1042 = vadd.f32 %v1006, %v954
      %v1043 = vadd.f32 %v1007, %v957
      %v1044 = vadd.f32 %v1008, %v959
      %v1045 = vadd.f32 %v1009, %v962
      %v1046 = vadd.f32 %v1010, %v964
      %v1047 = vadd.f32 %v1011, %v967
      %v1048 = vadd.f32 %v1012, %v969
      %v1049 = vadd.f32 %v1013, %v972
      %v1050 = vadd.f32 %v1014, %v974
      %v1051 = vadd.f32 %v1015, %v977
      %v1052 = vadd.f32 %v1016, %v979
      %1053 = vst [vmem:[#allocation2] sm:$0xff] %v1017
      %1054 = vst [vmem:[#allocation2 + $0x8] sm:$0xff] %v1018
      %1055 = vst [vmem:[#allocation2 + $0x10] sm:$0xff] %v1019
      %1056 = vst [vmem:[#allocation2 + $0x18] sm:$0xff] %v1020
      %1057 = vst [vmem:[#allocation2 + $0x20] sm:$0xff] %v1021
      %1058 = vst [vmem:[#allocation2 + $0x28] sm:$0xff] %v1022
      %1059 = vst [vmem:[#allocation2 + $0x30] sm:$0xff] %v1023
      %1060 = vst [vmem:[#allocation2 + $0x38] sm:$0xff] %v1024
      %1061 = vst [vmem:[#allocation2 + $0x40] sm:$0xff] %v1025
      %1062 = vst [vmem:[#allocation2 + $0x48] sm:$0xff] %v1026
      %1063 = vst [vmem:[#allocation2 + $0x50] sm:$0xff] %v1027
      %1064 = vst [vmem:[#allocation2 + $0x58] sm:$0xff] %v1028
      %1065 = vst [vmem:[#allocation2 + $0x60] sm:$0xff] %v1029
      %1066 = vst [vmem:[#allocation2 + $0x68] sm:$0xff] %v1030
      %1067 = vst [vmem:[#allocation2 + $0x70] sm:$0xff] %v1031
      %1068 = vst [vmem:[#allocation2 + $0x78] sm:$0xff] %v1032
      %1069 = vst [vmem:[#allocation2 + $0x80] sm:$0xff] %v1033
      %1070 = vst [vmem:[#allocation2 + $0x88] sm:$0xff] %v1034
      %1071 = vst [vmem:[#allocation2 + $0x90] sm:$0xff] %v1035
      %1072 = vst [vmem:[#allocation2 + $0x98] sm:$0xff] %v1036
      %1073 = vst [vmem:[#allocation2 + $0xa0] sm:$0xff] %v1037
      %1074 = vst [vmem:[#allocation2 + $0xa8] sm:$0xff] %v1038
      %1075 = vst [vmem:[#allocation2 + $0xb0] sm:$0xff] %v1039
      %1076 = vst [vmem:[#allocation2 + $0xb8] sm:$0xff] %v1040
      %1077 = vst [vmem:[#allocation2 + $0xc0] sm:$0xff] %v1041
      %1078 = vst [vmem:[#allocation2 + $0xc8] sm:$0xff] %v1042
      %1079 = vst [vmem:[#allocation2 + $0xd0] sm:$0xff] %v1043
      %1080 = vst [vmem:[#allocation2 + $0xd8] sm:$0xff] %v1044
      %1081 = vst [vmem:[#allocation2 + $0xe0] sm:$0xff] %v1045
      %1082 = vst [vmem:[#allocation2 + $0xe8] sm:$0xff] %v1046
      %1083 = vst [vmem:[#allocation2 + $0xf0] sm:$0xff] %v1047
      %1084 = vst [vmem:[#allocation2 + $0xf8] sm:$0xff] %v1048
      %1085 = vst [vmem:[#allocation2 + $0x100] sm:$0xff] %v1049
      %1086 = vst [vmem:[#allocation2 + $0x108] sm:$0xff] %v1050
      %1087 = vst [vmem:[#allocation2 + $0x110] sm:$0xff] %v1051
      %1088 = vst [vmem:[#allocation2 + $0x118] sm:$0xff] %v1052
      %v1089 = vld [vmem:[%s206] sm:$0xe]
      %v1090 = vld [vmem:[%s206 + $0x4] sm:$0xf]
      %v1091 = vld [vmem:[%s206 + $0x8] sm:$0xf]
      %v1092 = vld [vmem:[%s206 + $0xc] sm:$0xf]
      %v1093 = vld [vmem:[%s206 + $0x10] sm:$0xf]
      %v1094 = vld [vmem:[%s206 + $0x14] sm:$0xf]
      %v1095 = vld [vmem:[%s206 + $0x18] sm:$0xf]
      %v1096 = vld [vmem:[%s206 + $0x1c] sm:$0xf]
      %v1097 = vld [vmem:[%s206 + $0x20] sm:$0xf]
      %v1098 = vld [vmem:[%s206 + $0x24] sm:$0xf]
      %v1099 = vld [vmem:[%s206 + $0x28] sm:$0xf]
      %v1100 = vld [vmem:[%s206 + $0x2c] sm:$0xf]
      %v1101 = vld [vmem:[%s206 + $0x30] sm:$0xf]
      %v1102 = vld [vmem:[%s206 + $0x34] sm:$0xf]
      %v1103 = vld [vmem:[%s206 + $0x38] sm:$0xf]
      %v1104 = vld [vmem:[%s206 + $0x3c] sm:$0xf]
      %v1105 = vld [vmem:[%s206 + $0x40] sm:$0xf]
      %v1106 = vld [vmem:[%s206 + $0x44] sm:$0xf]
      %v1107 = vld [vmem:[%s206 + $0x48] sm:$0xf]
      %v1108 = vld [vmem:[%s206 + $0x4c] sm:$0xf]
      %v1109 = vld [vmem:[%s206 + $0x50] sm:$0xf]
      %v1110 = vld [vmem:[%s206 + $0x54] sm:$0xf]
      %v1111 = vld [vmem:[%s206 + $0x58] sm:$0xf]
      %v1112 = vld [vmem:[%s206 + $0x5c] sm:$0xf]
      %v1113 = vld [vmem:[%s206 + $0x60] sm:$0xf]
      %v1114 = vld [vmem:[%s206 + $0x64] sm:$0xf]
      %v1115 = vld [vmem:[%s206 + $0x68] sm:$0xf]
      %v1116 = vld [vmem:[%s206 + $0x6c] sm:$0xf]
      %v1117 = vld [vmem:[%s206 + $0x70] sm:$0xf]
      %v1118 = vld [vmem:[%s206 + $0x74] sm:$0xf]
      %v1119 = vld [vmem:[%s206 + $0x78] sm:$0xf]
      %v1120 = vld [vmem:[%s206 + $0x7c] sm:$0xf]
      %v1121 = vld [vmem:[%s206 + $0x80] sm:$0xf]
      %v1122 = vld [vmem:[%s206 + $0x84] sm:$0xf]
      %v1123 = vld [vmem:[%s206 + $0x88] sm:$0xf]
      %v1124 = vld [vmem:[%s206 + $0x8c] sm:$0xf]
      %v1125 = vld [vmem:[%s206 + $0x90] sm:$0x1]
      %s1126 = scalar_lea.vmem %s210, 4
      %v1127 = vld [vmem:[%s1126] sm:$0x3]
      %v1165 = vunpack.c.l.b16 %v1089
      %v1166 = vunpack.c.l.b16 %v1090
      %v1167 = vunpack.c.l.b16 %v1091
      %v1168 = vunpack.c.l.b16 %v1092
      %v1169 = vunpack.c.l.b16 %v1093
      %v1170 = vunpack.c.l.b16 %v1094
      %v1171 = vunpack.c.l.b16 %v1095
      %v1172 = vunpack.c.l.b16 %v1096
      %v1173 = vunpack.c.l.b16 %v1097
      %v1174 = vunpack.c.l.b16 %v1098
      %v1175 = vunpack.c.l.b16 %v1099
      %v1176 = vunpack.c.l.b16 %v1100
      %v1177 = vunpack.c.l.b16 %v1101
      %v1178 = vunpack.c.l.b16 %v1102
      %v1179 = vunpack.c.l.b16 %v1103
      %v1180 = vunpack.c.l.b16 %v1104
      %v1181 = vunpack.c.l.b16 %v1105
      %v1182 = vunpack.c.l.b16 %v1106
      %v1183 = vunpack.c.l.b16 %v1107
      %v1184 = vunpack.c.l.b16 %v1108
      %v1185 = vunpack.c.l.b16 %v1109
      %v1186 = vunpack.c.l.b16 %v1110
      %v1187 = vunpack.c.l.b16 %v1111
      %v1188 = vunpack.c.l.b16 %v1112
      %v1189 = vunpack.c.l.b16 %v1113
      %v1190 = vunpack.c.l.b16 %v1114
      %v1191 = vunpack.c.l.b16 %v1115
      %v1192 = vunpack.c.l.b16 %v1116
      %v1193 = vunpack.c.l.b16 %v1117
      %v1194 = vunpack.c.l.b16 %v1118
      %v1195 = vunpack.c.l.b16 %v1119
      %v1196 = vunpack.c.l.b16 %v1120
      %v1197 = vunpack.c.l.b16 %v1121
      %v1198 = vunpack.c.l.b16 %v1122
      %v1199 = vunpack.c.l.b16 %v1123
      %v1200 = vunpack.c.l.b16 %v1124
      %v1201 = vunpack.c.l.b16 %v1125
      %v1202 = vpack.c.b16 %v1166, %v1165
      %v1203 = vpack.c.b16 %v1168, %v1167
      %v1204 = vpack.c.b16 %v1170, %v1169
      %v1205 = vpack.c.b16 %v1172, %v1171
      %v1206 = vpack.c.b16 %v1174, %v1173
      %v1207 = vpack.c.b16 %v1176, %v1175
      %v1208 = vpack.c.b16 %v1178, %v1177
      %v1209 = vpack.c.b16 %v1180, %v1179
      %v1210 = vpack.c.b16 %v1182, %v1181
      %v1211 = vpack.c.b16 %v1184, %v1183
      %v1212 = vpack.c.b16 %v1186, %v1185
      %v1213 = vpack.c.b16 %v1188, %v1187
      %v1214 = vpack.c.b16 %v1190, %v1189
      %v1215 = vpack.c.b16 %v1192, %v1191
      %v1216 = vpack.c.b16 %v1194, %v1193
      %v1217 = vpack.c.b16 %v1196, %v1195
      %v1218 = vpack.c.b16 %v1198, %v1197
      %v1219 = vpack.c.b16 %v1200, %v1199
      %v1220 = vpack.c.b16 %v1201, %v1201
      %vm1221 = vcmask 1046528
      %v1222 = vrot.slane %v1202, 1
      %v1223 = vrot.slane %v1203, 1
      %v1224 = vsel %vm1221, %v1222, %v1223
      %v1225 = vrot.slane %v1204, 1
      %v1226 = vsel %vm1221, %v1223, %v1225
      %v1227 = vrot.slane %v1205, 1
      %v1228 = vsel %vm1221, %v1225, %v1227
      %v1229 = vrot.slane %v1206, 1
      %v1230 = vsel %vm1221, %v1227, %v1229
      %v1231 = vrot.slane %v1207, 1
      %v1232 = vsel %vm1221, %v1229, %v1231
      %v1233 = vrot.slane %v1208, 1
      %v1234 = vsel %vm1221, %v1231, %v1233
      %v1235 = vrot.slane %v1209, 1
      %v1236 = vsel %vm1221, %v1233, %v1235
      %v1237 = vrot.slane %v1210, 1
      %v1238 = vsel %vm1221, %v1235, %v1237
      %v1239 = vrot.slane %v1211, 1
      %v1240 = vsel %vm1221, %v1237, %v1239
      %v1241 = vrot.slane %v1212, 1
      %v1242 = vsel %vm1221, %v1239, %v1241
      %v1243 = vrot.slane %v1213, 1
      %v1244 = vsel %vm1221, %v1241, %v1243
      %v1245 = vrot.slane %v1214, 1
      %v1246 = vsel %vm1221, %v1243, %v1245
      %v1247 = vrot.slane %v1215, 1
      %v1248 = vsel %vm1221, %v1245, %v1247
      %v1249 = vrot.slane %v1216, 1
      %v1250 = vsel %vm1221, %v1247, %v1249
      %v1251 = vrot.slane %v1217, 1
      %v1252 = vsel %vm1221, %v1249, %v1251
      %v1253 = vrot.slane %v1218, 1
      %v1254 = vsel %vm1221, %v1251, %v1253
      %v1255 = vrot.slane %v1219, 1
      %v1256 = vsel %vm1221, %v1253, %v1255
      %v1257 = vrot.slane %v1220, 1
      %v1258 = vsel %vm1221, %v1255, %v1257
      %v1260 = vsel %vm350, %v1224, 0
      %v1263 = vsel %vm350, %v1226, 0
      %v1266 = vsel %vm350, %v1228, 0
      %v1269 = vsel %vm350, %v1230, 0
      %v1272 = vsel %vm350, %v1232, 0
      %v1275 = vsel %vm350, %v1234, 0
      %v1278 = vsel %vm350, %v1236, 0
      %v1281 = vsel %vm350, %v1238, 0
      %v1284 = vsel %vm350, %v1240, 0
      %v1287 = vsel %vm350, %v1242, 0
      %v1290 = vsel %vm350, %v1244, 0
      %v1293 = vsel %vm350, %v1246, 0
      %v1296 = vsel %vm350, %v1248, 0
      %v1299 = vsel %vm350, %v1250, 0
      %v1302 = vsel %vm350, %v1252, 0
      %v1305 = vsel %vm350, %v1254, 0
      %v1308 = vsel %vm350, %v1256, 0
      %v1311 = vsel %vm350, %v1258, 0
      %v1314 = vsel %vm405, %v1127, 0
      %1316 = vmatpush.bf16.msra.mxu0 0
      %1317 = vmatpush.bf16.msra.mxu0 0
      %1318 = vmatpush.bf16.msra.mxu0 0
      %1319 = vmatpush.bf16.msra.mxu0 0
      %1320 = vmatpush.bf16.msra.mxu0 0
      %1321 = vmatpush.bf16.msra.mxu0 0
      %1322 = vmatpush.bf16.msra.mxu0 0
      %1323 = vmatpush.bf16.msra.mxu0 %v1314
      %1324 = vmatmul.bf16.gmra.mxu0 %v1260
      %v1325 = vpop.f32.mrf.mxu0
      %v1326 = vadd.f32 0.0, %v1325
      %v1327 = vpop.f32.mrf.mxu0
      %v1328 = vadd.f32 0.0, %v1327
      %1329 = vmatmul.bf16.gmra.mxu0 %v1263
      %v1330 = vpop.f32.mrf.mxu0
      %v1331 = vadd.f32 0.0, %v1330
      %v1332 = vpop.f32.mrf.mxu0
      %v1333 = vadd.f32 0.0, %v1332
      %1334 = vmatmul.bf16.gmra.mxu0 %v1266
      %v1335 = vpop.f32.mrf.mxu0
      %v1336 = vadd.f32 0.0, %v1335
      %v1337 = vpop.f32.mrf.mxu0
      %v1338 = vadd.f32 0.0, %v1337
      %1339 = vmatmul.bf16.gmra.mxu0 %v1269
      %v1340 = vpop.f32.mrf.mxu0
      %v1341 = vadd.f32 0.0, %v1340
      %v1342 = vpop.f32.mrf.mxu0
      %v1343 = vadd.f32 0.0, %v1342
      %1344 = vmatmul.bf16.gmra.mxu0 %v1272
      %v1345 = vpop.f32.mrf.mxu0
      %v1346 = vadd.f32 0.0, %v1345
      %v1347 = vpop.f32.mrf.mxu0
      %v1348 = vadd.f32 0.0, %v1347
      %1349 = vmatmul.bf16.gmra.mxu0 %v1275
      %v1350 = vpop.f32.mrf.mxu0
      %v1351 = vadd.f32 0.0, %v1350
      %v1352 = vpop.f32.mrf.mxu0
      %v1353 = vadd.f32 0.0, %v1352
      %1354 = vmatmul.bf16.gmra.mxu0 %v1278
      %v1355 = vpop.f32.mrf.mxu0
      %v1356 = vadd.f32 0.0, %v1355
      %v1357 = vpop.f32.mrf.mxu0
      %v1358 = vadd.f32 0.0, %v1357
      %1359 = vmatmul.bf16.gmra.mxu0 %v1281
      %v1360 = vpop.f32.mrf.mxu0
      %v1361 = vadd.f32 0.0, %v1360
      %v1362 = vpop.f32.mrf.mxu0
      %v1363 = vadd.f32 0.0, %v1362
      %1364 = vmatmul.bf16.gmra.mxu0 %v1284
      %v1365 = vpop.f32.mrf.mxu0
      %v1366 = vadd.f32 0.0, %v1365
      %v1367 = vpop.f32.mrf.mxu0
      %v1368 = vadd.f32 0.0, %v1367
      %1369 = vmatmul.bf16.gmra.mxu0 %v1287
      %v1370 = vpop.f32.mrf.mxu0
      %v1371 = vadd.f32 0.0, %v1370
      %v1372 = vpop.f32.mrf.mxu0
      %v1373 = vadd.f32 0.0, %v1372
      %1374 = vmatmul.bf16.gmra.mxu0 %v1290
      %v1375 = vpop.f32.mrf.mxu0
      %v1376 = vadd.f32 0.0, %v1375
      %v1377 = vpop.f32.mrf.mxu0
      %v1378 = vadd.f32 0.0, %v1377
      %1379 = vmatmul.bf16.gmra.mxu0 %v1293
      %v1380 = vpop.f32.mrf.mxu0
      %v1381 = vadd.f32 0.0, %v1380
      %v1382 = vpop.f32.mrf.mxu0
      %v1383 = vadd.f32 0.0, %v1382
      %1384 = vmatmul.bf16.gmra.mxu0 %v1296
      %v1385 = vpop.f32.mrf.mxu0
      %v1386 = vadd.f32 0.0, %v1385
      %v1387 = vpop.f32.mrf.mxu0
      %v1388 = vadd.f32 0.0, %v1387
      %1389 = vmatmul.bf16.gmra.mxu0 %v1299
      %v1390 = vpop.f32.mrf.mxu0
      %v1391 = vadd.f32 0.0, %v1390
      %v1392 = vpop.f32.mrf.mxu0
      %v1393 = vadd.f32 0.0, %v1392
      %1394 = vmatmul.bf16.gmra.mxu0 %v1302
      %v1395 = vpop.f32.mrf.mxu0
      %v1396 = vadd.f32 0.0, %v1395
      %v1397 = vpop.f32.mrf.mxu0
      %v1398 = vadd.f32 0.0, %v1397
      %1399 = vmatmul.bf16.gmra.mxu0 %v1305
      %v1400 = vpop.f32.mrf.mxu0
      %v1401 = vadd.f32 0.0, %v1400
      %v1402 = vpop.f32.mrf.mxu0
      %v1403 = vadd.f32 0.0, %v1402
      %1404 = vmatmul.bf16.gmra.mxu0 %v1308
      %v1405 = vpop.f32.mrf.mxu0
      %v1406 = vadd.f32 0.0, %v1405
      %v1407 = vpop.f32.mrf.mxu0
      %v1408 = vadd.f32 0.0, %v1407
      %1409 = vmatmul.bf16.gmra.mxu0 %v1311
      %v1410 = vpop.f32.mrf.mxu0
      %v1411 = vadd.f32 0.0, %v1410
      %v1412 = vpop.f32.mrf.mxu0
      %v1413 = vadd.f32 0.0, %v1412
      %1414 = vdwg.mxu0
      %v1415 = vld [vmem:[#allocation2] sm:$0xff]
      %v1416 = vld [vmem:[#allocation2 + $0x8] sm:$0xff]
      %v1417 = vld [vmem:[#allocation2 + $0x10] sm:$0xff]
      %v1418 = vld [vmem:[#allocation2 + $0x18] sm:$0xff]
      %v1419 = vld [vmem:[#allocation2 + $0x20] sm:$0xff]
      %v1420 = vld [vmem:[#allocation2 + $0x28] sm:$0xff]
      %v1421 = vld [vmem:[#allocation2 + $0x30] sm:$0xff]
      %v1422 = vld [vmem:[#allocation2 + $0x38] sm:$0xff]
      %v1423 = vld [vmem:[#allocation2 + $0x40] sm:$0xff]
      %v1424 = vld [vmem:[#allocation2 + $0x48] sm:$0xff]
      %v1425 = vld [vmem:[#allocation2 + $0x50] sm:$0xff]
      %v1426 = vld [vmem:[#allocation2 + $0x58] sm:$0xff]
      %v1427 = vld [vmem:[#allocation2 + $0x60] sm:$0xff]
      %v1428 = vld [vmem:[#allocation2 + $0x68] sm:$0xff]
      %v1429 = vld [vmem:[#allocation2 + $0x70] sm:$0xff]
      %v1430 = vld [vmem:[#allocation2 + $0x78] sm:$0xff]
      %v1431 = vld [vmem:[#allocation2 + $0x80] sm:$0xff]
      %v1432 = vld [vmem:[#allocation2 + $0x88] sm:$0xff]
      %v1433 = vld [vmem:[#allocation2 + $0x90] sm:$0xff]
      %v1434 = vld [vmem:[#allocation2 + $0x98] sm:$0xff]
      %v1435 = vld [vmem:[#allocation2 + $0xa0] sm:$0xff]
      %v1436 = vld [vmem:[#allocation2 + $0xa8] sm:$0xff]
      %v1437 = vld [vmem:[#allocation2 + $0xb0] sm:$0xff]
      %v1438 = vld [vmem:[#allocation2 + $0xb8] sm:$0xff]
      %v1439 = vld [vmem:[#allocation2 + $0xc0] sm:$0xff]
      %v1440 = vld [vmem:[#allocation2 + $0xc8] sm:$0xff]
      %v1441 = vld [vmem:[#allocation2 + $0xd0] sm:$0xff]
      %v1442 = vld [vmem:[#allocation2 + $0xd8] sm:$0xff]
      %v1443 = vld [vmem:[#allocation2 + $0xe0] sm:$0xff]
      %v1444 = vld [vmem:[#allocation2 + $0xe8] sm:$0xff]
      %v1445 = vld [vmem:[#allocation2 + $0xf0] sm:$0xff]
      %v1446 = vld [vmem:[#allocation2 + $0xf8] sm:$0xff]
      %v1447 = vld [vmem:[#allocation2 + $0x100] sm:$0xff]
      %v1448 = vld [vmem:[#allocation2 + $0x108] sm:$0xff]
      %v1449 = vld [vmem:[#allocation2 + $0x110] sm:$0xff]
      %v1450 = vld [vmem:[#allocation2 + $0x118] sm:$0xff]
      %v1451 = vadd.f32 %v1415, %v1326
      %v1452 = vadd.f32 %v1416, %v1328
      %v1453 = vadd.f32 %v1417, %v1331
      %v1454 = vadd.f32 %v1418, %v1333
      %v1455 = vadd.f32 %v1419, %v1336
      %v1456 = vadd.f32 %v1420, %v1338
      %v1457 = vadd.f32 %v1421, %v1341
      %v1458 = vadd.f32 %v1422, %v1343
      %v1459 = vadd.f32 %v1423, %v1346
      %v1460 = vadd.f32 %v1424, %v1348
      %v1461 = vadd.f32 %v1425, %v1351
      %v1462 = vadd.f32 %v1426, %v1353
      %v1463 = vadd.f32 %v1427, %v1356
      %v1464 = vadd.f32 %v1428, %v1358
      %v1465 = vadd.f32 %v1429, %v1361
      %v1466 = vadd.f32 %v1430, %v1363
      %v1467 = vadd.f32 %v1431, %v1366
      %v1468 = vadd.f32 %v1432, %v1368
      %v1469 = vadd.f32 %v1433, %v1371
      %v1470 = vadd.f32 %v1434, %v1373
      %v1471 = vadd.f32 %v1435, %v1376
      %v1472 = vadd.f32 %v1436, %v1378
      %v1473 = vadd.f32 %v1437, %v1381
      %v1474 = vadd.f32 %v1438, %v1383
      %v1475 = vadd.f32 %v1439, %v1386
      %v1476 = vadd.f32 %v1440, %v1388
      %v1477 = vadd.f32 %v1441, %v1391
      %v1478 = vadd.f32 %v1442, %v1393
      %v1479 = vadd.f32 %v1443, %v1396
      %v1480 = vadd.f32 %v1444, %v1398
      %v1481 = vadd.f32 %v1445, %v1401
      %v1482 = vadd.f32 %v1446, %v1403
      %v1483 = vadd.f32 %v1447, %v1406
      %v1484 = vadd.f32 %v1448, %v1408
      %v1485 = vadd.f32 %v1449, %v1411
      %v1486 = vadd.f32 %v1450, %v1413
      %1487 = vst [vmem:[#allocation2] sm:$0xff] %v1451
      %1488 = vst [vmem:[#allocation2 + $0x8] sm:$0xff] %v1452
      %1489 = vst [vmem:[#allocation2 + $0x10] sm:$0xff] %v1453
      %1490 = vst [vmem:[#allocation2 + $0x18] sm:$0xff] %v1454
      %1491 = vst [vmem:[#allocation2 + $0x20] sm:$0xff] %v1455
      %1492 = vst [vmem:[#allocation2 + $0x28] sm:$0xff] %v1456
      %1493 = vst [vmem:[#allocation2 + $0x30] sm:$0xff] %v1457
      %1494 = vst [vmem:[#allocation2 + $0x38] sm:$0xff] %v1458
      %1495 = vst [vmem:[#allocation2 + $0x40] sm:$0xff] %v1459
      %1496 = vst [vmem:[#allocation2 + $0x48] sm:$0xff] %v1460
      %1497 = vst [vmem:[#allocation2 + $0x50] sm:$0xff] %v1461
      %1498 = vst [vmem:[#allocation2 + $0x58] sm:$0xff] %v1462
      %1499 = vst [vmem:[#allocation2 + $0x60] sm:$0xff] %v1463
      %1500 = vst [vmem:[#allocation2 + $0x68] sm:$0xff] %v1464
      %1501 = vst [vmem:[#allocation2 + $0x70] sm:$0xff] %v1465
      %1502 = vst [vmem:[#allocation2 + $0x78] sm:$0xff] %v1466
      %1503 = vst [vmem:[#allocation2 + $0x80] sm:$0xff] %v1467
      %1504 = vst [vmem:[#allocation2 + $0x88] sm:$0xff] %v1468
      %1505 = vst [vmem:[#allocation2 + $0x90] sm:$0xff] %v1469
      %1506 = vst [vmem:[#allocation2 + $0x98] sm:$0xff] %v1470
      %1507 = vst [vmem:[#allocation2 + $0xa0] sm:$0xff] %v1471
      %1508 = vst [vmem:[#allocation2 + $0xa8] sm:$0xff] %v1472
      %1509 = vst [vmem:[#allocation2 + $0xb0] sm:$0xff] %v1473
      %1510 = vst [vmem:[#allocation2 + $0xb8] sm:$0xff] %v1474
      %1511 = vst [vmem:[#allocation2 + $0xc0] sm:$0xff] %v1475
      %1512 = vst [vmem:[#allocation2 + $0xc8] sm:$0xff] %v1476
      %1513 = vst [vmem:[#allocation2 + $0xd0] sm:$0xff] %v1477
      %1514 = vst [vmem:[#allocation2 + $0xd8] sm:$0xff] %v1478
      %1515 = vst [vmem:[#allocation2 + $0xe0] sm:$0xff] %v1479
      %1516 = vst [vmem:[#allocation2 + $0xe8] sm:$0xff] %v1480
      %1517 = vst [vmem:[#allocation2 + $0xf0] sm:$0xff] %v1481
      %1518 = vst [vmem:[#allocation2 + $0xf8] sm:$0xff] %v1482
      %1519 = vst [vmem:[#allocation2 + $0x100] sm:$0xff] %v1483
      %1520 = vst [vmem:[#allocation2 + $0x108] sm:$0xff] %v1484
      %1521 = vst [vmem:[#allocation2 + $0x110] sm:$0xff] %v1485
      %1522 = vst [vmem:[#allocation2 + $0x118] sm:$0xff] %v1486
      %v1523 = vld [vmem:[%s206 + $0x8] sm:$0xe]
      %v1524 = vld [vmem:[%s206 + $0xc] sm:$0xf]
      %v1525 = vld [vmem:[%s206 + $0x10] sm:$0xf]
      %v1526 = vld [vmem:[%s206 + $0x14] sm:$0xf]
      %v1527 = vld [vmem:[%s206 + $0x18] sm:$0xf]
      %v1528 = vld [vmem:[%s206 + $0x1c] sm:$0xf]
      %v1529 = vld [vmem:[%s206 + $0x20] sm:$0xf]
      %v1530 = vld [vmem:[%s206 + $0x24] sm:$0xf]
      %v1531 = vld [vmem:[%s206 + $0x28] sm:$0xf]
      %v1532 = vld [vmem:[%s206 + $0x2c] sm:$0xf]
      %v1533 = vld [vmem:[%s206 + $0x30] sm:$0xf]
      %v1534 = vld [vmem:[%s206 + $0x34] sm:$0xf]
      %v1535 = vld [vmem:[%s206 + $0x38] sm:$0xf]
      %v1536 = vld [vmem:[%s206 + $0x3c] sm:$0xf]
      %v1537 = vld [vmem:[%s206 + $0x40] sm:$0xf]
      %v1538 = vld [vmem:[%s206 + $0x44] sm:$0xf]
      %v1539 = vld [vmem:[%s206 + $0x48] sm:$0xf]
      %v1540 = vld [vmem:[%s206 + $0x4c] sm:$0xf]
      %v1541 = vld [vmem:[%s206 + $0x50] sm:$0xf]
      %v1542 = vld [vmem:[%s206 + $0x54] sm:$0xf]
      %v1543 = vld [vmem:[%s206 + $0x58] sm:$0xf]
      %v1544 = vld [vmem:[%s206 + $0x5c] sm:$0xf]
      %v1545 = vld [vmem:[%s206 + $0x60] sm:$0xf]
      %v1546 = vld [vmem:[%s206 + $0x64] sm:$0xf]
      %v1547 = vld [vmem:[%s206 + $0x68] sm:$0xf]
      %v1548 = vld [vmem:[%s206 + $0x6c] sm:$0xf]
      %v1549 = vld [vmem:[%s206 + $0x70] sm:$0xf]
      %v1550 = vld [vmem:[%s206 + $0x74] sm:$0xf]
      %v1551 = vld [vmem:[%s206 + $0x78] sm:$0xf]
      %v1552 = vld [vmem:[%s206 + $0x7c] sm:$0xf]
      %v1553 = vld [vmem:[%s206 + $0x80] sm:$0xf]
      %v1554 = vld [vmem:[%s206 + $0x84] sm:$0xf]
      %v1555 = vld [vmem:[%s206 + $0x88] sm:$0xf]
      %v1556 = vld [vmem:[%s206 + $0x8c] sm:$0xf]
      %v1557 = vld [vmem:[%s206 + $0x90] sm:$0xf]
      %v1558 = vld [vmem:[%s206 + $0x94] sm:$0xf]
      %v1559 = vld [vmem:[%s206 + $0x98] sm:$0x1]
      %s1560 = scalar_lea.vmem %s210, 6
      %v1561 = vld [vmem:[%s1560] sm:$0x3]
      %v1599 = vunpack.c.l.b16 %v1523
      %v1600 = vunpack.c.l.b16 %v1524
      %v1601 = vunpack.c.l.b16 %v1525
      %v1602 = vunpack.c.l.b16 %v1526
      %v1603 = vunpack.c.l.b16 %v1527
      %v1604 = vunpack.c.l.b16 %v1528
      %v1605 = vunpack.c.l.b16 %v1529
      %v1606 = vunpack.c.l.b16 %v1530
      %v1607 = vunpack.c.l.b16 %v1531
      %v1608 = vunpack.c.l.b16 %v1532
      %v1609 = vunpack.c.l.b16 %v1533
      %v1610 = vunpack.c.l.b16 %v1534
      %v1611 = vunpack.c.l.b16 %v1535
      %v1612 = vunpack.c.l.b16 %v1536
      %v1613 = vunpack.c.l.b16 %v1537
      %v1614 = vunpack.c.l.b16 %v1538
      %v1615 = vunpack.c.l.b16 %v1539
      %v1616 = vunpack.c.l.b16 %v1540
      %v1617 = vunpack.c.l.b16 %v1541
      %v1618 = vunpack.c.l.b16 %v1542
      %v1619 = vunpack.c.l.b16 %v1543
      %v1620 = vunpack.c.l.b16 %v1544
      %v1621 = vunpack.c.l.b16 %v1545
      %v1622 = vunpack.c.l.b16 %v1546
      %v1623 = vunpack.c.l.b16 %v1547
      %v1624 = vunpack.c.l.b16 %v1548
      %v1625 = vunpack.c.l.b16 %v1549
      %v1626 = vunpack.c.l.b16 %v1550
      %v1627 = vunpack.c.l.b16 %v1551
      %v1628 = vunpack.c.l.b16 %v1552
      %v1629 = vunpack.c.l.b16 %v1553
      %v1630 = vunpack.c.l.b16 %v1554
      %v1631 = vunpack.c.l.b16 %v1555
      %v1632 = vunpack.c.l.b16 %v1556
      %v1633 = vunpack.c.l.b16 %v1557
      %v1634 = vunpack.c.l.b16 %v1558
      %v1635 = vunpack.c.l.b16 %v1559
      %v1636 = vpack.c.b16 %v1600, %v1599
      %v1637 = vpack.c.b16 %v1602, %v1601
      %v1638 = vpack.c.b16 %v1604, %v1603
      %v1639 = vpack.c.b16 %v1606, %v1605
      %v1640 = vpack.c.b16 %v1608, %v1607
      %v1641 = vpack.c.b16 %v1610, %v1609
      %v1642 = vpack.c.b16 %v1612, %v1611
      %v1643 = vpack.c.b16 %v1614, %v1613
      %v1644 = vpack.c.b16 %v1616, %v1615
      %v1645 = vpack.c.b16 %v1618, %v1617
      %v1646 = vpack.c.b16 %v1620, %v1619
      %v1647 = vpack.c.b16 %v1622, %v1621
      %v1648 = vpack.c.b16 %v1624, %v1623
      %v1649 = vpack.c.b16 %v1626, %v1625
      %v1650 = vpack.c.b16 %v1628, %v1627
      %v1651 = vpack.c.b16 %v1630, %v1629
      %v1652 = vpack.c.b16 %v1632, %v1631
      %v1653 = vpack.c.b16 %v1634, %v1633
      %v1654 = vpack.c.b16 %v1635, %v1635
      %v1655 = vrot.slane %v1636, 1
      %v1656 = vrot.slane %v1637, 1
      %v1657 = vsel %vm1221, %v1655, %v1656
      %v1658 = vrot.slane %v1638, 1
      %v1659 = vsel %vm1221, %v1656, %v1658
      %v1660 = vrot.slane %v1639, 1
      %v1661 = vsel %vm1221, %v1658, %v1660
      %v1662 = vrot.slane %v1640, 1
      %v1663 = vsel %vm1221, %v1660, %v1662
      %v1664 = vrot.slane %v1641, 1
      %v1665 = vsel %vm1221, %v1662, %v1664
      %v1666 = vrot.slane %v1642, 1
      %v1667 = vsel %vm1221, %v1664, %v1666
      %v1668 = vrot.slane %v1643, 1
      %v1669 = vsel %vm1221, %v1666, %v1668
      %v1670 = vrot.slane %v1644, 1
      %v1671 = vsel %vm1221, %v1668, %v1670
      %v1672 = vrot.slane %v1645, 1
      %v1673 = vsel %vm1221, %v1670, %v1672
      %v1674 = vrot.slane %v1646, 1
      %v1675 = vsel %vm1221, %v1672, %v1674
      %v1676 = vrot.slane %v1647, 1
      %v1677 = vsel %vm1221, %v1674, %v1676
      %v1678 = vrot.slane %v1648, 1
      %v1679 = vsel %vm1221, %v1676, %v1678
      %v1680 = vrot.slane %v1649, 1
      %v1681 = vsel %vm1221, %v1678, %v1680
      %v1682 = vrot.slane %v1650, 1
      %v1683 = vsel %vm1221, %v1680, %v1682
      %v1684 = vrot.slane %v1651, 1
      %v1685 = vsel %vm1221, %v1682, %v1684
      %v1686 = vrot.slane %v1652, 1
      %v1687 = vsel %vm1221, %v1684, %v1686
      %v1688 = vrot.slane %v1653, 1
      %v1689 = vsel %vm1221, %v1686, %v1688
      %v1690 = vrot.slane %v1654, 1
      %v1691 = vsel %vm1221, %v1688, %v1690
      %v1693 = vsel %vm350, %v1657, 0
      %v1696 = vsel %vm350, %v1659, 0
      %v1699 = vsel %vm350, %v1661, 0
      %v1702 = vsel %vm350, %v1663, 0
      %v1705 = vsel %vm350, %v1665, 0
      %v1708 = vsel %vm350, %v1667, 0
      %v1711 = vsel %vm350, %v1669, 0
      %v1714 = vsel %vm350, %v1671, 0
      %v1717 = vsel %vm350, %v1673, 0
      %v1720 = vsel %vm350, %v1675, 0
      %v1723 = vsel %vm350, %v1677, 0
      %v1726 = vsel %vm350, %v1679, 0
      %v1729 = vsel %vm350, %v1681, 0
      %v1732 = vsel %vm350, %v1683, 0
      %v1735 = vsel %vm350, %v1685, 0
      %v1738 = vsel %vm350, %v1687, 0
      %v1741 = vsel %vm350, %v1689, 0
      %v1744 = vsel %vm350, %v1691, 0
      %v1747 = vsel %vm405, %v1561, 0
      %1749 = vmatpush.bf16.msra.mxu0 0
      %1750 = vmatpush.bf16.msra.mxu0 0
      %1751 = vmatpush.bf16.msra.mxu0 0
      %1752 = vmatpush.bf16.msra.mxu0 0
      %1753 = vmatpush.bf16.msra.mxu0 0
      %1754 = vmatpush.bf16.msra.mxu0 0
      %1755 = vmatpush.bf16.msra.mxu0 0
      %1756 = vmatpush.bf16.msra.mxu0 %v1747
      %1757 = vmatmul.bf16.gmra.mxu0 %v1693
      %v1758 = vpop.f32.mrf.mxu0
      %v1759 = vadd.f32 0.0, %v1758
      %v1760 = vpop.f32.mrf.mxu0
      %v1761 = vadd.f32 0.0, %v1760
      %1762 = vmatmul.bf16.gmra.mxu0 %v1696
      %v1763 = vpop.f32.mrf.mxu0
      %v1764 = vadd.f32 0.0, %v1763
      %v1765 = vpop.f32.mrf.mxu0
      %v1766 = vadd.f32 0.0, %v1765
      %1767 = vmatmul.bf16.gmra.mxu0 %v1699
      %v1768 = vpop.f32.mrf.mxu0
      %v1769 = vadd.f32 0.0, %v1768
      %v1770 = vpop.f32.mrf.mxu0
      %v1771 = vadd.f32 0.0, %v1770
      %1772 = vmatmul.bf16.gmra.mxu0 %v1702
      %v1773 = vpop.f32.mrf.mxu0
      %v1774 = vadd.f32 0.0, %v1773
      %v1775 = vpop.f32.mrf.mxu0
      %v1776 = vadd.f32 0.0, %v1775
      %1777 = vmatmul.bf16.gmra.mxu0 %v1705
      %v1778 = vpop.f32.mrf.mxu0
      %v1779 = vadd.f32 0.0, %v1778
      %v1780 = vpop.f32.mrf.mxu0
      %v1781 = vadd.f32 0.0, %v1780
      %1782 = vmatmul.bf16.gmra.mxu0 %v1708
      %v1783 = vpop.f32.mrf.mxu0
      %v1784 = vadd.f32 0.0, %v1783
      %v1785 = vpop.f32.mrf.mxu0
      %v1786 = vadd.f32 0.0, %v1785
      %1787 = vmatmul.bf16.gmra.mxu0 %v1711
      %v1788 = vpop.f32.mrf.mxu0
      %v1789 = vadd.f32 0.0, %v1788
      %v1790 = vpop.f32.mrf.mxu0
      %v1791 = vadd.f32 0.0, %v1790
      %1792 = vmatmul.bf16.gmra.mxu0 %v1714
      %v1793 = vpop.f32.mrf.mxu0
      %v1794 = vadd.f32 0.0, %v1793
      %v1795 = vpop.f32.mrf.mxu0
      %v1796 = vadd.f32 0.0, %v1795
      %1797 = vmatmul.bf16.gmra.mxu0 %v1717
      %v1798 = vpop.f32.mrf.mxu0
      %v1799 = vadd.f32 0.0, %v1798
      %v1800 = vpop.f32.mrf.mxu0
      %v1801 = vadd.f32 0.0, %v1800
      %1802 = vmatmul.bf16.gmra.mxu0 %v1720
      %v1803 = vpop.f32.mrf.mxu0
      %v1804 = vadd.f32 0.0, %v1803
      %v1805 = vpop.f32.mrf.mxu0
      %v1806 = vadd.f32 0.0, %v1805
      %1807 = vmatmul.bf16.gmra.mxu0 %v1723
      %v1808 = vpop.f32.mrf.mxu0
      %v1809 = vadd.f32 0.0, %v1808
      %v1810 = vpop.f32.mrf.mxu0
      %v1811 = vadd.f32 0.0, %v1810
      %1812 = vmatmul.bf16.gmra.mxu0 %v1726
      %v1813 = vpop.f32.mrf.mxu0
      %v1814 = vadd.f32 0.0, %v1813
      %v1815 = vpop.f32.mrf.mxu0
      %v1816 = vadd.f32 0.0, %v1815
      %1817 = vmatmul.bf16.gmra.mxu0 %v1729
      %v1818 = vpop.f32.mrf.mxu0
      %v1819 = vadd.f32 0.0, %v1818
      %v1820 = vpop.f32.mrf.mxu0
      %v1821 = vadd.f32 0.0, %v1820
      %1822 = vmatmul.bf16.gmra.mxu0 %v1732
      %v1823 = vpop.f32.mrf.mxu0
      %v1824 = vadd.f32 0.0, %v1823
      %v1825 = vpop.f32.mrf.mxu0
      %v1826 = vadd.f32 0.0, %v1825
      %1827 = vmatmul.bf16.gmra.mxu0 %v1735
      %v1828 = vpop.f32.mrf.mxu0
      %v1829 = vadd.f32 0.0, %v1828
      %v1830 = vpop.f32.mrf.mxu0
      %v1831 = vadd.f32 0.0, %v1830
      %1832 = vmatmul.bf16.gmra.mxu0 %v1738
      %v1833 = vpop.f32.mrf.mxu0
      %v1834 = vadd.f32 0.0, %v1833
      %v1835 = vpop.f32.mrf.mxu0
      %v1836 = vadd.f32 0.0, %v1835
      %1837 = vmatmul.bf16.gmra.mxu0 %v1741
      %v1838 = vpop.f32.mrf.mxu0
      %v1839 = vadd.f32 0.0, %v1838
      %v1840 = vpop.f32.mrf.mxu0
      %v1841 = vadd.f32 0.0, %v1840
      %1842 = vmatmul.bf16.gmra.mxu0 %v1744
      %v1843 = vpop.f32.mrf.mxu0
      %v1844 = vadd.f32 0.0, %v1843
      %v1845 = vpop.f32.mrf.mxu0
      %v1846 = vadd.f32 0.0, %v1845
      %1847 = vdwg.mxu0
      %v1848 = vld [vmem:[#allocation2] sm:$0xff]
      %v1849 = vld [vmem:[#allocation2 + $0x8] sm:$0xff]
      %v1850 = vld [vmem:[#allocation2 + $0x10] sm:$0xff]
      %v1851 = vld [vmem:[#allocation2 + $0x18] sm:$0xff]
      %v1852 = vld [vmem:[#allocation2 + $0x20] sm:$0xff]
      %v1853 = vld [vmem:[#allocation2 + $0x28] sm:$0xff]
      %v1854 = vld [vmem:[#allocation2 + $0x30] sm:$0xff]
      %v1855 = vld [vmem:[#allocation2 + $0x38] sm:$0xff]
      %v1856 = vld [vmem:[#allocation2 + $0x40] sm:$0xff]
      %v1857 = vld [vmem:[#allocation2 + $0x48] sm:$0xff]
      %v1858 = vld [vmem:[#allocation2 + $0x50] sm:$0xff]
      %v1859 = vld [vmem:[#allocation2 + $0x58] sm:$0xff]
      %v1860 = vld [vmem:[#allocation2 + $0x60] sm:$0xff]
      %v1861 = vld [vmem:[#allocation2 + $0x68] sm:$0xff]
      %v1862 = vld [vmem:[#allocation2 + $0x70] sm:$0xff]
      %v1863 = vld [vmem:[#allocation2 + $0x78] sm:$0xff]
      %v1864 = vld [vmem:[#allocation2 + $0x80] sm:$0xff]
      %v1865 = vld [vmem:[#allocation2 + $0x88] sm:$0xff]
      %v1866 = vld [vmem:[#allocation2 + $0x90] sm:$0xff]
      %v1867 = vld [vmem:[#allocation2 + $0x98] sm:$0xff]
      %v1868 = vld [vmem:[#allocation2 + $0xa0] sm:$0xff]
      %v1869 = vld [vmem:[#allocation2 + $0xa8] sm:$0xff]
      %v1870 = vld [vmem:[#allocation2 + $0xb0] sm:$0xff]
      %v1871 = vld [vmem:[#allocation2 + $0xb8] sm:$0xff]
      %v1872 = vld [vmem:[#allocation2 + $0xc0] sm:$0xff]
      %v1873 = vld [vmem:[#allocation2 + $0xc8] sm:$0xff]
      %v1874 = vld [vmem:[#allocation2 + $0xd0] sm:$0xff]
      %v1875 = vld [vmem:[#allocation2 + $0xd8] sm:$0xff]
      %v1876 = vld [vmem:[#allocation2 + $0xe0] sm:$0xff]
      %v1877 = vld [vmem:[#allocation2 + $0xe8] sm:$0xff]
      %v1878 = vld [vmem:[#allocation2 + $0xf0] sm:$0xff]
      %v1879 = vld [vmem:[#allocation2 + $0xf8] sm:$0xff]
      %v1880 = vld [vmem:[#allocation2 + $0x100] sm:$0xff]
      %v1881 = vld [vmem:[#allocation2 + $0x108] sm:$0xff]
      %v1882 = vld [vmem:[#allocation2 + $0x110] sm:$0xff]
      %v1883 = vld [vmem:[#allocation2 + $0x118] sm:$0xff]
      %v1884 = vadd.f32 %v1848, %v1759
      %v1885 = vadd.f32 %v1849, %v1761
      %v1886 = vadd.f32 %v1850, %v1764
      %v1887 = vadd.f32 %v1851, %v1766
      %v1888 = vadd.f32 %v1852, %v1769
      %v1889 = vadd.f32 %v1853, %v1771
      %v1890 = vadd.f32 %v1854, %v1774
      %v1891 = vadd.f32 %v1855, %v1776
      %v1892 = vadd.f32 %v1856, %v1779
      %v1893 = vadd.f32 %v1857, %v1781
      %v1894 = vadd.f32 %v1858, %v1784
      %v1895 = vadd.f32 %v1859, %v1786
      %v1896 = vadd.f32 %v1860, %v1789
      %v1897 = vadd.f32 %v1861, %v1791
      %v1898 = vadd.f32 %v1862, %v1794
      %v1899 = vadd.f32 %v1863, %v1796
      %v1900 = vadd.f32 %v1864, %v1799
      %v1901 = vadd.f32 %v1865, %v1801
      %v1902 = vadd.f32 %v1866, %v1804
      %v1903 = vadd.f32 %v1867, %v1806
      %v1904 = vadd.f32 %v1868, %v1809
      %v1905 = vadd.f32 %v1869, %v1811
      %v1906 = vadd.f32 %v1870, %v1814
      %v1907 = vadd.f32 %v1871, %v1816
      %v1908 = vadd.f32 %v1872, %v1819
      %v1909 = vadd.f32 %v1873, %v1821
      %v1910 = vadd.f32 %v1874, %v1824
      %v1911 = vadd.f32 %v1875, %v1826
      %v1912 = vadd.f32 %v1876, %v1829
      %v1913 = vadd.f32 %v1877, %v1831
      %v1914 = vadd.f32 %v1878, %v1834
      %v1915 = vadd.f32 %v1879, %v1836
      %v1916 = vadd.f32 %v1880, %v1839
      %v1917 = vadd.f32 %v1881, %v1841
      %v1918 = vadd.f32 %v1882, %v1844
      %v1919 = vadd.f32 %v1883, %v1846
      %1920 = vst [vmem:[#allocation2] sm:$0xff] %v1884
      %1921 = vst [vmem:[#allocation2 + $0x8] sm:$0xff] %v1885
      %1922 = vst [vmem:[#allocation2 + $0x10] sm:$0xff] %v1886
      %1923 = vst [vmem:[#allocation2 + $0x18] sm:$0xff] %v1887
      %1924 = vst [vmem:[#allocation2 + $0x20] sm:$0xff] %v1888
      %1925 = vst [vmem:[#allocation2 + $0x28] sm:$0xff] %v1889
      %1926 = vst [vmem:[#allocation2 + $0x30] sm:$0xff] %v1890
      %1927 = vst [vmem:[#allocation2 + $0x38] sm:$0xff] %v1891
      %1928 = vst [vmem:[#allocation2 + $0x40] sm:$0xff] %v1892
      %1929 = vst [vmem:[#allocation2 + $0x48] sm:$0xff] %v1893
      %1930 = vst [vmem:[#allocation2 + $0x50] sm:$0xff] %v1894
      %1931 = vst [vmem:[#allocation2 + $0x58] sm:$0xff] %v1895
      %1932 = vst [vmem:[#allocation2 + $0x60] sm:$0xff] %v1896
      %1933 = vst [vmem:[#allocation2 + $0x68] sm:$0xff] %v1897
      %1934 = vst [vmem:[#allocation2 + $0x70] sm:$0xff] %v1898
      %1935 = vst [vmem:[#allocation2 + $0x78] sm:$0xff] %v1899
      %1936 = vst [vmem:[#allocation2 + $0x80] sm:$0xff] %v1900
      %1937 = vst [vmem:[#allocation2 + $0x88] sm:$0xff] %v1901
      %1938 = vst [vmem:[#allocation2 + $0x90] sm:$0xff] %v1902
      %1939 = vst [vmem:[#allocation2 + $0x98] sm:$0xff] %v1903
      %1940 = vst [vmem:[#allocation2 + $0xa0] sm:$0xff] %v1904
      %1941 = vst [vmem:[#allocation2 + $0xa8] sm:$0xff] %v1905
      %1942 = vst [vmem:[#allocation2 + $0xb0] sm:$0xff] %v1906
      %1943 = vst [vmem:[#allocation2 + $0xb8] sm:$0xff] %v1907
      %1944 = vst [vmem:[#allocation2 + $0xc0] sm:$0xff] %v1908
      %1945 = vst [vmem:[#allocation2 + $0xc8] sm:$0xff] %v1909
      %1946 = vst [vmem:[#allocation2 + $0xd0] sm:$0xff] %v1910
      %1947 = vst [vmem:[#allocation2 + $0xd8] sm:$0xff] %v1911
      %1948 = vst [vmem:[#allocation2 + $0xe0] sm:$0xff] %v1912
      %1949 = vst [vmem:[#allocation2 + $0xe8] sm:$0xff] %v1913
      %1950 = vst [vmem:[#allocation2 + $0xf0] sm:$0xff] %v1914
      %1951 = vst [vmem:[#allocation2 + $0xf8] sm:$0xff] %v1915
      %1952 = vst [vmem:[#allocation2 + $0x100] sm:$0xff] %v1916
      %1953 = vst [vmem:[#allocation2 + $0x108] sm:$0xff] %v1917
      %1954 = vst [vmem:[#allocation2 + $0x110] sm:$0xff] %v1918
      %1955 = vst [vmem:[#allocation2 + $0x118] sm:$0xff] %v1919
      %v1956 = vld [vmem:[%s206 + $0x8] sm:$0xe]
      %v1957 = vld [vmem:[%s206 + $0xc] sm:$0xf]
      %v1958 = vld [vmem:[%s206 + $0x10] sm:$0xf]
      %v1959 = vld [vmem:[%s206 + $0x14] sm:$0xf]
      %v1960 = vld [vmem:[%s206 + $0x18] sm:$0xf]
      %v1961 = vld [vmem:[%s206 + $0x1c] sm:$0xf]
      %v1962 = vld [vmem:[%s206 + $0x20] sm:$0xf]
      %v1963 = vld [vmem:[%s206 + $0x24] sm:$0xf]
      %v1964 = vld [vmem:[%s206 + $0x28] sm:$0xf]
      %v1965 = vld [vmem:[%s206 + $0x2c] sm:$0xf]
      %v1966 = vld [vmem:[%s206 + $0x30] sm:$0xf]
      %v1967 = vld [vmem:[%s206 + $0x34] sm:$0xf]
      %v1968 = vld [vmem:[%s206 + $0x38] sm:$0xf]
      %v1969 = vld [vmem:[%s206 + $0x3c] sm:$0xf]
      %v1970 = vld [vmem:[%s206 + $0x40] sm:$0xf]
      %v1971 = vld [vmem:[%s206 + $0x44] sm:$0xf]
      %v1972 = vld [vmem:[%s206 + $0x48] sm:$0xf]
      %v1973 = vld [vmem:[%s206 + $0x4c] sm:$0xf]
      %v1974 = vld [vmem:[%s206 + $0x50] sm:$0xf]
      %v1975 = vld [vmem:[%s206 + $0x54] sm:$0xf]
      %v1976 = vld [vmem:[%s206 + $0x58] sm:$0xf]
      %v1977 = vld [vmem:[%s206 + $0x5c] sm:$0xf]
      %v1978 = vld [vmem:[%s206 + $0x60] sm:$0xf]
      %v1979 = vld [vmem:[%s206 + $0x64] sm:$0xf]
      %v1980 = vld [vmem:[%s206 + $0x68] sm:$0xf]
      %v1981 = vld [vmem:[%s206 + $0x6c] sm:$0xf]
      %v1982 = vld [vmem:[%s206 + $0x70] sm:$0xf]
      %v1983 = vld [vmem:[%s206 + $0x74] sm:$0xf]
      %v1984 = vld [vmem:[%s206 + $0x78] sm:$0xf]
      %v1985 = vld [vmem:[%s206 + $0x7c] sm:$0xf]
      %v1986 = vld [vmem:[%s206 + $0x80] sm:$0xf]
      %v1987 = vld [vmem:[%s206 + $0x84] sm:$0xf]
      %v1988 = vld [vmem:[%s206 + $0x88] sm:$0xf]
      %v1989 = vld [vmem:[%s206 + $0x8c] sm:$0xf]
      %v1990 = vld [vmem:[%s206 + $0x90] sm:$0xf]
      %v1991 = vld [vmem:[%s206 + $0x94] sm:$0xf]
      %v1992 = vld [vmem:[%s206 + $0x98] sm:$0x3]
      %s1993 = scalar_lea.vmem %s210, 8
      %v1994 = vld [vmem:[%s1993] sm:$0x3]
      %v2032 = vunpack.c.l.b16 %v1956
      %v2033 = vunpack.c.l.b16 %v1957
      %v2034 = vunpack.c.l.b16 %v1958
      %v2035 = vunpack.c.l.b16 %v1959
      %v2036 = vunpack.c.l.b16 %v1960
      %v2037 = vunpack.c.l.b16 %v1961
      %v2038 = vunpack.c.l.b16 %v1962
      %v2039 = vunpack.c.l.b16 %v1963
      %v2040 = vunpack.c.l.b16 %v1964
      %v2041 = vunpack.c.l.b16 %v1965
      %v2042 = vunpack.c.l.b16 %v1966
      %v2043 = vunpack.c.l.b16 %v1967
      %v2044 = vunpack.c.l.b16 %v1968
      %v2045 = vunpack.c.l.b16 %v1969
      %v2046 = vunpack.c.l.b16 %v1970
      %v2047 = vunpack.c.l.b16 %v1971
      %v2048 = vunpack.c.l.b16 %v1972
      %v2049 = vunpack.c.l.b16 %v1973
      %v2050 = vunpack.c.l.b16 %v1974
      %v2051 = vunpack.c.l.b16 %v1975
      %v2052 = vunpack.c.l.b16 %v1976
      %v2053 = vunpack.c.l.b16 %v1977
      %v2054 = vunpack.c.l.b16 %v1978
      %v2055 = vunpack.c.l.b16 %v1979
      %v2056 = vunpack.c.l.b16 %v1980
      %v2057 = vunpack.c.l.b16 %v1981
      %v2058 = vunpack.c.l.b16 %v1982
      %v2059 = vunpack.c.l.b16 %v1983
      %v2060 = vunpack.c.l.b16 %v1984
      %v2061 = vunpack.c.l.b16 %v1985
      %v2062 = vunpack.c.l.b16 %v1986
      %v2063 = vunpack.c.l.b16 %v1987
      %v2064 = vunpack.c.l.b16 %v1988
      %v2065 = vunpack.c.l.b16 %v1989
      %v2066 = vunpack.c.l.b16 %v1990
      %v2067 = vunpack.c.l.b16 %v1991
      %v2068 = vunpack.c.l.b16 %v1992
      %v2069 = vpack.c.b16 %v2033, %v2032
      %v2070 = vpack.c.b16 %v2035, %v2034
      %v2071 = vpack.c.b16 %v2037, %v2036
      %v2072 = vpack.c.b16 %v2039, %v2038
      %v2073 = vpack.c.b16 %v2041, %v2040
      %v2074 = vpack.c.b16 %v2043, %v2042
      %v2075 = vpack.c.b16 %v2045, %v2044
      %v2076 = vpack.c.b16 %v2047, %v2046
      %v2077 = vpack.c.b16 %v2049, %v2048
      %v2078 = vpack.c.b16 %v2051, %v2050
      %v2079 = vpack.c.b16 %v2053, %v2052
      %v2080 = vpack.c.b16 %v2055, %v2054
      %v2081 = vpack.c.b16 %v2057, %v2056
      %v2082 = vpack.c.b16 %v2059, %v2058
      %v2083 = vpack.c.b16 %v2061, %v2060
      %v2084 = vpack.c.b16 %v2063, %v2062
      %v2085 = vpack.c.b16 %v2065, %v2064
      %v2086 = vpack.c.b16 %v2067, %v2066
      %v2087 = vpack.c.b16 %v2068, %v2068
      %vm2088 = vsmask.f32 6400
      %v2090 = vshrl.u32 %v2069, 16
      %v2092 = vrot.slane %v2090, 1
      %v2093 = vshll.u32 %v2069, 16
      %v2095 = vrot.slane %v2093, 2
      %v2096 = vor.u32 %v2092, %v2095
      %v2098 = vshrl.u32 %v2070, 16
      %v2100 = vrot.slane %v2098, 1
      %v2101 = vshll.u32 %v2070, 16
      %v2103 = vrot.slane %v2101, 2
      %v2104 = vor.u32 %v2100, %v2103
      %v2105 = vsel %vm2088, %v2096, %v2104
      %v2107 = vshrl.u32 %v2071, 16
      %v2109 = vrot.slane %v2107, 1
      %v2110 = vshll.u32 %v2071, 16
      %v2112 = vrot.slane %v2110, 2
      %v2113 = vor.u32 %v2109, %v2112
      %v2114 = vsel %vm2088, %v2104, %v2113
      %v2116 = vshrl.u32 %v2072, 16
      %v2118 = vrot.slane %v2116, 1
      %v2119 = vshll.u32 %v2072, 16
      %v2121 = vrot.slane %v2119, 2
      %v2122 = vor.u32 %v2118, %v2121
      %v2123 = vsel %vm2088, %v2113, %v2122
      %v2125 = vshrl.u32 %v2073, 16
      %v2127 = vrot.slane %v2125, 1
      %v2128 = vshll.u32 %v2073, 16
      %v2130 = vrot.slane %v2128, 2
      %v2131 = vor.u32 %v2127, %v2130
      %v2132 = vsel %vm2088, %v2122, %v2131
      %v2134 = vshrl.u32 %v2074, 16
      %v2136 = vrot.slane %v2134, 1
      %v2137 = vshll.u32 %v2074, 16
      %v2139 = vrot.slane %v2137, 2
      %v2140 = vor.u32 %v2136, %v2139
      %v2141 = vsel %vm2088, %v2131, %v2140
      %v2143 = vshrl.u32 %v2075, 16
      %v2145 = vrot.slane %v2143, 1
      %v2146 = vshll.u32 %v2075, 16
      %v2148 = vrot.slane %v2146, 2
      %v2149 = vor.u32 %v2145, %v2148
      %v2150 = vsel %vm2088, %v2140, %v2149
      %v2152 = vshrl.u32 %v2076, 16
      %v2154 = vrot.slane %v2152, 1
      %v2155 = vshll.u32 %v2076, 16
      %v2157 = vrot.slane %v2155, 2
      %v2158 = vor.u32 %v2154, %v2157
      %v2159 = vsel %vm2088, %v2149, %v2158
      %v2161 = vshrl.u32 %v2077, 16
      %v2163 = vrot.slane %v2161, 1
      %v2164 = vshll.u32 %v2077, 16
      %v2166 = vrot.slane %v2164, 2
      %v2167 = vor.u32 %v2163, %v2166
      %v2168 = vsel %vm2088, %v2158, %v2167
      %v2170 = vshrl.u32 %v2078, 16
      %v2172 = vrot.slane %v2170, 1
      %v2173 = vshll.u32 %v2078, 16
      %v2175 = vrot.slane %v2173, 2
      %v2176 = vor.u32 %v2172, %v2175
      %v2177 = vsel %vm2088, %v2167, %v2176
      %v2179 = vshrl.u32 %v2079, 16
      %v2181 = vrot.slane %v2179, 1
      %v2182 = vshll.u32 %v2079, 16
      %v2184 = vrot.slane %v2182, 2
      %v2185 = vor.u32 %v2181, %v2184
      %v2186 = vsel %vm2088, %v2176, %v2185
      %v2188 = vshrl.u32 %v2080, 16
      %v2190 = vrot.slane %v2188, 1
      %v2191 = vshll.u32 %v2080, 16
      %v2193 = vrot.slane %v2191, 2
      %v2194 = vor.u32 %v2190, %v2193
      %v2195 = vsel %vm2088, %v2185, %v2194
      %v2197 = vshrl.u32 %v2081, 16
      %v2199 = vrot.slane %v2197, 1
      %v2200 = vshll.u32 %v2081, 16
      %v2202 = vrot.slane %v2200, 2
      %v2203 = vor.u32 %v2199, %v2202
      %v2204 = vsel %vm2088, %v2194, %v2203
      %v2206 = vshrl.u32 %v2082, 16
      %v2208 = vrot.slane %v2206, 1
      %v2209 = vshll.u32 %v2082, 16
      %v2211 = vrot.slane %v2209, 2
      %v2212 = vor.u32 %v2208, %v2211
      %v2213 = vsel %vm2088, %v2203, %v2212
      %v2215 = vshrl.u32 %v2083, 16
      %v2217 = vrot.slane %v2215, 1
      %v2218 = vshll.u32 %v2083, 16
      %v2220 = vrot.slane %v2218, 2
      %v2221 = vor.u32 %v2217, %v2220
      %v2222 = vsel %vm2088, %v2212, %v2221
      %v2224 = vshrl.u32 %v2084, 16
      %v2226 = vrot.slane %v2224, 1
      %v2227 = vshll.u32 %v2084, 16
      %v2229 = vrot.slane %v2227, 2
      %v2230 = vor.u32 %v2226, %v2229
      %v2231 = vsel %vm2088, %v2221, %v2230
      %v2233 = vshrl.u32 %v2085, 16
      %v2235 = vrot.slane %v2233, 1
      %v2236 = vshll.u32 %v2085, 16
      %v2238 = vrot.slane %v2236, 2
      %v2239 = vor.u32 %v2235, %v2238
      %v2240 = vsel %vm2088, %v2230, %v2239
      %v2242 = vshrl.u32 %v2086, 16
      %v2244 = vrot.slane %v2242, 1
      %v2245 = vshll.u32 %v2086, 16
      %v2247 = vrot.slane %v2245, 2
      %v2248 = vor.u32 %v2244, %v2247
      %v2249 = vsel %vm2088, %v2239, %v2248
      %v2251 = vshrl.u32 %v2087, 16
      %v2253 = vrot.slane %v2251, 1
      %v2254 = vshll.u32 %v2087, 16
      %v2256 = vrot.slane %v2254, 2
      %v2257 = vor.u32 %v2253, %v2256
      %v2258 = vsel %vm2088, %v2248, %v2257
      %v2260 = vsel %vm350, %v2105, 0
      %v2263 = vsel %vm350, %v2114, 0
      %v2266 = vsel %vm350, %v2123, 0
      %v2269 = vsel %vm350, %v2132, 0
      %v2272 = vsel %vm350, %v2141, 0
      %v2275 = vsel %vm350, %v2150, 0
      %v2278 = vsel %vm350, %v2159, 0
      %v2281 = vsel %vm350, %v2168, 0
      %v2284 = vsel %vm350, %v2177, 0
      %v2287 = vsel %vm350, %v2186, 0
      %v2290 = vsel %vm350, %v2195, 0
      %v2293 = vsel %vm350, %v2204, 0
      %v2296 = vsel %vm350, %v2213, 0
      %v2299 = vsel %vm350, %v2222, 0
      %v2302 = vsel %vm350, %v2231, 0
      %v2305 = vsel %vm350, %v2240, 0
      %v2308 = vsel %vm350, %v2249, 0
      %v2311 = vsel %vm350, %v2258, 0
      %v2314 = vsel %vm405, %v1994, 0
      %2316 = vmatpush.bf16.msra.mxu0 0
      %2317 = vmatpush.bf16.msra.mxu0 0
      %2318 = vmatpush.bf16.msra.mxu0 0
      %2319 = vmatpush.bf16.msra.mxu0 0
      %2320 = vmatpush.bf16.msra.mxu0 0
      %2321 = vmatpush.bf16.msra.mxu0 0
      %2322 = vmatpush.bf16.msra.mxu0 0
      %2323 = vmatpush.bf16.msra.mxu0 %v2314
      %2324 = vmatmul.bf16.gmra.mxu0 %v2260
      %v2325 = vpop.f32.mrf.mxu0
      %v2326 = vadd.f32 0.0, %v2325
      %v2327 = vpop.f32.mrf.mxu0
      %v2328 = vadd.f32 0.0, %v2327
      %2329 = vmatmul.bf16.gmra.mxu0 %v2263
      %v2330 = vpop.f32.mrf.mxu0
      %v2331 = vadd.f32 0.0, %v2330
      %v2332 = vpop.f32.mrf.mxu0
      %v2333 = vadd.f32 0.0, %v2332
      %2334 = vmatmul.bf16.gmra.mxu0 %v2266
      %v2335 = vpop.f32.mrf.mxu0
      %v2336 = vadd.f32 0.0, %v2335
      %v2337 = vpop.f32.mrf.mxu0
      %v2338 = vadd.f32 0.0, %v2337
      %2339 = vmatmul.bf16.gmra.mxu0 %v2269
      %v2340 = vpop.f32.mrf.mxu0
      %v2341 = vadd.f32 0.0, %v2340
      %v2342 = vpop.f32.mrf.mxu0
      %v2343 = vadd.f32 0.0, %v2342
      %2344 = vmatmul.bf16.gmra.mxu0 %v2272
      %v2345 = vpop.f32.mrf.mxu0
      %v2346 = vadd.f32 0.0, %v2345
      %v2347 = vpop.f32.mrf.mxu0
      %v2348 = vadd.f32 0.0, %v2347
      %2349 = vmatmul.bf16.gmra.mxu0 %v2275
      %v2350 = vpop.f32.mrf.mxu0
      %v2351 = vadd.f32 0.0, %v2350
      %v2352 = vpop.f32.mrf.mxu0
      %v2353 = vadd.f32 0.0, %v2352
      %2354 = vmatmul.bf16.gmra.mxu0 %v2278
      %v2355 = vpop.f32.mrf.mxu0
      %v2356 = vadd.f32 0.0, %v2355
      %v2357 = vpop.f32.mrf.mxu0
      %v2358 = vadd.f32 0.0, %v2357
      %2359 = vmatmul.bf16.gmra.mxu0 %v2281
      %v2360 = vpop.f32.mrf.mxu0
      %v2361 = vadd.f32 0.0, %v2360
      %v2362 = vpop.f32.mrf.mxu0
      %v2363 = vadd.f32 0.0, %v2362
      %2364 = vmatmul.bf16.gmra.mxu0 %v2284
      %v2365 = vpop.f32.mrf.mxu0
      %v2366 = vadd.f32 0.0, %v2365
      %v2367 = vpop.f32.mrf.mxu0
      %v2368 = vadd.f32 0.0, %v2367
      %2369 = vmatmul.bf16.gmra.mxu0 %v2287
      %v2370 = vpop.f32.mrf.mxu0
      %v2371 = vadd.f32 0.0, %v2370
      %v2372 = vpop.f32.mrf.mxu0
      %v2373 = vadd.f32 0.0, %v2372
      %2374 = vmatmul.bf16.gmra.mxu0 %v2290
      %v2375 = vpop.f32.mrf.mxu0
      %v2376 = vadd.f32 0.0, %v2375
      %v2377 = vpop.f32.mrf.mxu0
      %v2378 = vadd.f32 0.0, %v2377
      %2379 = vmatmul.bf16.gmra.mxu0 %v2293
      %v2380 = vpop.f32.mrf.mxu0
      %v2381 = vadd.f32 0.0, %v2380
      %v2382 = vpop.f32.mrf.mxu0
      %v2383 = vadd.f32 0.0, %v2382
      %2384 = vmatmul.bf16.gmra.mxu0 %v2296
      %v2385 = vpop.f32.mrf.mxu0
      %v2386 = vadd.f32 0.0, %v2385
      %v2387 = vpop.f32.mrf.mxu0
      %v2388 = vadd.f32 0.0, %v2387
      %2389 = vmatmul.bf16.gmra.mxu0 %v2299
      %v2390 = vpop.f32.mrf.mxu0
      %v2391 = vadd.f32 0.0, %v2390
      %v2392 = vpop.f32.mrf.mxu0
      %v2393 = vadd.f32 0.0, %v2392
      %2394 = vmatmul.bf16.gmra.mxu0 %v2302
      %v2395 = vpop.f32.mrf.mxu0
      %v2396 = vadd.f32 0.0, %v2395
      %v2397 = vpop.f32.mrf.mxu0
      %v2398 = vadd.f32 0.0, %v2397
      %2399 = vmatmul.bf16.gmra.mxu0 %v2305
      %v2400 = vpop.f32.mrf.mxu0
      %v2401 = vadd.f32 0.0, %v2400
      %v2402 = vpop.f32.mrf.mxu0
      %v2403 = vadd.f32 0.0, %v2402
      %2404 = vmatmul.bf16.gmra.mxu0 %v2308
      %v2405 = vpop.f32.mrf.mxu0
      %v2406 = vadd.f32 0.0, %v2405
      %v2407 = vpop.f32.mrf.mxu0
      %v2408 = vadd.f32 0.0, %v2407
      %2409 = vmatmul.bf16.gmra.mxu0 %v2311
      %v2410 = vpop.f32.mrf.mxu0
      %v2411 = vadd.f32 0.0, %v2410
      %v2412 = vpop.f32.mrf.mxu0
      %v2413 = vadd.f32 0.0, %v2412
      %2414 = vdwg.mxu0
      %v2415 = vld [vmem:[#allocation2] sm:$0xff]
      %v2416 = vld [vmem:[#allocation2 + $0x8] sm:$0xff]
      %v2417 = vld [vmem:[#allocation2 + $0x10] sm:$0xff]
      %v2418 = vld [vmem:[#allocation2 + $0x18] sm:$0xff]
      %v2419 = vld [vmem:[#allocation2 + $0x20] sm:$0xff]
      %v2420 = vld [vmem:[#allocation2 + $0x28] sm:$0xff]
      %v2421 = vld [vmem:[#allocation2 + $0x30] sm:$0xff]
      %v2422 = vld [vmem:[#allocation2 + $0x38] sm:$0xff]
      %v2423 = vld [vmem:[#allocation2 + $0x40] sm:$0xff]
      %v2424 = vld [vmem:[#allocation2 + $0x48] sm:$0xff]
      %v2425 = vld [vmem:[#allocation2 + $0x50] sm:$0xff]
      %v2426 = vld [vmem:[#allocation2 + $0x58] sm:$0xff]
      %v2427 = vld [vmem:[#allocation2 + $0x60] sm:$0xff]
      %v2428 = vld [vmem:[#allocation2 + $0x68] sm:$0xff]
      %v2429 = vld [vmem:[#allocation2 + $0x70] sm:$0xff]
      %v2430 = vld [vmem:[#allocation2 + $0x78] sm:$0xff]
      %v2431 = vld [vmem:[#allocation2 + $0x80] sm:$0xff]
      %v2432 = vld [vmem:[#allocation2 + $0x88] sm:$0xff]
      %v2433 = vld [vmem:[#allocation2 + $0x90] sm:$0xff]
      %v2434 = vld [vmem:[#allocation2 + $0x98] sm:$0xff]
      %v2435 = vld [vmem:[#allocation2 + $0xa0] sm:$0xff]
      %v2436 = vld [vmem:[#allocation2 + $0xa8] sm:$0xff]
      %v2437 = vld [vmem:[#allocation2 + $0xb0] sm:$0xff]
      %v2438 = vld [vmem:[#allocation2 + $0xb8] sm:$0xff]
      %v2439 = vld [vmem:[#allocation2 + $0xc0] sm:$0xff]
      %v2440 = vld [vmem:[#allocation2 + $0xc8] sm:$0xff]
      %v2441 = vld [vmem:[#allocation2 + $0xd0] sm:$0xff]
      %v2442 = vld [vmem:[#allocation2 + $0xd8] sm:$0xff]
      %v2443 = vld [vmem:[#allocation2 + $0xe0] sm:$0xff]
      %v2444 = vld [vmem:[#allocation2 + $0xe8] sm:$0xff]
      %v2445 = vld [vmem:[#allocation2 + $0xf0] sm:$0xff]
      %v2446 = vld [vmem:[#allocation2 + $0xf8] sm:$0xff]
      %v2447 = vld [vmem:[#allocation2 + $0x100] sm:$0xff]
      %v2448 = vld [vmem:[#allocation2 + $0x108] sm:$0xff]
      %v2449 = vld [vmem:[#allocation2 + $0x110] sm:$0xff]
      %v2450 = vld [vmem:[#allocation2 + $0x118] sm:$0xff]
      %v2451 = vadd.f32 %v2415, %v2326
      %v2452 = vadd.f32 %v2416, %v2328
      %v2453 = vadd.f32 %v2417, %v2331
      %v2454 = vadd.f32 %v2418, %v2333
      %v2455 = vadd.f32 %v2419, %v2336
      %v2456 = vadd.f32 %v2420, %v2338
      %v2457 = vadd.f32 %v2421, %v2341
      %v2458 = vadd.f32 %v2422, %v2343
      %v2459 = vadd.f32 %v2423, %v2346
      %v2460 = vadd.f32 %v2424, %v2348
      %v2461 = vadd.f32 %v2425, %v2351
      %v2462 = vadd.f32 %v2426, %v2353
      %v2463 = vadd.f32 %v2427, %v2356
      %v2464 = vadd.f32 %v2428, %v2358
      %v2465 = vadd.f32 %v2429, %v2361
      %v2466 = vadd.f32 %v2430, %v2363
      %v2467 = vadd.f32 %v2431, %v2366
      %v2468 = vadd.f32 %v2432, %v2368
      %v2469 = vadd.f32 %v2433, %v2371
      %v2470 = vadd.f32 %v2434, %v2373
      %v2471 = vadd.f32 %v2435, %v2376
      %v2472 = vadd.f32 %v2436, %v2378
      %v2473 = vadd.f32 %v2437, %v2381
      %v2474 = vadd.f32 %v2438, %v2383
      %v2475 = vadd.f32 %v2439, %v2386
      %v2476 = vadd.f32 %v2440, %v2388
      %v2477 = vadd.f32 %v2441, %v2391
      %v2478 = vadd.f32 %v2442, %v2393
      %v2479 = vadd.f32 %v2443, %v2396
      %v2480 = vadd.f32 %v2444, %v2398
      %v2481 = vadd.f32 %v2445, %v2401
      %v2482 = vadd.f32 %v2446, %v2403
      %v2483 = vadd.f32 %v2447, %v2406
      %v2484 = vadd.f32 %v2448, %v2408
      %v2485 = vadd.f32 %v2449, %v2411
      %v2486 = vadd.f32 %v2450, %v2413
      %2487 = vst [vmem:[#allocation2] sm:$0xff] %v2451
      %2488 = vst [vmem:[#allocation2 + $0x8] sm:$0xff] %v2452
      %2489 = vst [vmem:[#allocation2 + $0x10] sm:$0xff] %v2453
      %2490 = vst [vmem:[#allocation2 + $0x18] sm:$0xff] %v2454
      %2491 = vst [vmem:[#allocation2 + $0x20] sm:$0xff] %v2455
      %2492 = vst [vmem:[#allocation2 + $0x28] sm:$0xff] %v2456
      %2493 = vst [vmem:[#allocation2 + $0x30] sm:$0xff] %v2457
      %2494 = vst [vmem:[#allocation2 + $0x38] sm:$0xff] %v2458
      %2495 = vst [vmem:[#allocation2 + $0x40] sm:$0xff] %v2459
      %2496 = vst [vmem:[#allocation2 + $0x48] sm:$0xff] %v2460
      %2497 = vst [vmem:[#allocation2 + $0x50] sm:$0xff] %v2461
      %2498 = vst [vmem:[#allocation2 + $0x58] sm:$0xff] %v2462
      %2499 = vst [vmem:[#allocation2 + $0x60] sm:$0xff] %v2463
      %2500 = vst [vmem:[#allocation2 + $0x68] sm:$0xff] %v2464
      %2501 = vst [vmem:[#allocation2 + $0x70] sm:$0xff] %v2465
      %2502 = vst [vmem:[#allocation2 + $0x78] sm:$0xff] %v2466
      %2503 = vst [vmem:[#allocation2 + $0x80] sm:$0xff] %v2467
      %2504 = vst [vmem:[#allocation2 + $0x88] sm:$0xff] %v2468
      %2505 = vst [vmem:[#allocation2 + $0x90] sm:$0xff] %v2469
      %2506 = vst [vmem:[#allocation2 + $0x98] sm:$0xff] %v2470
      %2507 = vst [vmem:[#allocation2 + $0xa0] sm:$0xff] %v2471
      %2508 = vst [vmem:[#allocation2 + $0xa8] sm:$0xff] %v2472
      %2509 = vst [vmem:[#allocation2 + $0xb0] sm:$0xff] %v2473
      %2510 = vst [vmem:[#allocation2 + $0xb8] sm:$0xff] %v2474
      %2511 = vst [vmem:[#allocation2 + $0xc0] sm:$0xff] %v2475
      %2512 = vst [vmem:[#allocation2 + $0xc8] sm:$0xff] %v2476
      %2513 = vst [vmem:[#allocation2 + $0xd0] sm:$0xff] %v2477
      %2514 = vst [vmem:[#allocation2 + $0xd8] sm:$0xff] %v2478
      %2515 = vst [vmem:[#allocation2 + $0xe0] sm:$0xff] %v2479
      %2516 = vst [vmem:[#allocation2 + $0xe8] sm:$0xff] %v2480
      %2517 = vst [vmem:[#allocation2 + $0xf0] sm:$0xff] %v2481
      %2518 = vst [vmem:[#allocation2 + $0xf8] sm:$0xff] %v2482
      %2519 = vst [vmem:[#allocation2 + $0x100] sm:$0xff] %v2483
      %2520 = vst [vmem:[#allocation2 + $0x108] sm:$0xff] %v2484
      %2521 = vst [vmem:[#allocation2 + $0x110] sm:$0xff] %v2485
      %2522 = vst [vmem:[#allocation2 + $0x118] sm:$0xff] %v2486
      %v2523 = vld [vmem:[%s206 + $0x8] sm:$0xc]
      %v2524 = vld [vmem:[%s206 + $0xc] sm:$0xf]
      %v2525 = vld [vmem:[%s206 + $0x10] sm:$0xf]
      %v2526 = vld [vmem:[%s206 + $0x14] sm:$0xf]
      %v2527 = vld [vmem:[%s206 + $0x18] sm:$0xf]
      %v2528 = vld [vmem:[%s206 + $0x1c] sm:$0xf]
      %v2529 = vld [vmem:[%s206 + $0x20] sm:$0xf]
      %v2530 = vld [vmem:[%s206 + $0x24] sm:$0xf]
      %v2531 = vld [vmem:[%s206 + $0x28] sm:$0xf]
      %v2532 = vld [vmem:[%s206 + $0x2c] sm:$0xf]
      %v2533 = vld [vmem:[%s206 + $0x30] sm:$0xf]
      %v2534 = vld [vmem:[%s206 + $0x34] sm:$0xf]
      %v2535 = vld [vmem:[%s206 + $0x38] sm:$0xf]
      %v2536 = vld [vmem:[%s206 + $0x3c] sm:$0xf]
      %v2537 = vld [vmem:[%s206 + $0x40] sm:$0xf]
      %v2538 = vld [vmem:[%s206 + $0x44] sm:$0xf]
      %v2539 = vld [vmem:[%s206 + $0x48] sm:$0xf]
      %v2540 = vld [vmem:[%s206 + $0x4c] sm:$0xf]
      %v2541 = vld [vmem:[%s206 + $0x50] sm:$0xf]
      %v2542 = vld [vmem:[%s206 + $0x54] sm:$0xf]
      %v2543 = vld [vmem:[%s206 + $0x58] sm:$0xf]
      %v2544 = vld [vmem:[%s206 + $0x5c] sm:$0xf]
      %v2545 = vld [vmem:[%s206 + $0x60] sm:$0xf]
      %v2546 = vld [vmem:[%s206 + $0x64] sm:$0xf]
      %v2547 = vld [vmem:[%s206 + $0x68] sm:$0xf]
      %v2548 = vld [vmem:[%s206 + $0x6c] sm:$0xf]
      %v2549 = vld [vmem:[%s206 + $0x70] sm:$0xf]
      %v2550 = vld [vmem:[%s206 + $0x74] sm:$0xf]
      %v2551 = vld [vmem:[%s206 + $0x78] sm:$0xf]
      %v2552 = vld [vmem:[%s206 + $0x7c] sm:$0xf]
      %v2553 = vld [vmem:[%s206 + $0x80] sm:$0xf]
      %v2554 = vld [vmem:[%s206 + $0x84] sm:$0xf]
      %v2555 = vld [vmem:[%s206 + $0x88] sm:$0xf]
      %v2556 = vld [vmem:[%s206 + $0x8c] sm:$0xf]
      %v2557 = vld [vmem:[%s206 + $0x90] sm:$0xf]
      %v2558 = vld [vmem:[%s206 + $0x94] sm:$0xf]
      %v2559 = vld [vmem:[%s206 + $0x98] sm:$0x3]
      %s2560 = scalar_lea.vmem %s210, 10
      %v2561 = vld [vmem:[%s2560] sm:$0x3]
      %v2599 = vunpack.c.l.b16 %v2523
      %v2600 = vunpack.c.l.b16 %v2524
      %v2601 = vunpack.c.l.b16 %v2525
      %v2602 = vunpack.c.l.b16 %v2526
      %v2603 = vunpack.c.l.b16 %v2527
      %v2604 = vunpack.c.l.b16 %v2528
      %v2605 = vunpack.c.l.b16 %v2529
      %v2606 = vunpack.c.l.b16 %v2530
      %v2607 = vunpack.c.l.b16 %v2531
      %v2608 = vunpack.c.l.b16 %v2532
      %v2609 = vunpack.c.l.b16 %v2533
      %v2610 = vunpack.c.l.b16 %v2534
      %v2611 = vunpack.c.l.b16 %v2535
      %v2612 = vunpack.c.l.b16 %v2536
      %v2613 = vunpack.c.l.b16 %v2537
      %v2614 = vunpack.c.l.b16 %v2538
      %v2615 = vunpack.c.l.b16 %v2539
      %v2616 = vunpack.c.l.b16 %v2540
      %v2617 = vunpack.c.l.b16 %v2541
      %v2618 = vunpack.c.l.b16 %v2542
      %v2619 = vunpack.c.l.b16 %v2543
      %v2620 = vunpack.c.l.b16 %v2544
      %v2621 = vunpack.c.l.b16 %v2545
      %v2622 = vunpack.c.l.b16 %v2546
      %v2623 = vunpack.c.l.b16 %v2547
      %v2624 = vunpack.c.l.b16 %v2548
      %v2625 = vunpack.c.l.b16 %v2549
      %v2626 = vunpack.c.l.b16 %v2550
      %v2627 = vunpack.c.l.b16 %v2551
      %v2628 = vunpack.c.l.b16 %v2552
      %v2629 = vunpack.c.l.b16 %v2553
      %v2630 = vunpack.c.l.b16 %v2554
      %v2631 = vunpack.c.l.b16 %v2555
      %v2632 = vunpack.c.l.b16 %v2556
      %v2633 = vunpack.c.l.b16 %v2557
      %v2634 = vunpack.c.l.b16 %v2558
      %v2635 = vunpack.c.l.b16 %v2559
      %v2636 = vpack.c.b16 %v2600, %v2599
      %v2637 = vpack.c.b16 %v2602, %v2601
      %v2638 = vpack.c.b16 %v2604, %v2603
      %v2639 = vpack.c.b16 %v2606, %v2605
      %v2640 = vpack.c.b16 %v2608, %v2607
      %v2641 = vpack.c.b16 %v2610, %v2609
      %v2642 = vpack.c.b16 %v2612, %v2611
      %v2643 = vpack.c.b16 %v2614, %v2613
      %v2644 = vpack.c.b16 %v2616, %v2615
      %v2645 = vpack.c.b16 %v2618, %v2617
      %v2646 = vpack.c.b16 %v2620, %v2619
      %v2647 = vpack.c.b16 %v2622, %v2621
      %v2648 = vpack.c.b16 %v2624, %v2623
      %v2649 = vpack.c.b16 %v2626, %v2625
      %v2650 = vpack.c.b16 %v2628, %v2627
      %v2651 = vpack.c.b16 %v2630, %v2629
      %v2652 = vpack.c.b16 %v2632, %v2631
      %v2653 = vpack.c.b16 %v2634, %v2633
      %v2654 = vpack.c.b16 %v2635, %v2635
      %vm2655 = vcmask 1045504
      %v2656 = vrot.slane %v2636, 2
      %v2657 = vrot.slane %v2637, 2
      %v2658 = vsel %vm2655, %v2656, %v2657
      %v2659 = vrot.slane %v2638, 2
      %v2660 = vsel %vm2655, %v2657, %v2659
      %v2661 = vrot.slane %v2639, 2
      %v2662 = vsel %vm2655, %v2659, %v2661
      %v2663 = vrot.slane %v2640, 2
      %v2664 = vsel %vm2655, %v2661, %v2663
      %v2665 = vrot.slane %v2641, 2
      %v2666 = vsel %vm2655, %v2663, %v2665
      %v2667 = vrot.slane %v2642, 2
      %v2668 = vsel %vm2655, %v2665, %v2667
      %v2669 = vrot.slane %v2643, 2
      %v2670 = vsel %vm2655, %v2667, %v2669
      %v2671 = vrot.slane %v2644, 2
      %v2672 = vsel %vm2655, %v2669, %v2671
      %v2673 = vrot.slane %v2645, 2
      %v2674 = vsel %vm2655, %v2671, %v2673
      %v2675 = vrot.slane %v2646, 2
      %v2676 = vsel %vm2655, %v2673, %v2675
      %v2677 = vrot.slane %v2647, 2
      %v2678 = vsel %vm2655, %v2675, %v2677
      %v2679 = vrot.slane %v2648, 2
      %v2680 = vsel %vm2655, %v2677, %v2679
      %v2681 = vrot.slane %v2649, 2
      %v2682 = vsel %vm2655, %v2679, %v2681
      %v2683 = vrot.slane %v2650, 2
      %v2684 = vsel %vm2655, %v2681, %v2683
      %v2685 = vrot.slane %v2651, 2
      %v2686 = vsel %vm2655, %v2683, %v2685
      %v2687 = vrot.slane %v2652, 2
      %v2688 = vsel %vm2655, %v2685, %v2687
      %v2689 = vrot.slane %v2653, 2
      %v2690 = vsel %vm2655, %v2687, %v2689
      %v2691 = vrot.slane %v2654, 2
      %v2692 = vsel %vm2655, %v2689, %v2691
      %v2694 = vsel %vm350, %v2658, 0
      %v2697 = vsel %vm350, %v2660, 0
      %v2700 = vsel %vm350, %v2662, 0
      %v2703 = vsel %vm350, %v2664, 0
      %v2706 = vsel %vm350, %v2666, 0
      %v2709 = vsel %vm350, %v2668, 0
      %v2712 = vsel %vm350, %v2670, 0
      %v2715 = vsel %vm350, %v2672, 0
      %v2718 = vsel %vm350, %v2674, 0
      %v2721 = vsel %vm350, %v2676, 0
      %v2724 = vsel %vm350, %v2678, 0
      %v2727 = vsel %vm350, %v2680, 0
      %v2730 = vsel %vm350, %v2682, 0
      %v2733 = vsel %vm350, %v2684, 0
      %v2736 = vsel %vm350, %v2686, 0
      %v2739 = vsel %vm350, %v2688, 0
      %v2742 = vsel %vm350, %v2690, 0
      %v2745 = vsel %vm350, %v2692, 0
      %v2748 = vsel %vm405, %v2561, 0
      %2750 = vmatpush.bf16.msra.mxu0 0
      %2751 = vmatpush.bf16.msra.mxu0 0
      %2752 = vmatpush.bf16.msra.mxu0 0
      %2753 = vmatpush.bf16.msra.mxu0 0
      %2754 = vmatpush.bf16.msra.mxu0 0
      %2755 = vmatpush.bf16.msra.mxu0 0
      %2756 = vmatpush.bf16.msra.mxu0 0
      %2757 = vmatpush.bf16.msra.mxu0 %v2748
      %2758 = vmatmul.bf16.gmra.mxu0 %v2694
      %v2759 = vpop.f32.mrf.mxu0
      %v2760 = vadd.f32 0.0, %v2759
      %v2761 = vpop.f32.mrf.mxu0
      %v2762 = vadd.f32 0.0, %v2761
      %2763 = vmatmul.bf16.gmra.mxu0 %v2697
      %v2764 = vpop.f32.mrf.mxu0
      %v2765 = vadd.f32 0.0, %v2764
      %v2766 = vpop.f32.mrf.mxu0
      %v2767 = vadd.f32 0.0, %v2766
      %2768 = vmatmul.bf16.gmra.mxu0 %v2700
      %v2769 = vpop.f32.mrf.mxu0
      %v2770 = vadd.f32 0.0, %v2769
      %v2771 = vpop.f32.mrf.mxu0
      %v2772 = vadd.f32 0.0, %v2771
      %2773 = vmatmul.bf16.gmra.mxu0 %v2703
      %v2774 = vpop.f32.mrf.mxu0
      %v2775 = vadd.f32 0.0, %v2774
      %v2776 = vpop.f32.mrf.mxu0
      %v2777 = vadd.f32 0.0, %v2776
      %2778 = vmatmul.bf16.gmra.mxu0 %v2706
      %v2779 = vpop.f32.mrf.mxu0
      %v2780 = vadd.f32 0.0, %v2779
      %v2781 = vpop.f32.mrf.mxu0
      %v2782 = vadd.f32 0.0, %v2781
      %2783 = vmatmul.bf16.gmra.mxu0 %v2709
      %v2784 = vpop.f32.mrf.mxu0
      %v2785 = vadd.f32 0.0, %v2784
      %v2786 = vpop.f32.mrf.mxu0
      %v2787 = vadd.f32 0.0, %v2786
      %2788 = vmatmul.bf16.gmra.mxu0 %v2712
      %v2789 = vpop.f32.mrf.mxu0
      %v2790 = vadd.f32 0.0, %v2789
      %v2791 = vpop.f32.mrf.mxu0
      %v2792 = vadd.f32 0.0, %v2791
      %2793 = vmatmul.bf16.gmra.mxu0 %v2715
      %v2794 = vpop.f32.mrf.mxu0
      %v2795 = vadd.f32 0.0, %v2794
      %v2796 = vpop.f32.mrf.mxu0
      %v2797 = vadd.f32 0.0, %v2796
      %2798 = vmatmul.bf16.gmra.mxu0 %v2718
      %v2799 = vpop.f32.mrf.mxu0
      %v2800 = vadd.f32 0.0, %v2799
      %v2801 = vpop.f32.mrf.mxu0
      %v2802 = vadd.f32 0.0, %v2801
      %2803 = vmatmul.bf16.gmra.mxu0 %v2721
      %v2804 = vpop.f32.mrf.mxu0
      %v2805 = vadd.f32 0.0, %v2804
      %v2806 = vpop.f32.mrf.mxu0
      %v2807 = vadd.f32 0.0, %v2806
      %2808 = vmatmul.bf16.gmra.mxu0 %v2724
      %v2809 = vpop.f32.mrf.mxu0
      %v2810 = vadd.f32 0.0, %v2809
      %v2811 = vpop.f32.mrf.mxu0
      %v2812 = vadd.f32 0.0, %v2811
      %2813 = vmatmul.bf16.gmra.mxu0 %v2727
      %v2814 = vpop.f32.mrf.mxu0
      %v2815 = vadd.f32 0.0, %v2814
      %v2816 = vpop.f32.mrf.mxu0
      %v2817 = vadd.f32 0.0, %v2816
      %2818 = vmatmul.bf16.gmra.mxu0 %v2730
      %v2819 = vpop.f32.mrf.mxu0
      %v2820 = vadd.f32 0.0, %v2819
      %v2821 = vpop.f32.mrf.mxu0
      %v2822 = vadd.f32 0.0, %v2821
      %2823 = vmatmul.bf16.gmra.mxu0 %v2733
      %v2824 = vpop.f32.mrf.mxu0
      %v2825 = vadd.f32 0.0, %v2824
      %v2826 = vpop.f32.mrf.mxu0
      %v2827 = vadd.f32 0.0, %v2826
      %2828 = vmatmul.bf16.gmra.mxu0 %v2736
      %v2829 = vpop.f32.mrf.mxu0
      %v2830 = vadd.f32 0.0, %v2829
      %v2831 = vpop.f32.mrf.mxu0
      %v2832 = vadd.f32 0.0, %v2831
      %2833 = vmatmul.bf16.gmra.mxu0 %v2739
      %v2834 = vpop.f32.mrf.mxu0
      %v2835 = vadd.f32 0.0, %v2834
      %v2836 = vpop.f32.mrf.mxu0
      %v2837 = vadd.f32 0.0, %v2836
      %2838 = vmatmul.bf16.gmra.mxu0 %v2742
      %v2839 = vpop.f32.mrf.mxu0
      %v2840 = vadd.f32 0.0, %v2839
      %v2841 = vpop.f32.mrf.mxu0
      %v2842 = vadd.f32 0.0, %v2841
      %2843 = vmatmul.bf16.gmra.mxu0 %v2745
      %v2844 = vpop.f32.mrf.mxu0
      %v2845 = vadd.f32 0.0, %v2844
      %v2846 = vpop.f32.mrf.mxu0
      %v2847 = vadd.f32 0.0, %v2846
      %2848 = vdwg.mxu0
      %v2849 = vld [vmem:[#allocation2] sm:$0xff]
      %v2850 = vld [vmem:[#allocation2 + $0x8] sm:$0xff]
      %v2851 = vld [vmem:[#allocation2 + $0x10] sm:$0xff]
      %v2852 = vld [vmem:[#allocation2 + $0x18] sm:$0xff]
      %v2853 = vld [vmem:[#allocation2 + $0x20] sm:$0xff]
      %v2854 = vld [vmem:[#allocation2 + $0x28] sm:$0xff]
      %v2855 = vld [vmem:[#allocation2 + $0x30] sm:$0xff]
      %v2856 = vld [vmem:[#allocation2 + $0x38] sm:$0xff]
      %v2857 = vld [vmem:[#allocation2 + $0x40] sm:$0xff]
      %v2858 = vld [vmem:[#allocation2 + $0x48] sm:$0xff]
      %v2859 = vld [vmem:[#allocation2 + $0x50] sm:$0xff]
      %v2860 = vld [vmem:[#allocation2 + $0x58] sm:$0xff]
      %v2861 = vld [vmem:[#allocation2 + $0x60] sm:$0xff]
      %v2862 = vld [vmem:[#allocation2 + $0x68] sm:$0xff]
      %v2863 = vld [vmem:[#allocation2 + $0x70] sm:$0xff]
      %v2864 = vld [vmem:[#allocation2 + $0x78] sm:$0xff]
      %v2865 = vld [vmem:[#allocation2 + $0x80] sm:$0xff]
      %v2866 = vld [vmem:[#allocation2 + $0x88] sm:$0xff]
      %v2867 = vld [vmem:[#allocation2 + $0x90] sm:$0xff]
      %v2868 = vld [vmem:[#allocation2 + $0x98] sm:$0xff]
      %v2869 = vld [vmem:[#allocation2 + $0xa0] sm:$0xff]
      %v2870 = vld [vmem:[#allocation2 + $0xa8] sm:$0xff]
      %v2871 = vld [vmem:[#allocation2 + $0xb0] sm:$0xff]
      %v2872 = vld [vmem:[#allocation2 + $0xb8] sm:$0xff]
      %v2873 = vld [vmem:[#allocation2 + $0xc0] sm:$0xff]
      %v2874 = vld [vmem:[#allocation2 + $0xc8] sm:$0xff]
      %v2875 = vld [vmem:[#allocation2 + $0xd0] sm:$0xff]
      %v2876 = vld [vmem:[#allocation2 + $0xd8] sm:$0xff]
      %v2877 = vld [vmem:[#allocation2 + $0xe0] sm:$0xff]
      %v2878 = vld [vmem:[#allocation2 + $0xe8] sm:$0xff]
      %v2879 = vld [vmem:[#allocation2 + $0xf0] sm:$0xff]
      %v2880 = vld [vmem:[#allocation2 + $0xf8] sm:$0xff]
      %v2881 = vld [vmem:[#allocation2 + $0x100] sm:$0xff]
      %v2882 = vld [vmem:[#allocation2 + $0x108] sm:$0xff]
      %v2883 = vld [vmem:[#allocation2 + $0x110] sm:$0xff]
      %v2884 = vld [vmem:[#allocation2 + $0x118] sm:$0xff]
      %v2885 = vadd.f32 %v2849, %v2760
      %v2886 = vadd.f32 %v2850, %v2762
      %v2887 = vadd.f32 %v2851, %v2765
      %v2888 = vadd.f32 %v2852, %v2767
      %v2889 = vadd.f32 %v2853, %v2770
      %v2890 = vadd.f32 %v2854, %v2772
      %v2891 = vadd.f32 %v2855, %v2775
      %v2892 = vadd.f32 %v2856, %v2777
      %v2893 = vadd.f32 %v2857, %v2780
      %v2894 = vadd.f32 %v2858, %v2782
      %v2895 = vadd.f32 %v2859, %v2785
      %v2896 = vadd.f32 %v2860, %v2787
      %v2897 = vadd.f32 %v2861, %v2790
      %v2898 = vadd.f32 %v2862, %v2792
      %v2899 = vadd.f32 %v2863, %v2795
      %v2900 = vadd.f32 %v2864, %v2797
      %v2901 = vadd.f32 %v2865, %v2800
      %v2902 = vadd.f32 %v2866, %v2802
      %v2903 = vadd.f32 %v2867, %v2805
      %v2904 = vadd.f32 %v2868, %v2807
      %v2905 = vadd.f32 %v2869, %v2810
      %v2906 = vadd.f32 %v2870, %v2812
      %v2907 = vadd.f32 %v2871, %v2815
      %v2908 = vadd.f32 %v2872, %v2817
      %v2909 = vadd.f32 %v2873, %v2820
      %v2910 = vadd.f32 %v2874, %v2822
      %v2911 = vadd.f32 %v2875, %v2825
      %v2912 = vadd.f32 %v2876, %v2827
      %v2913 = vadd.f32 %v2877, %v2830
      %v2914 = vadd.f32 %v2878, %v2832
      %v2915 = vadd.f32 %v2879, %v2835
      %v2916 = vadd.f32 %v2880, %v2837
      %v2917 = vadd.f32 %v2881, %v2840
      %v2918 = vadd.f32 %v2882, %v2842
      %v2919 = vadd.f32 %v2883, %v2845
      %v2920 = vadd.f32 %v2884, %v2847
      %2921 = vst [vmem:[#allocation2] sm:$0xff] %v2885
      %2922 = vst [vmem:[#allocation2 + $0x8] sm:$0xff] %v2886
      %2923 = vst [vmem:[#allocation2 + $0x10] sm:$0xff] %v2887
      %2924 = vst [vmem:[#allocation2 + $0x18] sm:$0xff] %v2888
      %2925 = vst [vmem:[#allocation2 + $0x20] sm:$0xff] %v2889
      %2926 = vst [vmem:[#allocation2 + $0x28] sm:$0xff] %v2890
      %2927 = vst [vmem:[#allocation2 + $0x30] sm:$0xff] %v2891
      %2928 = vst [vmem:[#allocation2 + $0x38] sm:$0xff] %v2892
      %2929 = vst [vmem:[#allocation2 + $0x40] sm:$0xff] %v2893
      %2930 = vst [vmem:[#allocation2 + $0x48] sm:$0xff] %v2894
      %2931 = vst [vmem:[#allocation2 + $0x50] sm:$0xff] %v2895
      %2932 = vst [vmem:[#allocation2 + $0x58] sm:$0xff] %v2896
      %2933 = vst [vmem:[#allocation2 + $0x60] sm:$0xff] %v2897
      %2934 = vst [vmem:[#allocation2 + $0x68] sm:$0xff] %v2898
      %2935 = vst [vmem:[#allocation2 + $0x70] sm:$0xff] %v2899
      %2936 = vst [vmem:[#allocation2 + $0x78] sm:$0xff] %v2900
      %2937 = vst [vmem:[#allocation2 + $0x80] sm:$0xff] %v2901
      %2938 = vst [vmem:[#allocation2 + $0x88] sm:$0xff] %v2902
      %2939 = vst [vmem:[#allocation2 + $0x90] sm:$0xff] %v2903
      %2940 = vst [vmem:[#allocation2 + $0x98] sm:$0xff] %v2904
      %2941 = vst [vmem:[#allocation2 + $0xa0] sm:$0xff] %v2905
      %2942 = vst [vmem:[#allocation2 + $0xa8] sm:$0xff] %v2906
      %2943 = vst [vmem:[#allocation2 + $0xb0] sm:$0xff] %v2907
      %2944 = vst [vmem:[#allocation2 + $0xb8] sm:$0xff] %v2908
      %2945 = vst [vmem:[#allocation2 + $0xc0] sm:$0xff] %v2909
      %2946 = vst [vmem:[#allocation2 + $0xc8] sm:$0xff] %v2910
      %2947 = vst [vmem:[#allocation2 + $0xd0] sm:$0xff] %v2911
      %2948 = vst [vmem:[#allocation2 + $0xd8] sm:$0xff] %v2912
      %2949 = vst [vmem:[#allocation2 + $0xe0] sm:$0xff] %v2913
      %2950 = vst [vmem:[#allocation2 + $0xe8] sm:$0xff] %v2914
      %2951 = vst [vmem:[#allocation2 + $0xf0] sm:$0xff] %v2915
      %2952 = vst [vmem:[#allocation2 + $0xf8] sm:$0xff] %v2916
      %2953 = vst [vmem:[#allocation2 + $0x100] sm:$0xff] %v2917
      %2954 = vst [vmem:[#allocation2 + $0x108] sm:$0xff] %v2918
      %2955 = vst [vmem:[#allocation2 + $0x110] sm:$0xff] %v2919
      %2956 = vst [vmem:[#allocation2 + $0x118] sm:$0xff] %v2920
      %v2957 = vld [vmem:[%s206 + $0x10] sm:$0xc]
      %v2958 = vld [vmem:[%s206 + $0x14] sm:$0xf]
      %v2959 = vld [vmem:[%s206 + $0x18] sm:$0xf]
      %v2960 = vld [vmem:[%s206 + $0x1c] sm:$0xf]
      %v2961 = vld [vmem:[%s206 + $0x20] sm:$0xf]
      %v2962 = vld [vmem:[%s206 + $0x24] sm:$0xf]
      %v2963 = vld [vmem:[%s206 + $0x28] sm:$0xf]
      %v2964 = vld [vmem:[%s206 + $0x2c] sm:$0xf]
      %v2965 = vld [vmem:[%s206 + $0x30] sm:$0xf]
      %v2966 = vld [vmem:[%s206 + $0x34] sm:$0xf]
      %v2967 = vld [vmem:[%s206 + $0x38] sm:$0xf]
      %v2968 = vld [vmem:[%s206 + $0x3c] sm:$0xf]
      %v2969 = vld [vmem:[%s206 + $0x40] sm:$0xf]
      %v2970 = vld [vmem:[%s206 + $0x44] sm:$0xf]
      %v2971 = vld [vmem:[%s206 + $0x48] sm:$0xf]
      %v2972 = vld [vmem:[%s206 + $0x4c] sm:$0xf]
      %v2973 = vld [vmem:[%s206 + $0x50] sm:$0xf]
      %v2974 = vld [vmem:[%s206 + $0x54] sm:$0xf]
      %v2975 = vld [vmem:[%s206 + $0x58] sm:$0xf]
      %v2976 = vld [vmem:[%s206 + $0x5c] sm:$0xf]
      %v2977 = vld [vmem:[%s206 + $0x60] sm:$0xf]
      %v2978 = vld [vmem:[%s206 + $0x64] sm:$0xf]
      %v2979 = vld [vmem:[%s206 + $0x68] sm:$0xf]
      %v2980 = vld [vmem:[%s206 + $0x6c] sm:$0xf]
      %v2981 = vld [vmem:[%s206 + $0x70] sm:$0xf]
      %v2982 = vld [vmem:[%s206 + $0x74] sm:$0xf]
      %v2983 = vld [vmem:[%s206 + $0x78] sm:$0xf]
      %v2984 = vld [vmem:[%s206 + $0x7c] sm:$0xf]
      %v2985 = vld [vmem:[%s206 + $0x80] sm:$0xf]
      %v2986 = vld [vmem:[%s206 + $0x84] sm:$0xf]
      %v2987 = vld [vmem:[%s206 + $0x88] sm:$0xf]
      %v2988 = vld [vmem:[%s206 + $0x8c] sm:$0xf]
      %v2989 = vld [vmem:[%s206 + $0x90] sm:$0xf]
      %v2990 = vld [vmem:[%s206 + $0x94] sm:$0xf]
      %v2991 = vld [vmem:[%s206 + $0x98] sm:$0xf]
      %v2992 = vld [vmem:[%s206 + $0x9c] sm:$0xf]
      %v2993 = vld [vmem:[%s206 + $0xa0] sm:$0x3]
      %s2994 = scalar_lea.vmem %s210, 12
      %v2995 = vld [vmem:[%s2994] sm:$0x3]
      %v3033 = vunpack.c.l.b16 %v2957
      %v3034 = vunpack.c.l.b16 %v2958
      %v3035 = vunpack.c.l.b16 %v2959
      %v3036 = vunpack.c.l.b16 %v2960
      %v3037 = vunpack.c.l.b16 %v2961
      %v3038 = vunpack.c.l.b16 %v2962
      %v3039 = vunpack.c.l.b16 %v2963
      %v3040 = vunpack.c.l.b16 %v2964
      %v3041 = vunpack.c.l.b16 %v2965
      %v3042 = vunpack.c.l.b16 %v2966
      %v3043 = vunpack.c.l.b16 %v2967
      %v3044 = vunpack.c.l.b16 %v2968
      %v3045 = vunpack.c.l.b16 %v2969
      %v3046 = vunpack.c.l.b16 %v2970
      %v3047 = vunpack.c.l.b16 %v2971
      %v3048 = vunpack.c.l.b16 %v2972
      %v3049 = vunpack.c.l.b16 %v2973
      %v3050 = vunpack.c.l.b16 %v2974
      %v3051 = vunpack.c.l.b16 %v2975
      %v3052 = vunpack.c.l.b16 %v2976
      %v3053 = vunpack.c.l.b16 %v2977
      %v3054 = vunpack.c.l.b16 %v2978
      %v3055 = vunpack.c.l.b16 %v2979
      %v3056 = vunpack.c.l.b16 %v2980
      %v3057 = vunpack.c.l.b16 %v2981
      %v3058 = vunpack.c.l.b16 %v2982
      %v3059 = vunpack.c.l.b16 %v2983
      %v3060 = vunpack.c.l.b16 %v2984
      %v3061 = vunpack.c.l.b16 %v2985
      %v3062 = vunpack.c.l.b16 %v2986
      %v3063 = vunpack.c.l.b16 %v2987
      %v3064 = vunpack.c.l.b16 %v2988
      %v3065 = vunpack.c.l.b16 %v2989
      %v3066 = vunpack.c.l.b16 %v2990
      %v3067 = vunpack.c.l.b16 %v2991
      %v3068 = vunpack.c.l.b16 %v2992
      %v3069 = vunpack.c.l.b16 %v2993
      %v3070 = vpack.c.b16 %v3034, %v3033
      %v3071 = vpack.c.b16 %v3036, %v3035
      %v3072 = vpack.c.b16 %v3038, %v3037
      %v3073 = vpack.c.b16 %v3040, %v3039
      %v3074 = vpack.c.b16 %v3042, %v3041
      %v3075 = vpack.c.b16 %v3044, %v3043
      %v3076 = vpack.c.b16 %v3046, %v3045
      %v3077 = vpack.c.b16 %v3048, %v3047
      %v3078 = vpack.c.b16 %v3050, %v3049
      %v3079 = vpack.c.b16 %v3052, %v3051
      %v3080 = vpack.c.b16 %v3054, %v3053
      %v3081 = vpack.c.b16 %v3056, %v3055
      %v3082 = vpack.c.b16 %v3058, %v3057
      %v3083 = vpack.c.b16 %v3060, %v3059
      %v3084 = vpack.c.b16 %v3062, %v3061
      %v3085 = vpack.c.b16 %v3064, %v3063
      %v3086 = vpack.c.b16 %v3066, %v3065
      %v3087 = vpack.c.b16 %v3068, %v3067
      %v3088 = vpack.c.b16 %v3069, %v3069
      %v3089 = vrot.slane %v3070, 2
      %v3090 = vrot.slane %v3071, 2
      %v3091 = vsel %vm2655, %v3089, %v3090
      %v3092 = vrot.slane %v3072, 2
      %v3093 = vsel %vm2655, %v3090, %v3092
      %v3094 = vrot.slane %v3073, 2
      %v3095 = vsel %vm2655, %v3092, %v3094
      %v3096 = vrot.slane %v3074, 2
      %v3097 = vsel %vm2655, %v3094, %v3096
      %v3098 = vrot.slane %v3075, 2
      %v3099 = vsel %vm2655, %v3096, %v3098
      %v3100 = vrot.slane %v3076, 2
      %v3101 = vsel %vm2655, %v3098, %v3100
      %v3102 = vrot.slane %v3077, 2
      %v3103 = vsel %vm2655, %v3100, %v3102
      %v3104 = vrot.slane %v3078, 2
      %v3105 = vsel %vm2655, %v3102, %v3104
      %v3106 = vrot.slane %v3079, 2
      %v3107 = vsel %vm2655, %v3104, %v3106
      %v3108 = vrot.slane %v3080, 2
      %v3109 = vsel %vm2655, %v3106, %v3108
      %v3110 = vrot.slane %v3081, 2
      %v3111 = vsel %vm2655, %v3108, %v3110
      %v3112 = vrot.slane %v3082, 2
      %v3113 = vsel %vm2655, %v3110, %v3112
      %v3114 = vrot.slane %v3083, 2
      %v3115 = vsel %vm2655, %v3112, %v3114
      %v3116 = vrot.slane %v3084, 2
      %v3117 = vsel %vm2655, %v3114, %v3116
      %v3118 = vrot.slane %v3085, 2
      %v3119 = vsel %vm2655, %v3116, %v3118
      %v3120 = vrot.slane %v3086, 2
      %v3121 = vsel %vm2655, %v3118, %v3120
      %v3122 = vrot.slane %v3087, 2
      %v3123 = vsel %vm2655, %v3120, %v3122
      %v3124 = vrot.slane %v3088, 2
      %v3125 = vsel %vm2655, %v3122, %v3124
      %v3127 = vsel %vm350, %v3091, 0
      %v3130 = vsel %vm350, %v3093, 0
      %v3133 = vsel %vm350, %v3095, 0
      %v3136 = vsel %vm350, %v3097, 0
      %v3139 = vsel %vm350, %v3099, 0
      %v3142 = vsel %vm350, %v3101, 0
      %v3145 = vsel %vm350, %v3103, 0
      %v3148 = vsel %vm350, %v3105, 0
      %v3151 = vsel %vm350, %v3107, 0
      %v3154 = vsel %vm350, %v3109, 0
      %v3157 = vsel %vm350, %v3111, 0
      %v3160 = vsel %vm350, %v3113, 0
      %v3163 = vsel %vm350, %v3115, 0
      %v3166 = vsel %vm350, %v3117, 0
      %v3169 = vsel %vm350, %v3119, 0
      %v3172 = vsel %vm350, %v3121, 0
      %v3175 = vsel %vm350, %v3123, 0
      %v3178 = vsel %vm350, %v3125, 0
      %v3181 = vsel %vm405, %v2995, 0
      %3183 = vmatpush.bf16.msra.mxu0 0
      %3184 = vmatpush.bf16.msra.mxu0 0
      %3185 = vmatpush.bf16.msra.mxu0 0
      %3186 = vmatpush.bf16.msra.mxu0 0
      %3187 = vmatpush.bf16.msra.mxu0 0
      %3188 = vmatpush.bf16.msra.mxu0 0
      %3189 = vmatpush.bf16.msra.mxu0 0
      %3190 = vmatpush.bf16.msra.mxu0 %v3181
      %3191 = vmatmul.bf16.gmra.mxu0 %v3127
      %v3192 = vpop.f32.mrf.mxu0
      %v3193 = vadd.f32 0.0, %v3192
      %v3194 = vpop.f32.mrf.mxu0
      %v3195 = vadd.f32 0.0, %v3194
      %3196 = vmatmul.bf16.gmra.mxu0 %v3130
      %v3197 = vpop.f32.mrf.mxu0
      %v3198 = vadd.f32 0.0, %v3197
      %v3199 = vpop.f32.mrf.mxu0
      %v3200 = vadd.f32 0.0, %v3199
      %3201 = vmatmul.bf16.gmra.mxu0 %v3133
      %v3202 = vpop.f32.mrf.mxu0
      %v3203 = vadd.f32 0.0, %v3202
      %v3204 = vpop.f32.mrf.mxu0
      %v3205 = vadd.f32 0.0, %v3204
      %3206 = vmatmul.bf16.gmra.mxu0 %v3136
      %v3207 = vpop.f32.mrf.mxu0
      %v3208 = vadd.f32 0.0, %v3207
      %v3209 = vpop.f32.mrf.mxu0
      %v3210 = vadd.f32 0.0, %v3209
      %3211 = vmatmul.bf16.gmra.mxu0 %v3139
      %v3212 = vpop.f32.mrf.mxu0
      %v3213 = vadd.f32 0.0, %v3212
      %v3214 = vpop.f32.mrf.mxu0
      %v3215 = vadd.f32 0.0, %v3214
      %3216 = vmatmul.bf16.gmra.mxu0 %v3142
      %v3217 = vpop.f32.mrf.mxu0
      %v3218 = vadd.f32 0.0, %v3217
      %v3219 = vpop.f32.mrf.mxu0
      %v3220 = vadd.f32 0.0, %v3219
      %3221 = vmatmul.bf16.gmra.mxu0 %v3145
      %v3222 = vpop.f32.mrf.mxu0
      %v3223 = vadd.f32 0.0, %v3222
      %v3224 = vpop.f32.mrf.mxu0
      %v3225 = vadd.f32 0.0, %v3224
      %3226 = vmatmul.bf16.gmra.mxu0 %v3148
      %v3227 = vpop.f32.mrf.mxu0
      %v3228 = vadd.f32 0.0, %v3227
      %v3229 = vpop.f32.mrf.mxu0
      %v3230 = vadd.f32 0.0, %v3229
      %3231 = vmatmul.bf16.gmra.mxu0 %v3151
      %v3232 = vpop.f32.mrf.mxu0
      %v3233 = vadd.f32 0.0, %v3232
      %v3234 = vpop.f32.mrf.mxu0
      %v3235 = vadd.f32 0.0, %v3234
      %3236 = vmatmul.bf16.gmra.mxu0 %v3154
      %v3237 = vpop.f32.mrf.mxu0
      %v3238 = vadd.f32 0.0, %v3237
      %v3239 = vpop.f32.mrf.mxu0
      %v3240 = vadd.f32 0.0, %v3239
      %3241 = vmatmul.bf16.gmra.mxu0 %v3157
      %v3242 = vpop.f32.mrf.mxu0
      %v3243 = vadd.f32 0.0, %v3242
      %v3244 = vpop.f32.mrf.mxu0
      %v3245 = vadd.f32 0.0, %v3244
      %3246 = vmatmul.bf16.gmra.mxu0 %v3160
      %v3247 = vpop.f32.mrf.mxu0
      %v3248 = vadd.f32 0.0, %v3247
      %v3249 = vpop.f32.mrf.mxu0
      %v3250 = vadd.f32 0.0, %v3249
      %3251 = vmatmul.bf16.gmra.mxu0 %v3163
      %v3252 = vpop.f32.mrf.mxu0
      %v3253 = vadd.f32 0.0, %v3252
      %v3254 = vpop.f32.mrf.mxu0
      %v3255 = vadd.f32 0.0, %v3254
      %3256 = vmatmul.bf16.gmra.mxu0 %v3166
      %v3257 = vpop.f32.mrf.mxu0
      %v3258 = vadd.f32 0.0, %v3257
      %v3259 = vpop.f32.mrf.mxu0
      %v3260 = vadd.f32 0.0, %v3259
      %3261 = vmatmul.bf16.gmra.mxu0 %v3169
      %v3262 = vpop.f32.mrf.mxu0
      %v3263 = vadd.f32 0.0, %v3262
      %v3264 = vpop.f32.mrf.mxu0
      %v3265 = vadd.f32 0.0, %v3264
      %3266 = vmatmul.bf16.gmra.mxu0 %v3172
      %v3267 = vpop.f32.mrf.mxu0
      %v3268 = vadd.f32 0.0, %v3267
      %v3269 = vpop.f32.mrf.mxu0
      %v3270 = vadd.f32 0.0, %v3269
      %3271 = vmatmul.bf16.gmra.mxu0 %v3175
      %v3272 = vpop.f32.mrf.mxu0
      %v3273 = vadd.f32 0.0, %v3272
      %v3274 = vpop.f32.mrf.mxu0
      %v3275 = vadd.f32 0.0, %v3274
      %3276 = vmatmul.bf16.gmra.mxu0 %v3178
      %v3277 = vpop.f32.mrf.mxu0
      %v3278 = vadd.f32 0.0, %v3277
      %v3279 = vpop.f32.mrf.mxu0
      %v3280 = vadd.f32 0.0, %v3279
      %3281 = vdwg.mxu0
      %v3282 = vld [vmem:[#allocation2] sm:$0xff]
      %v3283 = vld [vmem:[#allocation2 + $0x8] sm:$0xff]
      %v3284 = vld [vmem:[#allocation2 + $0x10] sm:$0xff]
      %v3285 = vld [vmem:[#allocation2 + $0x18] sm:$0xff]
      %v3286 = vld [vmem:[#allocation2 + $0x20] sm:$0xff]
      %v3287 = vld [vmem:[#allocation2 + $0x28] sm:$0xff]
      %v3288 = vld [vmem:[#allocation2 + $0x30] sm:$0xff]
      %v3289 = vld [vmem:[#allocation2 + $0x38] sm:$0xff]
      %v3290 = vld [vmem:[#allocation2 + $0x40] sm:$0xff]
      %v3291 = vld [vmem:[#allocation2 + $0x48] sm:$0xff]
      %v3292 = vld [vmem:[#allocation2 + $0x50] sm:$0xff]
      %v3293 = vld [vmem:[#allocation2 + $0x58] sm:$0xff]
      %v3294 = vld [vmem:[#allocation2 + $0x60] sm:$0xff]
      %v3295 = vld [vmem:[#allocation2 + $0x68] sm:$0xff]
      %v3296 = vld [vmem:[#allocation2 + $0x70] sm:$0xff]
      %v3297 = vld [vmem:[#allocation2 + $0x78] sm:$0xff]
      %v3298 = vld [vmem:[#allocation2 + $0x80] sm:$0xff]
      %v3299 = vld [vmem:[#allocation2 + $0x88] sm:$0xff]
      %v3300 = vld [vmem:[#allocation2 + $0x90] sm:$0xff]
      %v3301 = vld [vmem:[#allocation2 + $0x98] sm:$0xff]
      %v3302 = vld [vmem:[#allocation2 + $0xa0] sm:$0xff]
      %v3303 = vld [vmem:[#allocation2 + $0xa8] sm:$0xff]
      %v3304 = vld [vmem:[#allocation2 + $0xb0] sm:$0xff]
      %v3305 = vld [vmem:[#allocation2 + $0xb8] sm:$0xff]
      %v3306 = vld [vmem:[#allocation2 + $0xc0] sm:$0xff]
      %v3307 = vld [vmem:[#allocation2 + $0xc8] sm:$0xff]
      %v3308 = vld [vmem:[#allocation2 + $0xd0] sm:$0xff]
      %v3309 = vld [vmem:[#allocation2 + $0xd8] sm:$0xff]
      %v3310 = vld [vmem:[#allocation2 + $0xe0] sm:$0xff]
      %v3311 = vld [vmem:[#allocation2 + $0xe8] sm:$0xff]
      %v3312 = vld [vmem:[#allocation2 + $0xf0] sm:$0xff]
      %v3313 = vld [vmem:[#allocation2 + $0xf8] sm:$0xff]
      %v3314 = vld [vmem:[#allocation2 + $0x100] sm:$0xff]
      %v3315 = vld [vmem:[#allocation2 + $0x108] sm:$0xff]
      %v3316 = vld [vmem:[#allocation2 + $0x110] sm:$0xff]
      %v3317 = vld [vmem:[#allocation2 + $0x118] sm:$0xff]
      %v3318 = vadd.f32 %v3282, %v3193
      %v3319 = vadd.f32 %v3283, %v3195
      %v3320 = vadd.f32 %v3284, %v3198
      %v3321 = vadd.f32 %v3285, %v3200
      %v3322 = vadd.f32 %v3286, %v3203
      %v3323 = vadd.f32 %v3287, %v3205
      %v3324 = vadd.f32 %v3288, %v3208
      %v3325 = vadd.f32 %v3289, %v3210
      %v3326 = vadd.f32 %v3290, %v3213
      %v3327 = vadd.f32 %v3291, %v3215
      %v3328 = vadd.f32 %v3292, %v3218
      %v3329 = vadd.f32 %v3293, %v3220
      %v3330 = vadd.f32 %v3294, %v3223
      %v3331 = vadd.f32 %v3295, %v3225
      %v3332 = vadd.f32 %v3296, %v3228
      %v3333 = vadd.f32 %v3297, %v3230
      %v3334 = vadd.f32 %v3298, %v3233
      %v3335 = vadd.f32 %v3299, %v3235
      %v3336 = vadd.f32 %v3300, %v3238
      %v3337 = vadd.f32 %v3301, %v3240
      %v3338 = vadd.f32 %v3302, %v3243
      %v3339 = vadd.f32 %v3303, %v3245
      %v3340 = vadd.f32 %v3304, %v3248
      %v3341 = vadd.f32 %v3305, %v3250
      %v3342 = vadd.f32 %v3306, %v3253
      %v3343 = vadd.f32 %v3307, %v3255
      %v3344 = vadd.f32 %v3308, %v3258
      %v3345 = vadd.f32 %v3309, %v3260
      %v3346 = vadd.f32 %v3310, %v3263
      %v3347 = vadd.f32 %v3311, %v3265
      %v3348 = vadd.f32 %v3312, %v3268
      %v3349 = vadd.f32 %v3313, %v3270
      %v3350 = vadd.f32 %v3314, %v3273
      %v3351 = vadd.f32 %v3315, %v3275
      %v3352 = vadd.f32 %v3316, %v3278
      %v3353 = vadd.f32 %v3317, %v3280
      %3354 = vst [vmem:[#allocation2] sm:$0xff] %v3318
      %3355 = vst [vmem:[#allocation2 + $0x8] sm:$0xff] %v3319
      %3356 = vst [vmem:[#allocation2 + $0x10] sm:$0xff] %v3320
      %3357 = vst [vmem:[#allocation2 + $0x18] sm:$0xff] %v3321
      %3358 = vst [vmem:[#allocation2 + $0x20] sm:$0xff] %v3322
      %3359 = vst [vmem:[#allocation2 + $0x28] sm:$0xff] %v3323
      %3360 = vst [vmem:[#allocation2 + $0x30] sm:$0xff] %v3324
      %3361 = vst [vmem:[#allocation2 + $0x38] sm:$0xff] %v3325
      %3362 = vst [vmem:[#allocation2 + $0x40] sm:$0xff] %v3326
      %3363 = vst [vmem:[#allocation2 + $0x48] sm:$0xff] %v3327
      %3364 = vst [vmem:[#allocation2 + $0x50] sm:$0xff] %v3328
      %3365 = vst [vmem:[#allocation2 + $0x58] sm:$0xff] %v3329
      %3366 = vst [vmem:[#allocation2 + $0x60] sm:$0xff] %v3330
      %3367 = vst [vmem:[#allocation2 + $0x68] sm:$0xff] %v3331
      %3368 = vst [vmem:[#allocation2 + $0x70] sm:$0xff] %v3332
      %3369 = vst [vmem:[#allocation2 + $0x78] sm:$0xff] %v3333
      %3370 = vst [vmem:[#allocation2 + $0x80] sm:$0xff] %v3334
      %3371 = vst [vmem:[#allocation2 + $0x88] sm:$0xff] %v3335
      %3372 = vst [vmem:[#allocation2 + $0x90] sm:$0xff] %v3336
      %3373 = vst [vmem:[#allocation2 + $0x98] sm:$0xff] %v3337
      %3374 = vst [vmem:[#allocation2 + $0xa0] sm:$0xff] %v3338
      %3375 = vst [vmem:[#allocation2 + $0xa8] sm:$0xff] %v3339
      %3376 = vst [vmem:[#allocation2 + $0xb0] sm:$0xff] %v3340
      %3377 = vst [vmem:[#allocation2 + $0xb8] sm:$0xff] %v3341
      %3378 = vst [vmem:[#allocation2 + $0xc0] sm:$0xff] %v3342
      %3379 = vst [vmem:[#allocation2 + $0xc8] sm:$0xff] %v3343
      %3380 = vst [vmem:[#allocation2 + $0xd0] sm:$0xff] %v3344
      %3381 = vst [vmem:[#allocation2 + $0xd8] sm:$0xff] %v3345
      %3382 = vst [vmem:[#allocation2 + $0xe0] sm:$0xff] %v3346
      %3383 = vst [vmem:[#allocation2 + $0xe8] sm:$0xff] %v3347
      %3384 = vst [vmem:[#allocation2 + $0xf0] sm:$0xff] %v3348
      %3385 = vst [vmem:[#allocation2 + $0xf8] sm:$0xff] %v3349
      %3386 = vst [vmem:[#allocation2 + $0x100] sm:$0xff] %v3350
      %3387 = vst [vmem:[#allocation2 + $0x108] sm:$0xff] %v3351
      %3388 = vst [vmem:[#allocation2 + $0x110] sm:$0xff] %v3352
      %3389 = vst [vmem:[#allocation2 + $0x118] sm:$0xff] %v3353
      %v3390 = vld [vmem:[%s206 + $0x10] sm:$0xc]
      %v3391 = vld [vmem:[%s206 + $0x14] sm:$0xf]
      %v3392 = vld [vmem:[%s206 + $0x18] sm:$0xf]
      %v3393 = vld [vmem:[%s206 + $0x1c] sm:$0xf]
      %v3394 = vld [vmem:[%s206 + $0x20] sm:$0xf]
      %v3395 = vld [vmem:[%s206 + $0x24] sm:$0xf]
      %v3396 = vld [vmem:[%s206 + $0x28] sm:$0xf]
      %v3397 = vld [vmem:[%s206 + $0x2c] sm:$0xf]
      %v3398 = vld [vmem:[%s206 + $0x30] sm:$0xf]
      %v3399 = vld [vmem:[%s206 + $0x34] sm:$0xf]
      %v3400 = vld [vmem:[%s206 + $0x38] sm:$0xf]
      %v3401 = vld [vmem:[%s206 + $0x3c] sm:$0xf]
      %v3402 = vld [vmem:[%s206 + $0x40] sm:$0xf]
      %v3403 = vld [vmem:[%s206 + $0x44] sm:$0xf]
      %v3404 = vld [vmem:[%s206 + $0x48] sm:$0xf]
      %v3405 = vld [vmem:[%s206 + $0x4c] sm:$0xf]
      %v3406 = vld [vmem:[%s206 + $0x50] sm:$0xf]
      %v3407 = vld [vmem:[%s206 + $0x54] sm:$0xf]
      %v3408 = vld [vmem:[%s206 + $0x58] sm:$0xf]
      %v3409 = vld [vmem:[%s206 + $0x5c] sm:$0xf]
      %v3410 = vld [vmem:[%s206 + $0x60] sm:$0xf]
      %v3411 = vld [vmem:[%s206 + $0x64] sm:$0xf]
      %v3412 = vld [vmem:[%s206 + $0x68] sm:$0xf]
      %v3413 = vld [vmem:[%s206 + $0x6c] sm:$0xf]
      %v3414 = vld [vmem:[%s206 + $0x70] sm:$0xf]
      %v3415 = vld [vmem:[%s206 + $0x74] sm:$0xf]
      %v3416 = vld [vmem:[%s206 + $0x78] sm:$0xf]
      %v3417 = vld [vmem:[%s206 + $0x7c] sm:$0xf]
      %v3418 = vld [vmem:[%s206 + $0x80] sm:$0xf]
      %v3419 = vld [vmem:[%s206 + $0x84] sm:$0xf]
      %v3420 = vld [vmem:[%s206 + $0x88] sm:$0xf]
      %v3421 = vld [vmem:[%s206 + $0x8c] sm:$0xf]
      %v3422 = vld [vmem:[%s206 + $0x90] sm:$0xf]
      %v3423 = vld [vmem:[%s206 + $0x94] sm:$0xf]
      %v3424 = vld [vmem:[%s206 + $0x98] sm:$0xf]
      %v3425 = vld [vmem:[%s206 + $0x9c] sm:$0xf]
      %v3426 = vld [vmem:[%s206 + $0xa0] sm:$0x7]
      %s3427 = scalar_lea.vmem %s210, 14
      %v3428 = vld [vmem:[%s3427] sm:$0x3]
      %v3466 = vunpack.c.l.b16 %v3390
      %v3467 = vunpack.c.l.b16 %v3391
      %v3468 = vunpack.c.l.b16 %v3392
      %v3469 = vunpack.c.l.b16 %v3393
      %v3470 = vunpack.c.l.b16 %v3394
      %v3471 = vunpack.c.l.b16 %v3395
      %v3472 = vunpack.c.l.b16 %v3396
      %v3473 = vunpack.c.l.b16 %v3397
      %v3474 = vunpack.c.l.b16 %v3398
      %v3475 = vunpack.c.l.b16 %v3399
      %v3476 = vunpack.c.l.b16 %v3400
      %v3477 = vunpack.c.l.b16 %v3401
      %v3478 = vunpack.c.l.b16 %v3402
      %v3479 = vunpack.c.l.b16 %v3403
      %v3480 = vunpack.c.l.b16 %v3404
      %v3481 = vunpack.c.l.b16 %v3405
      %v3482 = vunpack.c.l.b16 %v3406
      %v3483 = vunpack.c.l.b16 %v3407
      %v3484 = vunpack.c.l.b16 %v3408
      %v3485 = vunpack.c.l.b16 %v3409
      %v3486 = vunpack.c.l.b16 %v3410
      %v3487 = vunpack.c.l.b16 %v3411
      %v3488 = vunpack.c.l.b16 %v3412
      %v3489 = vunpack.c.l.b16 %v3413
      %v3490 = vunpack.c.l.b16 %v3414
      %v3491 = vunpack.c.l.b16 %v3415
      %v3492 = vunpack.c.l.b16 %v3416
      %v3493 = vunpack.c.l.b16 %v3417
      %v3494 = vunpack.c.l.b16 %v3418
      %v3495 = vunpack.c.l.b16 %v3419
      %v3496 = vunpack.c.l.b16 %v3420
      %v3497 = vunpack.c.l.b16 %v3421
      %v3498 = vunpack.c.l.b16 %v3422
      %v3499 = vunpack.c.l.b16 %v3423
      %v3500 = vunpack.c.l.b16 %v3424
      %v3501 = vunpack.c.l.b16 %v3425
      %v3502 = vunpack.c.l.b16 %v3426
      %v3503 = vpack.c.b16 %v3467, %v3466
      %v3504 = vpack.c.b16 %v3469, %v3468
      %v3505 = vpack.c.b16 %v3471, %v3470
      %v3506 = vpack.c.b16 %v3473, %v3472
      %v3507 = vpack.c.b16 %v3475, %v3474
      %v3508 = vpack.c.b16 %v3477, %v3476
      %v3509 = vpack.c.b16 %v3479, %v3478
      %v3510 = vpack.c.b16 %v3481, %v3480
      %v3511 = vpack.c.b16 %v3483, %v3482
      %v3512 = vpack.c.b16 %v3485, %v3484
      %v3513 = vpack.c.b16 %v3487, %v3486
      %v3514 = vpack.c.b16 %v3489, %v3488
      %v3515 = vpack.c.b16 %v3491, %v3490
      %v3516 = vpack.c.b16 %v3493, %v3492
      %v3517 = vpack.c.b16 %v3495, %v3494
      %v3518 = vpack.c.b16 %v3497, %v3496
      %v3519 = vpack.c.b16 %v3499, %v3498
      %v3520 = vpack.c.b16 %v3501, %v3500
      %v3521 = vpack.c.b16 %v3502, %v3502
      %vm3522 = vsmask.f32 5376
      %v3524 = vshrl.u32 %v3503, 16
      %v3526 = vrot.slane %v3524, 2
      %v3527 = vshll.u32 %v3503, 16
      %v3529 = vrot.slane %v3527, 3
      %v3530 = vor.u32 %v3526, %v3529
      %v3532 = vshrl.u32 %v3504, 16
      %v3534 = vrot.slane %v3532, 2
      %v3535 = vshll.u32 %v3504, 16
      %v3537 = vrot.slane %v3535, 3
      %v3538 = vor.u32 %v3534, %v3537
      %v3539 = vsel %vm3522, %v3530, %v3538
      %v3541 = vshrl.u32 %v3505, 16
      %v3543 = vrot.slane %v3541, 2
      %v3544 = vshll.u32 %v3505, 16
      %v3546 = vrot.slane %v3544, 3
      %v3547 = vor.u32 %v3543, %v3546
      %v3548 = vsel %vm3522, %v3538, %v3547
      %v3550 = vshrl.u32 %v3506, 16
      %v3552 = vrot.slane %v3550, 2
      %v3553 = vshll.u32 %v3506, 16
      %v3555 = vrot.slane %v3553, 3
      %v3556 = vor.u32 %v3552, %v3555
      %v3557 = vsel %vm3522, %v3547, %v3556
      %v3559 = vshrl.u32 %v3507, 16
      %v3561 = vrot.slane %v3559, 2
      %v3562 = vshll.u32 %v3507, 16
      %v3564 = vrot.slane %v3562, 3
      %v3565 = vor.u32 %v3561, %v3564
      %v3566 = vsel %vm3522, %v3556, %v3565
      %v3568 = vshrl.u32 %v3508, 16
      %v3570 = vrot.slane %v3568, 2
      %v3571 = vshll.u32 %v3508, 16
      %v3573 = vrot.slane %v3571, 3
      %v3574 = vor.u32 %v3570, %v3573
      %v3575 = vsel %vm3522, %v3565, %v3574
      %v3577 = vshrl.u32 %v3509, 16
      %v3579 = vrot.slane %v3577, 2
      %v3580 = vshll.u32 %v3509, 16
      %v3582 = vrot.slane %v3580, 3
      %v3583 = vor.u32 %v3579, %v3582
      %v3584 = vsel %vm3522, %v3574, %v3583
      %v3586 = vshrl.u32 %v3510, 16
      %v3588 = vrot.slane %v3586, 2
      %v3589 = vshll.u32 %v3510, 16
      %v3591 = vrot.slane %v3589, 3
      %v3592 = vor.u32 %v3588, %v3591
      %v3593 = vsel %vm3522, %v3583, %v3592
      %v3595 = vshrl.u32 %v3511, 16
      %v3597 = vrot.slane %v3595, 2
      %v3598 = vshll.u32 %v3511, 16
      %v3600 = vrot.slane %v3598, 3
      %v3601 = vor.u32 %v3597, %v3600
      %v3602 = vsel %vm3522, %v3592, %v3601
      %v3604 = vshrl.u32 %v3512, 16
      %v3606 = vrot.slane %v3604, 2
      %v3607 = vshll.u32 %v3512, 16
      %v3609 = vrot.slane %v3607, 3
      %v3610 = vor.u32 %v3606, %v3609
      %v3611 = vsel %vm3522, %v3601, %v3610
      %v3613 = vshrl.u32 %v3513, 16
      %v3615 = vrot.slane %v3613, 2
      %v3616 = vshll.u32 %v3513, 16
      %v3618 = vrot.slane %v3616, 3
      %v3619 = vor.u32 %v3615, %v3618
      %v3620 = vsel %vm3522, %v3610, %v3619
      %v3622 = vshrl.u32 %v3514, 16
      %v3624 = vrot.slane %v3622, 2
      %v3625 = vshll.u32 %v3514, 16
      %v3627 = vrot.slane %v3625, 3
      %v3628 = vor.u32 %v3624, %v3627
      %v3629 = vsel %vm3522, %v3619, %v3628
      %v3631 = vshrl.u32 %v3515, 16
      %v3633 = vrot.slane %v3631, 2
      %v3634 = vshll.u32 %v3515, 16
      %v3636 = vrot.slane %v3634, 3
      %v3637 = vor.u32 %v3633, %v3636
      %v3638 = vsel %vm3522, %v3628, %v3637
      %v3640 = vshrl.u32 %v3516, 16
      %v3642 = vrot.slane %v3640, 2
      %v3643 = vshll.u32 %v3516, 16
      %v3645 = vrot.slane %v3643, 3
      %v3646 = vor.u32 %v3642, %v3645
      %v3647 = vsel %vm3522, %v3637, %v3646
      %v3649 = vshrl.u32 %v3517, 16
      %v3651 = vrot.slane %v3649, 2
      %v3652 = vshll.u32 %v3517, 16
      %v3654 = vrot.slane %v3652, 3
      %v3655 = vor.u32 %v3651, %v3654
      %v3656 = vsel %vm3522, %v3646, %v3655
      %v3658 = vshrl.u32 %v3518, 16
      %v3660 = vrot.slane %v3658, 2
      %v3661 = vshll.u32 %v3518, 16
      %v3663 = vrot.slane %v3661, 3
      %v3664 = vor.u32 %v3660, %v3663
      %v3665 = vsel %vm3522, %v3655, %v3664
      %v3667 = vshrl.u32 %v3519, 16
      %v3669 = vrot.slane %v3667, 2
      %v3670 = vshll.u32 %v3519, 16
      %v3672 = vrot.slane %v3670, 3
      %v3673 = vor.u32 %v3669, %v3672
      %v3674 = vsel %vm3522, %v3664, %v3673
      %v3676 = vshrl.u32 %v3520, 16
      %v3678 = vrot.slane %v3676, 2
      %v3679 = vshll.u32 %v3520, 16
      %v3681 = vrot.slane %v3679, 3
      %v3682 = vor.u32 %v3678, %v3681
      %v3683 = vsel %vm3522, %v3673, %v3682
      %v3685 = vshrl.u32 %v3521, 16
      %v3687 = vrot.slane %v3685, 2
      %v3688 = vshll.u32 %v3521, 16
      %v3690 = vrot.slane %v3688, 3
      %v3691 = vor.u32 %v3687, %v3690
      %v3692 = vsel %vm3522, %v3682, %v3691
      %v3694 = vsel %vm350, %v3539, 0
      %v3697 = vsel %vm350, %v3548, 0
      %v3700 = vsel %vm350, %v3557, 0
      %v3703 = vsel %vm350, %v3566, 0
      %v3706 = vsel %vm350, %v3575, 0
      %v3709 = vsel %vm350, %v3584, 0
      %v3712 = vsel %vm350, %v3593, 0
      %v3715 = vsel %vm350, %v3602, 0
      %v3718 = vsel %vm350, %v3611, 0
      %v3721 = vsel %vm350, %v3620, 0
      %v3724 = vsel %vm350, %v3629, 0
      %v3727 = vsel %vm350, %v3638, 0
      %v3730 = vsel %vm350, %v3647, 0
      %v3733 = vsel %vm350, %v3656, 0
      %v3736 = vsel %vm350, %v3665, 0
      %v3739 = vsel %vm350, %v3674, 0
      %v3742 = vsel %vm350, %v3683, 0
      %v3745 = vsel %vm350, %v3692, 0
      %v3748 = vsel %vm405, %v3428, 0
      %3750 = vmatpush.bf16.msra.mxu0 0
      %3751 = vmatpush.bf16.msra.mxu0 0
      %3752 = vmatpush.bf16.msra.mxu0 0
      %3753 = vmatpush.bf16.msra.mxu0 0
      %3754 = vmatpush.bf16.msra.mxu0 0
      %3755 = vmatpush.bf16.msra.mxu0 0
      %3756 = vmatpush.bf16.msra.mxu0 0
      %3757 = vmatpush.bf16.msra.mxu0 %v3748
      %3758 = vmatmul.bf16.gmra.mxu0 %v3694
      %v3759 = vpop.f32.mrf.mxu0
      %v3760 = vadd.f32 0.0, %v3759
      %v3761 = vpop.f32.mrf.mxu0
      %v3762 = vadd.f32 0.0, %v3761
      %3763 = vmatmul.bf16.gmra.mxu0 %v3697
      %v3764 = vpop.f32.mrf.mxu0
      %v3765 = vadd.f32 0.0, %v3764
      %v3766 = vpop.f32.mrf.mxu0
      %v3767 = vadd.f32 0.0, %v3766
      %3768 = vmatmul.bf16.gmra.mxu0 %v3700
      %v3769 = vpop.f32.mrf.mxu0
      %v3770 = vadd.f32 0.0, %v3769
      %v3771 = vpop.f32.mrf.mxu0
      %v3772 = vadd.f32 0.0, %v3771
      %3773 = vmatmul.bf16.gmra.mxu0 %v3703
      %v3774 = vpop.f32.mrf.mxu0
      %v3775 = vadd.f32 0.0, %v3774
      %v3776 = vpop.f32.mrf.mxu0
      %v3777 = vadd.f32 0.0, %v3776
      %3778 = vmatmul.bf16.gmra.mxu0 %v3706
      %v3779 = vpop.f32.mrf.mxu0
      %v3780 = vadd.f32 0.0, %v3779
      %v3781 = vpop.f32.mrf.mxu0
      %v3782 = vadd.f32 0.0, %v3781
      %3783 = vmatmul.bf16.gmra.mxu0 %v3709
      %v3784 = vpop.f32.mrf.mxu0
      %v3785 = vadd.f32 0.0, %v3784
      %v3786 = vpop.f32.mrf.mxu0
      %v3787 = vadd.f32 0.0, %v3786
      %3788 = vmatmul.bf16.gmra.mxu0 %v3712
      %v3789 = vpop.f32.mrf.mxu0
      %v3790 = vadd.f32 0.0, %v3789
      %v3791 = vpop.f32.mrf.mxu0
      %v3792 = vadd.f32 0.0, %v3791
      %3793 = vmatmul.bf16.gmra.mxu0 %v3715
      %v3794 = vpop.f32.mrf.mxu0
      %v3795 = vadd.f32 0.0, %v3794
      %v3796 = vpop.f32.mrf.mxu0
      %v3797 = vadd.f32 0.0, %v3796
      %3798 = vmatmul.bf16.gmra.mxu0 %v3718
      %v3799 = vpop.f32.mrf.mxu0
      %v3800 = vadd.f32 0.0, %v3799
      %v3801 = vpop.f32.mrf.mxu0
      %v3802 = vadd.f32 0.0, %v3801
      %3803 = vmatmul.bf16.gmra.mxu0 %v3721
      %v3804 = vpop.f32.mrf.mxu0
      %v3805 = vadd.f32 0.0, %v3804
      %v3806 = vpop.f32.mrf.mxu0
      %v3807 = vadd.f32 0.0, %v3806
      %3808 = vmatmul.bf16.gmra.mxu0 %v3724
      %v3809 = vpop.f32.mrf.mxu0
      %v3810 = vadd.f32 0.0, %v3809
      %v3811 = vpop.f32.mrf.mxu0
      %v3812 = vadd.f32 0.0, %v3811
      %3813 = vmatmul.bf16.gmra.mxu0 %v3727
      %v3814 = vpop.f32.mrf.mxu0
      %v3815 = vadd.f32 0.0, %v3814
      %v3816 = vpop.f32.mrf.mxu0
      %v3817 = vadd.f32 0.0, %v3816
      %3818 = vmatmul.bf16.gmra.mxu0 %v3730
      %v3819 = vpop.f32.mrf.mxu0
      %v3820 = vadd.f32 0.0, %v3819
      %v3821 = vpop.f32.mrf.mxu0
      %v3822 = vadd.f32 0.0, %v3821
      %3823 = vmatmul.bf16.gmra.mxu0 %v3733
      %v3824 = vpop.f32.mrf.mxu0
      %v3825 = vadd.f32 0.0, %v3824
      %v3826 = vpop.f32.mrf.mxu0
      %v3827 = vadd.f32 0.0, %v3826
      %3828 = vmatmul.bf16.gmra.mxu0 %v3736
      %v3829 = vpop.f32.mrf.mxu0
      %v3830 = vadd.f32 0.0, %v3829
      %v3831 = vpop.f32.mrf.mxu0
      %v3832 = vadd.f32 0.0, %v3831
      %3833 = vmatmul.bf16.gmra.mxu0 %v3739
      %v3834 = vpop.f32.mrf.mxu0
      %v3835 = vadd.f32 0.0, %v3834
      %v3836 = vpop.f32.mrf.mxu0
      %v3837 = vadd.f32 0.0, %v3836
      %3838 = vmatmul.bf16.gmra.mxu0 %v3742
      %v3839 = vpop.f32.mrf.mxu0
      %v3840 = vadd.f32 0.0, %v3839
      %v3841 = vpop.f32.mrf.mxu0
      %v3842 = vadd.f32 0.0, %v3841
      %3843 = vmatmul.bf16.gmra.mxu0 %v3745
      %v3844 = vpop.f32.mrf.mxu0
      %v3845 = vadd.f32 0.0, %v3844
      %v3846 = vpop.f32.mrf.mxu0
      %v3847 = vadd.f32 0.0, %v3846
      %3848 = vdwg.mxu0
      %v3849 = vld [vmem:[#allocation2] sm:$0xff]
      %v3850 = vld [vmem:[#allocation2 + $0x8] sm:$0xff]
      %v3851 = vld [vmem:[#allocation2 + $0x10] sm:$0xff]
      %v3852 = vld [vmem:[#allocation2 + $0x18] sm:$0xff]
      %v3853 = vld [vmem:[#allocation2 + $0x20] sm:$0xff]
      %v3854 = vld [vmem:[#allocation2 + $0x28] sm:$0xff]
      %v3855 = vld [vmem:[#allocation2 + $0x30] sm:$0xff]
      %v3856 = vld [vmem:[#allocation2 + $0x38] sm:$0xff]
      %v3857 = vld [vmem:[#allocation2 + $0x40] sm:$0xff]
      %v3858 = vld [vmem:[#allocation2 + $0x48] sm:$0xff]
      %v3859 = vld [vmem:[#allocation2 + $0x50] sm:$0xff]
      %v3860 = vld [vmem:[#allocation2 + $0x58] sm:$0xff]
      %v3861 = vld [vmem:[#allocation2 + $0x60] sm:$0xff]
      %v3862 = vld [vmem:[#allocation2 + $0x68] sm:$0xff]
      %v3863 = vld [vmem:[#allocation2 + $0x70] sm:$0xff]
      %v3864 = vld [vmem:[#allocation2 + $0x78] sm:$0xff]
      %v3865 = vld [vmem:[#allocation2 + $0x80] sm:$0xff]
      %v3866 = vld [vmem:[#allocation2 + $0x88] sm:$0xff]
      %v3867 = vld [vmem:[#allocation2 + $0x90] sm:$0xff]
      %v3868 = vld [vmem:[#allocation2 + $0x98] sm:$0xff]
      %v3869 = vld [vmem:[#allocation2 + $0xa0] sm:$0xff]
      %v3870 = vld [vmem:[#allocation2 + $0xa8] sm:$0xff]
      %v3871 = vld [vmem:[#allocation2 + $0xb0] sm:$0xff]
      %v3872 = vld [vmem:[#allocation2 + $0xb8] sm:$0xff]
      %v3873 = vld [vmem:[#allocation2 + $0xc0] sm:$0xff]
      %v3874 = vld [vmem:[#allocation2 + $0xc8] sm:$0xff]
      %v3875 = vld [vmem:[#allocation2 + $0xd0] sm:$0xff]
      %v3876 = vld [vmem:[#allocation2 + $0xd8] sm:$0xff]
      %v3877 = vld [vmem:[#allocation2 + $0xe0] sm:$0xff]
      %v3878 = vld [vmem:[#allocation2 + $0xe8] sm:$0xff]
      %v3879 = vld [vmem:[#allocation2 + $0xf0] sm:$0xff]
      %v3880 = vld [vmem:[#allocation2 + $0xf8] sm:$0xff]
      %v3881 = vld [vmem:[#allocation2 + $0x100] sm:$0xff]
      %v3882 = vld [vmem:[#allocation2 + $0x108] sm:$0xff]
      %v3883 = vld [vmem:[#allocation2 + $0x110] sm:$0xff]
      %v3884 = vld [vmem:[#allocation2 + $0x118] sm:$0xff]
      %v3885 = vadd.f32 %v3849, %v3760
      %v3886 = vadd.f32 %v3850, %v3762
      %v3887 = vadd.f32 %v3851, %v3765
      %v3888 = vadd.f32 %v3852, %v3767
      %v3889 = vadd.f32 %v3853, %v3770
      %v3890 = vadd.f32 %v3854, %v3772
      %v3891 = vadd.f32 %v3855, %v3775
      %v3892 = vadd.f32 %v3856, %v3777
      %v3893 = vadd.f32 %v3857, %v3780
      %v3894 = vadd.f32 %v3858, %v3782
      %v3895 = vadd.f32 %v3859, %v3785
      %v3896 = vadd.f32 %v3860, %v3787
      %v3897 = vadd.f32 %v3861, %v3790
      %v3898 = vadd.f32 %v3862, %v3792
      %v3899 = vadd.f32 %v3863, %v3795
      %v3900 = vadd.f32 %v3864, %v3797
      %v3901 = vadd.f32 %v3865, %v3800
      %v3902 = vadd.f32 %v3866, %v3802
      %v3903 = vadd.f32 %v3867, %v3805
      %v3904 = vadd.f32 %v3868, %v3807
      %v3905 = vadd.f32 %v3869, %v3810
      %v3906 = vadd.f32 %v3870, %v3812
      %v3907 = vadd.f32 %v3871, %v3815
      %v3908 = vadd.f32 %v3872, %v3817
      %v3909 = vadd.f32 %v3873, %v3820
      %v3910 = vadd.f32 %v3874, %v3822
      %v3911 = vadd.f32 %v3875, %v3825
      %v3912 = vadd.f32 %v3876, %v3827
      %v3913 = vadd.f32 %v3877, %v3830
      %v3914 = vadd.f32 %v3878, %v3832
      %v3915 = vadd.f32 %v3879, %v3835
      %v3916 = vadd.f32 %v3880, %v3837
      %v3917 = vadd.f32 %v3881, %v3840
      %v3918 = vadd.f32 %v3882, %v3842
      %v3919 = vadd.f32 %v3883, %v3845
      %v3920 = vadd.f32 %v3884, %v3847
      %3921 = vst [vmem:[#allocation2] sm:$0xff] %v3885
      %3922 = vst [vmem:[#allocation2 + $0x8] sm:$0xff] %v3886
      %3923 = vst [vmem:[#allocation2 + $0x10] sm:$0xff] %v3887
      %3924 = vst [vmem:[#allocation2 + $0x18] sm:$0xff] %v3888
      %3925 = vst [vmem:[#allocation2 + $0x20] sm:$0xff] %v3889
      %3926 = vst [vmem:[#allocation2 + $0x28] sm:$0xff] %v3890
      %3927 = vst [vmem:[#allocation2 + $0x30] sm:$0xff] %v3891
      %3928 = vst [vmem:[#allocation2 + $0x38] sm:$0xff] %v3892
      %3929 = vst [vmem:[#allocation2 + $0x40] sm:$0xff] %v3893
      %3930 = vst [vmem:[#allocation2 + $0x48] sm:$0xff] %v3894
      %3931 = vst [vmem:[#allocation2 + $0x50] sm:$0xff] %v3895
      %3932 = vst [vmem:[#allocation2 + $0x58] sm:$0xff] %v3896
      %3933 = vst [vmem:[#allocation2 + $0x60] sm:$0xff] %v3897
      %3934 = vst [vmem:[#allocation2 + $0x68] sm:$0xff] %v3898
      %3935 = vst [vmem:[#allocation2 + $0x70] sm:$0xff] %v3899
      %3936 = vst [vmem:[#allocation2 + $0x78] sm:$0xff] %v3900
      %3937 = vst [vmem:[#allocation2 + $0x80] sm:$0xff] %v3901
      %3938 = vst [vmem:[#allocation2 + $0x88] sm:$0xff] %v3902
      %3939 = vst [vmem:[#allocation2 + $0x90] sm:$0xff] %v3903
      %3940 = vst [vmem:[#allocation2 + $0x98] sm:$0xff] %v3904
      %3941 = vst [vmem:[#allocation2 + $0xa0] sm:$0xff] %v3905
      %3942 = vst [vmem:[#allocation2 + $0xa8] sm:$0xff] %v3906
      %3943 = vst [vmem:[#allocation2 + $0xb0] sm:$0xff] %v3907
      %3944 = vst [vmem:[#allocation2 + $0xb8] sm:$0xff] %v3908
      %3945 = vst [vmem:[#allocation2 + $0xc0] sm:$0xff] %v3909
      %3946 = vst [vmem:[#allocation2 + $0xc8] sm:$0xff] %v3910
      %3947 = vst [vmem:[#allocation2 + $0xd0] sm:$0xff] %v3911
      %3948 = vst [vmem:[#allocation2 + $0xd8] sm:$0xff] %v3912
      %3949 = vst [vmem:[#allocation2 + $0xe0] sm:$0xff] %v3913
      %3950 = vst [vmem:[#allocation2 + $0xe8] sm:$0xff] %v3914
      %3951 = vst [vmem:[#allocation2 + $0xf0] sm:$0xff] %v3915
      %3952 = vst [vmem:[#allocation2 + $0xf8] sm:$0xff] %v3916
      %3953 = vst [vmem:[#allocation2 + $0x100] sm:$0xff] %v3917
      %3954 = vst [vmem:[#allocation2 + $0x108] sm:$0xff] %v3918
      %3955 = vst [vmem:[#allocation2 + $0x110] sm:$0xff] %v3919
      %3956 = vst [vmem:[#allocation2 + $0x118] sm:$0xff] %v3920
      %v3957 = vld [vmem:[%s206 + $0x10] sm:$0x8]
      %v3958 = vld [vmem:[%s206 + $0x14] sm:$0xf]
      %v3959 = vld [vmem:[%s206 + $0x18] sm:$0xf]
      %v3960 = vld [vmem:[%s206 + $0x1c] sm:$0xf]
      %v3961 = vld [vmem:[%s206 + $0x20] sm:$0xf]
      %v3962 = vld [vmem:[%s206 + $0x24] sm:$0xf]
      %v3963 = vld [vmem:[%s206 + $0x28] sm:$0xf]
      %v3964 = vld [vmem:[%s206 + $0x2c] sm:$0xf]
      %v3965 = vld [vmem:[%s206 + $0x30] sm:$0xf]
      %v3966 = vld [vmem:[%s206 + $0x34] sm:$0xf]
      %v3967 = vld [vmem:[%s206 + $0x38] sm:$0xf]
      %v3968 = vld [vmem:[%s206 + $0x3c] sm:$0xf]
      %v3969 = vld [vmem:[%s206 + $0x40] sm:$0xf]
      %v3970 = vld [vmem:[%s206 + $0x44] sm:$0xf]
      %v3971 = vld [vmem:[%s206 + $0x48] sm:$0xf]
      %v3972 = vld [vmem:[%s206 + $0x4c] sm:$0xf]
      %v3973 = vld [vmem:[%s206 + $0x50] sm:$0xf]
      %v3974 = vld [vmem:[%s206 + $0x54] sm:$0xf]
      %v3975 = vld [vmem:[%s206 + $0x58] sm:$0xf]
      %v3976 = vld [vmem:[%s206 + $0x5c] sm:$0xf]
      %v3977 = vld [vmem:[%s206 + $0x60] sm:$0xf]
      %v3978 = vld [vmem:[%s206 + $0x64] sm:$0xf]
      %v3979 = vld [vmem:[%s206 + $0x68] sm:$0xf]
      %v3980 = vld [vmem:[%s206 + $0x6c] sm:$0xf]
      %v3981 = vld [vmem:[%s206 + $0x70] sm:$0xf]
      %v3982 = vld [vmem:[%s206 + $0x74] sm:$0xf]
      %v3983 = vld [vmem:[%s206 + $0x78] sm:$0xf]
      %v3984 = vld [vmem:[%s206 + $0x7c] sm:$0xf]
      %v3985 = vld [vmem:[%s206 + $0x80] sm:$0xf]
      %v3986 = vld [vmem:[%s206 + $0x84] sm:$0xf]
      %v3987 = vld [vmem:[%s206 + $0x88] sm:$0xf]
      %v3988 = vld [vmem:[%s206 + $0x8c] sm:$0xf]
      %v3989 = vld [vmem:[%s206 + $0x90] sm:$0xf]
      %v3990 = vld [vmem:[%s206 + $0x94] sm:$0xf]
      %v3991 = vld [vmem:[%s206 + $0x98] sm:$0xf]
      %v3992 = vld [vmem:[%s206 + $0x9c] sm:$0xf]
      %v3993 = vld [vmem:[%s206 + $0xa0] sm:$0x7]
      %s3994 = scalar_lea.vmem %s210, 16
      %v3995 = vld [vmem:[%s3994] sm:$0x3]
      %v4033 = vunpack.c.l.b16 %v3957
      %v4034 = vunpack.c.l.b16 %v3958
      %v4035 = vunpack.c.l.b16 %v3959
      %v4036 = vunpack.c.l.b16 %v3960
      %v4037 = vunpack.c.l.b16 %v3961
      %v4038 = vunpack.c.l.b16 %v3962
      %v4039 = vunpack.c.l.b16 %v3963
      %v4040 = vunpack.c.l.b16 %v3964
      %v4041 = vunpack.c.l.b16 %v3965
      %v4042 = vunpack.c.l.b16 %v3966
      %v4043 = vunpack.c.l.b16 %v3967
      %v4044 = vunpack.c.l.b16 %v3968
      %v4045 = vunpack.c.l.b16 %v3969
      %v4046 = vunpack.c.l.b16 %v3970
      %v4047 = vunpack.c.l.b16 %v3971
      %v4048 = vunpack.c.l.b16 %v3972
      %v4049 = vunpack.c.l.b16 %v3973
      %v4050 = vunpack.c.l.b16 %v3974
      %v4051 = vunpack.c.l.b16 %v3975
      %v4052 = vunpack.c.l.b16 %v3976
      %v4053 = vunpack.c.l.b16 %v3977
      %v4054 = vunpack.c.l.b16 %v3978
      %v4055 = vunpack.c.l.b16 %v3979
      %v4056 = vunpack.c.l.b16 %v3980
      %v4057 = vunpack.c.l.b16 %v3981
      %v4058 = vunpack.c.l.b16 %v3982
      %v4059 = vunpack.c.l.b16 %v3983
      %v4060 = vunpack.c.l.b16 %v3984
      %v4061 = vunpack.c.l.b16 %v3985
      %v4062 = vunpack.c.l.b16 %v3986
      %v4063 = vunpack.c.l.b16 %v3987
      %v4064 = vunpack.c.l.b16 %v3988
      %v4065 = vunpack.c.l.b16 %v3989
      %v4066 = vunpack.c.l.b16 %v3990
      %v4067 = vunpack.c.l.b16 %v3991
      %v4068 = vunpack.c.l.b16 %v3992
      %v4069 = vunpack.c.l.b16 %v3993
      %v4070 = vpack.c.b16 %v4034, %v4033
      %v4071 = vpack.c.b16 %v4036, %v4035
      %v4072 = vpack.c.b16 %v4038, %v4037
      %v4073 = vpack.c.b16 %v4040, %v4039
      %v4074 = vpack.c.b16 %v4042, %v4041
      %v4075 = vpack.c.b16 %v4044, %v4043
      %v4076 = vpack.c.b16 %v4046, %v4045
      %v4077 = vpack.c.b16 %v4048, %v4047
      %v4078 = vpack.c.b16 %v4050, %v4049
      %v4079 = vpack.c.b16 %v4052, %v4051
      %v4080 = vpack.c.b16 %v4054, %v4053
      %v4081 = vpack.c.b16 %v4056, %v4055
      %v4082 = vpack.c.b16 %v4058, %v4057
      %v4083 = vpack.c.b16 %v4060, %v4059
      %v4084 = vpack.c.b16 %v4062, %v4061
      %v4085 = vpack.c.b16 %v4064, %v4063
      %v4086 = vpack.c.b16 %v4066, %v4065
      %v4087 = vpack.c.b16 %v4068, %v4067
      %v4088 = vpack.c.b16 %v4069, %v4069
      %vm4089 = vcmask 1044480
      %v4090 = vrot.slane %v4070, 3
      %v4091 = vrot.slane %v4071, 3
      %v4092 = vsel %vm4089, %v4090, %v4091
      %v4093 = vrot.slane %v4072, 3
      %v4094 = vsel %vm4089, %v4091, %v4093
      %v4095 = vrot.slane %v4073, 3
      %v4096 = vsel %vm4089, %v4093, %v4095
      %v4097 = vrot.slane %v4074, 3
      %v4098 = vsel %vm4089, %v4095, %v4097
      %v4099 = vrot.slane %v4075, 3
      %v4100 = vsel %vm4089, %v4097, %v4099
      %v4101 = vrot.slane %v4076, 3
      %v4102 = vsel %vm4089, %v4099, %v4101
      %v4103 = vrot.slane %v4077, 3
      %v4104 = vsel %vm4089, %v4101, %v4103
      %v4105 = vrot.slane %v4078, 3
      %v4106 = vsel %vm4089, %v4103, %v4105
      %v4107 = vrot.slane %v4079, 3
      %v4108 = vsel %vm4089, %v4105, %v4107
      %v4109 = vrot.slane %v4080, 3
      %v4110 = vsel %vm4089, %v4107, %v4109
      %v4111 = vrot.slane %v4081, 3
      %v4112 = vsel %vm4089, %v4109, %v4111
      %v4113 = vrot.slane %v4082, 3
      %v4114 = vsel %vm4089, %v4111, %v4113
      %v4115 = vrot.slane %v4083, 3
      %v4116 = vsel %vm4089, %v4113, %v4115
      %v4117 = vrot.slane %v4084, 3
      %v4118 = vsel %vm4089, %v4115, %v4117
      %v4119 = vrot.slane %v4085, 3
      %v4120 = vsel %vm4089, %v4117, %v4119
      %v4121 = vrot.slane %v4086, 3
      %v4122 = vsel %vm4089, %v4119, %v4121
      %v4123 = vrot.slane %v4087, 3
      %v4124 = vsel %vm4089, %v4121, %v4123
      %v4125 = vrot.slane %v4088, 3
      %v4126 = vsel %vm4089, %v4123, %v4125
      %v4128 = vsel %vm350, %v4092, 0
      %v4131 = vsel %vm350, %v4094, 0
      %v4134 = vsel %vm350, %v4096, 0
      %v4137 = vsel %vm350, %v4098, 0
      %v4140 = vsel %vm350, %v4100, 0
      %v4143 = vsel %vm350, %v4102, 0
      %v4146 = vsel %vm350, %v4104, 0
      %v4149 = vsel %vm350, %v4106, 0
      %v4152 = vsel %vm350, %v4108, 0
      %v4155 = vsel %vm350, %v4110, 0
      %v4158 = vsel %vm350, %v4112, 0
      %v4161 = vsel %vm350, %v4114, 0
      %v4164 = vsel %vm350, %v4116, 0
      %v4167 = vsel %vm350, %v4118, 0
      %v4170 = vsel %vm350, %v4120, 0
      %v4173 = vsel %vm350, %v4122, 0
      %v4176 = vsel %vm350, %v4124, 0
      %v4179 = vsel %vm350, %v4126, 0
      %v4182 = vsel %vm405, %v3995, 0
      %4184 = vmatpush.bf16.msra.mxu0 0
      %4185 = vmatpush.bf16.msra.mxu0 0
      %4186 = vmatpush.bf16.msra.mxu0 0
      %4187 = vmatpush.bf16.msra.mxu0 0
      %4188 = vmatpush.bf16.msra.mxu0 0
      %4189 = vmatpush.bf16.msra.mxu0 0
      %4190 = vmatpush.bf16.msra.mxu0 0
      %4191 = vmatpush.bf16.msra.mxu0 %v4182
      %4192 = vmatmul.bf16.gmra.mxu0 %v4128
      %v4193 = vpop.f32.mrf.mxu0
      %v4194 = vadd.f32 0.0, %v4193
      %v4195 = vpop.f32.mrf.mxu0
      %v4196 = vadd.f32 0.0, %v4195
      %4197 = vmatmul.bf16.gmra.mxu0 %v4131
      %v4198 = vpop.f32.mrf.mxu0
      %v4199 = vadd.f32 0.0, %v4198
      %v4200 = vpop.f32.mrf.mxu0
      %v4201 = vadd.f32 0.0, %v4200
      %4202 = vmatmul.bf16.gmra.mxu0 %v4134
      %v4203 = vpop.f32.mrf.mxu0
      %v4204 = vadd.f32 0.0, %v4203
      %v4205 = vpop.f32.mrf.mxu0
      %v4206 = vadd.f32 0.0, %v4205
      %4207 = vmatmul.bf16.gmra.mxu0 %v4137
      %v4208 = vpop.f32.mrf.mxu0
      %v4209 = vadd.f32 0.0, %v4208
      %v4210 = vpop.f32.mrf.mxu0
      %v4211 = vadd.f32 0.0, %v4210
      %4212 = vmatmul.bf16.gmra.mxu0 %v4140
      %v4213 = vpop.f32.mrf.mxu0
      %v4214 = vadd.f32 0.0, %v4213
      %v4215 = vpop.f32.mrf.mxu0
      %v4216 = vadd.f32 0.0, %v4215
      %4217 = vmatmul.bf16.gmra.mxu0 %v4143
      %v4218 = vpop.f32.mrf.mxu0
      %v4219 = vadd.f32 0.0, %v4218
      %v4220 = vpop.f32.mrf.mxu0
      %v4221 = vadd.f32 0.0, %v4220
      %4222 = vmatmul.bf16.gmra.mxu0 %v4146
      %v4223 = vpop.f32.mrf.mxu0
      %v4224 = vadd.f32 0.0, %v4223
      %v4225 = vpop.f32.mrf.mxu0
      %v4226 = vadd.f32 0.0, %v4225
      %4227 = vmatmul.bf16.gmra.mxu0 %v4149
      %v4228 = vpop.f32.mrf.mxu0
      %v4229 = vadd.f32 0.0, %v4228
      %v4230 = vpop.f32.mrf.mxu0
      %v4231 = vadd.f32 0.0, %v4230
      %4232 = vmatmul.bf16.gmra.mxu0 %v4152
      %v4233 = vpop.f32.mrf.mxu0
      %v4234 = vadd.f32 0.0, %v4233
      %v4235 = vpop.f32.mrf.mxu0
      %v4236 = vadd.f32 0.0, %v4235
      %4237 = vmatmul.bf16.gmra.mxu0 %v4155
      %v4238 = vpop.f32.mrf.mxu0
      %v4239 = vadd.f32 0.0, %v4238
      %v4240 = vpop.f32.mrf.mxu0
      %v4241 = vadd.f32 0.0, %v4240
      %4242 = vmatmul.bf16.gmra.mxu0 %v4158
      %v4243 = vpop.f32.mrf.mxu0
      %v4244 = vadd.f32 0.0, %v4243
      %v4245 = vpop.f32.mrf.mxu0
      %v4246 = vadd.f32 0.0, %v4245
      %4247 = vmatmul.bf16.gmra.mxu0 %v4161
      %v4248 = vpop.f32.mrf.mxu0
      %v4249 = vadd.f32 0.0, %v4248
      %v4250 = vpop.f32.mrf.mxu0
      %v4251 = vadd.f32 0.0, %v4250
      %4252 = vmatmul.bf16.gmra.mxu0 %v4164
      %v4253 = vpop.f32.mrf.mxu0
      %v4254 = vadd.f32 0.0, %v4253
      %v4255 = vpop.f32.mrf.mxu0
      %v4256 = vadd.f32 0.0, %v4255
      %4257 = vmatmul.bf16.gmra.mxu0 %v4167
      %v4258 = vpop.f32.mrf.mxu0
      %v4259 = vadd.f32 0.0, %v4258
      %v4260 = vpop.f32.mrf.mxu0
      %v4261 = vadd.f32 0.0, %v4260
      %4262 = vmatmul.bf16.gmra.mxu0 %v4170
      %v4263 = vpop.f32.mrf.mxu0
      %v4264 = vadd.f32 0.0, %v4263
      %v4265 = vpop.f32.mrf.mxu0
      %v4266 = vadd.f32 0.0, %v4265
      %4267 = vmatmul.bf16.gmra.mxu0 %v4173
      %v4268 = vpop.f32.mrf.mxu0
      %v4269 = vadd.f32 0.0, %v4268
      %v4270 = vpop.f32.mrf.mxu0
      %v4271 = vadd.f32 0.0, %v4270
      %4272 = vmatmul.bf16.gmra.mxu0 %v4176
      %v4273 = vpop.f32.mrf.mxu0
      %v4274 = vadd.f32 0.0, %v4273
      %v4275 = vpop.f32.mrf.mxu0
      %v4276 = vadd.f32 0.0, %v4275
      %4277 = vmatmul.bf16.gmra.mxu0 %v4179
      %v4278 = vpop.f32.mrf.mxu0
      %v4279 = vadd.f32 0.0, %v4278
      %v4280 = vpop.f32.mrf.mxu0
      %v4281 = vadd.f32 0.0, %v4280
      %4282 = vdwg.mxu0
      %v4283 = vld [vmem:[#allocation2] sm:$0xff]
      %v4284 = vld [vmem:[#allocation2 + $0x8] sm:$0xff]
      %v4285 = vld [vmem:[#allocation2 + $0x10] sm:$0xff]
      %v4286 = vld [vmem:[#allocation2 + $0x18] sm:$0xff]
      %v4287 = vld [vmem:[#allocation2 + $0x20] sm:$0xff]
      %v4288 = vld [vmem:[#allocation2 + $0x28] sm:$0xff]
      %v4289 = vld [vmem:[#allocation2 + $0x30] sm:$0xff]
      %v4290 = vld [vmem:[#allocation2 + $0x38] sm:$0xff]
      %v4291 = vld [vmem:[#allocation2 + $0x40] sm:$0xff]
      %v4292 = vld [vmem:[#allocation2 + $0x48] sm:$0xff]
      %v4293 = vld [vmem:[#allocation2 + $0x50] sm:$0xff]
      %v4294 = vld [vmem:[#allocation2 + $0x58] sm:$0xff]
      %v4295 = vld [vmem:[#allocation2 + $0x60] sm:$0xff]
      %v4296 = vld [vmem:[#allocation2 + $0x68] sm:$0xff]
      %v4297 = vld [vmem:[#allocation2 + $0x70] sm:$0xff]
      %v4298 = vld [vmem:[#allocation2 + $0x78] sm:$0xff]
      %v4299 = vld [vmem:[#allocation2 + $0x80] sm:$0xff]
      %v4300 = vld [vmem:[#allocation2 + $0x88] sm:$0xff]
      %v4301 = vld [vmem:[#allocation2 + $0x90] sm:$0xff]
      %v4302 = vld [vmem:[#allocation2 + $0x98] sm:$0xff]
      %v4303 = vld [vmem:[#allocation2 + $0xa0] sm:$0xff]
      %v4304 = vld [vmem:[#allocation2 + $0xa8] sm:$0xff]
      %v4305 = vld [vmem:[#allocation2 + $0xb0] sm:$0xff]
      %v4306 = vld [vmem:[#allocation2 + $0xb8] sm:$0xff]
      %v4307 = vld [vmem:[#allocation2 + $0xc0] sm:$0xff]
      %v4308 = vld [vmem:[#allocation2 + $0xc8] sm:$0xff]
      %v4309 = vld [vmem:[#allocation2 + $0xd0] sm:$0xff]
      %v4310 = vld [vmem:[#allocation2 + $0xd8] sm:$0xff]
      %v4311 = vld [vmem:[#allocation2 + $0xe0] sm:$0xff]
      %v4312 = vld [vmem:[#allocation2 + $0xe8] sm:$0xff]
      %v4313 = vld [vmem:[#allocation2 + $0xf0] sm:$0xff]
      %v4314 = vld [vmem:[#allocation2 + $0xf8] sm:$0xff]
      %v4315 = vld [vmem:[#allocation2 + $0x100] sm:$0xff]
      %v4316 = vld [vmem:[#allocation2 + $0x108] sm:$0xff]
      %v4317 = vld [vmem:[#allocation2 + $0x110] sm:$0xff]
      %v4318 = vld [vmem:[#allocation2 + $0x118] sm:$0xff]
      %v4319 = vadd.f32 %v4283, %v4194
      %v4320 = vadd.f32 %v4284, %v4196
      %v4321 = vadd.f32 %v4285, %v4199
      %v4322 = vadd.f32 %v4286, %v4201
      %v4323 = vadd.f32 %v4287, %v4204
      %v4324 = vadd.f32 %v4288, %v4206
      %v4325 = vadd.f32 %v4289, %v4209
      %v4326 = vadd.f32 %v4290, %v4211
      %v4327 = vadd.f32 %v4291, %v4214
      %v4328 = vadd.f32 %v4292, %v4216
      %v4329 = vadd.f32 %v4293, %v4219
      %v4330 = vadd.f32 %v4294, %v4221
      %v4331 = vadd.f32 %v4295, %v4224
      %v4332 = vadd.f32 %v4296, %v4226
      %v4333 = vadd.f32 %v4297, %v4229
      %v4334 = vadd.f32 %v4298, %v4231
      %v4335 = vadd.f32 %v4299, %v4234
      %v4336 = vadd.f32 %v4300, %v4236
      %v4337 = vadd.f32 %v4301, %v4239
      %v4338 = vadd.f32 %v4302, %v4241
      %v4339 = vadd.f32 %v4303, %v4244
      %v4340 = vadd.f32 %v4304, %v4246
      %v4341 = vadd.f32 %v4305, %v4249
      %v4342 = vadd.f32 %v4306, %v4251
      %v4343 = vadd.f32 %v4307, %v4254
      %v4344 = vadd.f32 %v4308, %v4256
      %v4345 = vadd.f32 %v4309, %v4259
      %v4346 = vadd.f32 %v4310, %v4261
      %v4347 = vadd.f32 %v4311, %v4264
      %v4348 = vadd.f32 %v4312, %v4266
      %v4349 = vadd.f32 %v4313, %v4269
      %v4350 = vadd.f32 %v4314, %v4271
      %v4351 = vadd.f32 %v4315, %v4274
      %v4352 = vadd.f32 %v4316, %v4276
      %v4353 = vadd.f32 %v4317, %v4279
      %v4354 = vadd.f32 %v4318, %v4281
      %4355 = vst [vmem:[#allocation2] sm:$0xff] %v4319
      %4356 = vst [vmem:[#allocation2 + $0x8] sm:$0xff] %v4320
      %4357 = vst [vmem:[#allocation2 + $0x10] sm:$0xff] %v4321
      %4358 = vst [vmem:[#allocation2 + $0x18] sm:$0xff] %v4322
      %4359 = vst [vmem:[#allocation2 + $0x20] sm:$0xff] %v4323
      %4360 = vst [vmem:[#allocation2 + $0x28] sm:$0xff] %v4324
      %4361 = vst [vmem:[#allocation2 + $0x30] sm:$0xff] %v4325
      %4362 = vst [vmem:[#allocation2 + $0x38] sm:$0xff] %v4326
      %4363 = vst [vmem:[#allocation2 + $0x40] sm:$0xff] %v4327
      %4364 = vst [vmem:[#allocation2 + $0x48] sm:$0xff] %v4328
      %4365 = vst [vmem:[#allocation2 + $0x50] sm:$0xff] %v4329
      %4366 = vst [vmem:[#allocation2 + $0x58] sm:$0xff] %v4330
      %4367 = vst [vmem:[#allocation2 + $0x60] sm:$0xff] %v4331
      %4368 = vst [vmem:[#allocation2 + $0x68] sm:$0xff] %v4332
      %4369 = vst [vmem:[#allocation2 + $0x70] sm:$0xff] %v4333
      %4370 = vst [vmem:[#allocation2 + $0x78] sm:$0xff] %v4334
      %4371 = vst [vmem:[#allocation2 + $0x80] sm:$0xff] %v4335
      %4372 = vst [vmem:[#allocation2 + $0x88] sm:$0xff] %v4336
      %4373 = vst [vmem:[#allocation2 + $0x90] sm:$0xff] %v4337
      %4374 = vst [vmem:[#allocation2 + $0x98] sm:$0xff] %v4338
      %4375 = vst [vmem:[#allocation2 + $0xa0] sm:$0xff] %v4339
      %4376 = vst [vmem:[#allocation2 + $0xa8] sm:$0xff] %v4340
      %4377 = vst [vmem:[#allocation2 + $0xb0] sm:$0xff] %v4341
      %4378 = vst [vmem:[#allocation2 + $0xb8] sm:$0xff] %v4342
      %4379 = vst [vmem:[#allocation2 + $0xc0] sm:$0xff] %v4343
      %4380 = vst [vmem:[#allocation2 + $0xc8] sm:$0xff] %v4344
      %4381 = vst [vmem:[#allocation2 + $0xd0] sm:$0xff] %v4345
      %4382 = vst [vmem:[#allocation2 + $0xd8] sm:$0xff] %v4346
      %4383 = vst [vmem:[#allocation2 + $0xe0] sm:$0xff] %v4347
      %4384 = vst [vmem:[#allocation2 + $0xe8] sm:$0xff] %v4348
      %4385 = vst [vmem:[#allocation2 + $0xf0] sm:$0xff] %v4349
      %4386 = vst [vmem:[#allocation2 + $0xf8] sm:$0xff] %v4350
      %4387 = vst [vmem:[#allocation2 + $0x100] sm:$0xff] %v4351
      %4388 = vst [vmem:[#allocation2 + $0x108] sm:$0xff] %v4352
      %4389 = vst [vmem:[#allocation2 + $0x110] sm:$0xff] %v4353
      %4390 = vst [vmem:[#allocation2 + $0x118] sm:$0xff] %v4354
      %v4391 = vld [vmem:[#allocation2] sm:$0xff]
      %v4392 = vld [vmem:[#allocation2 + $0x8] sm:$0xff]
      %v4393 = vld [vmem:[#allocation2 + $0x10] sm:$0xff]
      %v4394 = vld [vmem:[#allocation2 + $0x18] sm:$0xff]
      %v4395 = vld [vmem:[#allocation2 + $0x20] sm:$0xff]
      %v4396 = vld [vmem:[#allocation2 + $0x28] sm:$0xff]
      %v4397 = vld [vmem:[#allocation2 + $0x30] sm:$0xff]
      %v4398 = vld [vmem:[#allocation2 + $0x38] sm:$0xff]
      %v4399 = vld [vmem:[#allocation2 + $0x40] sm:$0xff]
      %v4400 = vld [vmem:[#allocation2 + $0x48] sm:$0xff]
      %v4401 = vld [vmem:[#allocation2 + $0x50] sm:$0xff]
      %v4402 = vld [vmem:[#allocation2 + $0x58] sm:$0xff]
      %v4403 = vld [vmem:[#allocation2 + $0x60] sm:$0xff]
      %v4404 = vld [vmem:[#allocation2 + $0x68] sm:$0xff]
      %v4405 = vld [vmem:[#allocation2 + $0x70] sm:$0xff]
      %v4406 = vld [vmem:[#allocation2 + $0x78] sm:$0xff]
      %v4407 = vld [vmem:[#allocation2 + $0x80] sm:$0xff]
      %v4408 = vld [vmem:[#allocation2 + $0x88] sm:$0xff]
      %v4409 = vld [vmem:[#allocation2 + $0x90] sm:$0xff]
      %v4410 = vld [vmem:[#allocation2 + $0x98] sm:$0xff]
      %v4411 = vld [vmem:[#allocation2 + $0xa0] sm:$0xff]
      %v4412 = vld [vmem:[#allocation2 + $0xa8] sm:$0xff]
      %v4413 = vld [vmem:[#allocation2 + $0xb0] sm:$0xff]
      %v4414 = vld [vmem:[#allocation2 + $0xb8] sm:$0xff]
      %v4415 = vld [vmem:[#allocation2 + $0xc0] sm:$0xff]
      %v4416 = vld [vmem:[#allocation2 + $0xc8] sm:$0xff]
      %v4417 = vld [vmem:[#allocation2 + $0xd0] sm:$0xff]
      %v4418 = vld [vmem:[#allocation2 + $0xd8] sm:$0xff]
      %v4419 = vld [vmem:[#allocation2 + $0xe0] sm:$0xff]
      %v4420 = vld [vmem:[#allocation2 + $0xe8] sm:$0xff]
      %v4421 = vld [vmem:[#allocation2 + $0xf0] sm:$0xff]
      %v4422 = vld [vmem:[#allocation2 + $0xf8] sm:$0xff]
      %v4423 = vld [vmem:[#allocation2 + $0x100] sm:$0xff]
      %v4424 = vld [vmem:[#allocation2 + $0x108] sm:$0xff]
      %v4425 = vld [vmem:[%s213] sm:$0x1]
      %v4427 = vperm.slane %v4425, 0
      %v4429 = vadd.f32 %v4391, %v4427
      %v4430 = vadd.f32 %v4392, %v4427
      %v4431 = vadd.f32 %v4393, %v4427
      %v4432 = vadd.f32 %v4394, %v4427
      %v4433 = vadd.f32 %v4395, %v4427
      %v4434 = vadd.f32 %v4396, %v4427
      %v4435 = vadd.f32 %v4397, %v4427
      %v4436 = vadd.f32 %v4398, %v4427
      %v4437 = vadd.f32 %v4399, %v4427
      %v4438 = vadd.f32 %v4400, %v4427
      %v4439 = vadd.f32 %v4401, %v4427
      %v4440 = vadd.f32 %v4402, %v4427
      %v4441 = vadd.f32 %v4403, %v4427
      %v4442 = vadd.f32 %v4404, %v4427
      %v4443 = vadd.f32 %v4405, %v4427
      %v4444 = vadd.f32 %v4406, %v4427
      %v4445 = vadd.f32 %v4407, %v4427
      %v4446 = vadd.f32 %v4408, %v4427
      %v4447 = vadd.f32 %v4409, %v4427
      %v4448 = vadd.f32 %v4410, %v4427
      %v4449 = vadd.f32 %v4411, %v4427
      %v4450 = vadd.f32 %v4412, %v4427
      %v4451 = vadd.f32 %v4413, %v4427
      %v4452 = vadd.f32 %v4414, %v4427
      %v4453 = vadd.f32 %v4415, %v4427
      %v4454 = vadd.f32 %v4416, %v4427
      %v4455 = vadd.f32 %v4417, %v4427
      %v4456 = vadd.f32 %v4418, %v4427
      %v4457 = vadd.f32 %v4419, %v4427
      %v4458 = vadd.f32 %v4420, %v4427
      %v4459 = vadd.f32 %v4421, %v4427
      %v4460 = vadd.f32 %v4422, %v4427
      %v4461 = vadd.f32 %v4423, %v4427
      %v4462 = vadd.f32 %v4424, %v4427
      %v4463 = vmax.f32 %v4429, 0.0
      %v4464 = vmax.f32 %v4430, 0.0
      %v4465 = vmax.f32 %v4431, 0.0
      %v4466 = vmax.f32 %v4432, 0.0
      %v4467 = vmax.f32 %v4433, 0.0
      %v4468 = vmax.f32 %v4434, 0.0
      %v4469 = vmax.f32 %v4435, 0.0
      %v4470 = vmax.f32 %v4436, 0.0
      %v4471 = vmax.f32 %v4437, 0.0
      %v4472 = vmax.f32 %v4438, 0.0
      %v4473 = vmax.f32 %v4439, 0.0
      %v4474 = vmax.f32 %v4440, 0.0
      %v4475 = vmax.f32 %v4441, 0.0
      %v4476 = vmax.f32 %v4442, 0.0
      %v4477 = vmax.f32 %v4443, 0.0
      %v4478 = vmax.f32 %v4444, 0.0
      %v4479 = vmax.f32 %v4445, 0.0
      %v4480 = vmax.f32 %v4446, 0.0
      %v4481 = vmax.f32 %v4447, 0.0
      %v4482 = vmax.f32 %v4448, 0.0
      %v4483 = vmax.f32 %v4449, 0.0
      %v4484 = vmax.f32 %v4450, 0.0
      %v4485 = vmax.f32 %v4451, 0.0
      %v4486 = vmax.f32 %v4452, 0.0
      %v4487 = vmax.f32 %v4453, 0.0
      %v4488 = vmax.f32 %v4454, 0.0
      %v4489 = vmax.f32 %v4455, 0.0
      %v4490 = vmax.f32 %v4456, 0.0
      %v4491 = vmax.f32 %v4457, 0.0
      %v4492 = vmax.f32 %v4458, 0.0
      %v4493 = vmax.f32 %v4459, 0.0
      %v4494 = vmax.f32 %v4460, 0.0
      %v4495 = vmax.f32 %v4461, 0.0
      %v4496 = vmax.f32 %v4462, 0.0
      %v4531 = vrot.slane %v4463, 2
      %v4532 = vrot.slane %v4463, 4
      %v4533 = vrot.slane %v4463, 6
      %v4534 = vrot.slane %v4464, 2
      %v4535 = vrot.slane %v4464, 4
      %v4536 = vrot.slane %v4464, 6
      %v4537 = vrot.slane %v4465, 2
      %v4538 = vrot.slane %v4465, 4
      %v4539 = vrot.slane %v4465, 6
      %v4540 = vrot.slane %v4466, 2
      %v4541 = vrot.slane %v4466, 4
      %v4542 = vrot.slane %v4466, 6
      %v4543 = vrot.slane %v4467, 4
      %v4544 = vrot.slane %v4467, 6
      %v4545 = vrot.slane %v4468, 2
      %v4546 = vrot.slane %v4468, 4
      %v4547 = vrot.slane %v4468, 6
      %v4548 = vrot.slane %v4469, 2
      %v4549 = vrot.slane %v4469, 6
      %v4550 = vrot.slane %v4470, 2
      %v4551 = vrot.slane %v4470, 4
      %v4552 = vrot.slane %v4470, 6
      %v4553 = vrot.slane %v4471, 2
      %v4554 = vrot.slane %v4471, 4
      %v4555 = vrot.slane %v4472, 2
      %v4556 = vrot.slane %v4472, 4
      %v4557 = vrot.slane %v4472, 6
      %v4558 = vrot.slane %v4473, 2
      %v4559 = vrot.slane %v4473, 4
      %v4560 = vrot.slane %v4473, 6
      %v4561 = vrot.slane %v4474, 2
      %v4562 = vrot.slane %v4474, 4
      %v4563 = vrot.slane %v4474, 6
      %v4564 = vrot.slane %v4475, 2
      %v4565 = vrot.slane %v4475, 4
      %v4566 = vrot.slane %v4475, 6
      %v4567 = vrot.slane %v4476, 4
      %v4568 = vrot.slane %v4476, 6
      %v4569 = vrot.slane %v4477, 2
      %v4570 = vrot.slane %v4477, 4
      %v4571 = vrot.slane %v4477, 6
      %v4572 = vrot.slane %v4478, 2
      %v4573 = vrot.slane %v4478, 6
      %v4574 = vrot.slane %v4479, 2
      %v4575 = vrot.slane %v4479, 4
      %v4576 = vrot.slane %v4479, 6
      %v4577 = vrot.slane %v4480, 2
      %v4578 = vrot.slane %v4480, 4
      %v4579 = vrot.slane %v4481, 2
      %v4580 = vrot.slane %v4481, 4
      %v4581 = vrot.slane %v4481, 6
      %v4582 = vrot.slane %v4482, 2
      %v4583 = vrot.slane %v4482, 4
      %v4584 = vrot.slane %v4482, 6
      %v4585 = vrot.slane %v4483, 2
      %v4586 = vrot.slane %v4483, 4
      %v4587 = vrot.slane %v4483, 6
      %v4588 = vrot.slane %v4484, 2
      %v4589 = vrot.slane %v4484, 4
      %v4590 = vrot.slane %v4484, 6
      %v4591 = vrot.slane %v4485, 4
      %v4592 = vrot.slane %v4485, 6
      %v4593 = vrot.slane %v4486, 2
      %v4594 = vrot.slane %v4486, 4
      %v4595 = vrot.slane %v4486, 6
      %v4596 = vrot.slane %v4487, 2
      %v4597 = vrot.slane %v4487, 6
      %v4598 = vrot.slane %v4488, 2
      %v4599 = vrot.slane %v4488, 4
      %v4600 = vrot.slane %v4488, 6
      %v4601 = vrot.slane %v4489, 2
      %v4602 = vrot.slane %v4489, 4
      %v4603 = vrot.slane %v4490, 2
      %v4604 = vrot.slane %v4490, 4
      %v4605 = vrot.slane %v4490, 6
      %v4606 = vrot.slane %v4491, 2
      %v4607 = vrot.slane %v4491, 4
      %v4608 = vrot.slane %v4491, 6
      %v4609 = vrot.slane %v4492, 2
      %v4610 = vrot.slane %v4492, 4
      %v4611 = vrot.slane %v4492, 6
      %v4612 = vrot.slane %v4493, 2
      %v4613 = vrot.slane %v4493, 4
      %v4614 = vrot.slane %v4493, 6
      %v4615 = vrot.slane %v4494, 4
      %v4616 = vrot.slane %v4494, 6
      %v4617 = vrot.slane %v4495, 2
      %v4618 = vrot.slane %v4495, 4
      %v4619 = vrot.slane %v4495, 6
      %v4620 = vrot.slane %v4496, 2
      %vm4711 = vcmask 1040384
      %vm4712 = vcmask 1042434
      %vm4713 = vmor %vm4711, %vm4712
      %vm4714 = vcmask 1044484
      %vm4715 = vmor %vm4713, %vm4714
      %vm4716 = vcmask 1046534
      %vm4717 = vmor %vm4715, %vm4716
      %v4718 = vrot.slane %v4463, 7
      %v4719 = vrot.slane %v4718, 2
      %v4720 = vrot.slane %v4531, 7
      %v4721 = vsel %vm4717, %v4719, %v4720
      %v4722 = vrot.slane %v4720, 2
      %v4723 = vrot.slane %v4532, 7
      %v4724 = vsel %vm4717, %v4722, %v4723
      %v4725 = vrot.slane %v4723, 2
      %v4726 = vrot.slane %v4533, 7
      %v4727 = vsel %vm4717, %v4725, %v4726
      %v4728 = vrot.slane %v4726, 2
      %v4729 = vrot.slane %v4464, 7
      %v4730 = vsel %vm4717, %v4728, %v4729
      %v4731 = vrot.slane %v4729, 2
      %v4732 = vrot.slane %v4534, 7
      %v4733 = vsel %vm4717, %v4731, %v4732
      %v4734 = vrot.slane %v4732, 2
      %v4735 = vrot.slane %v4535, 7
      %v4736 = vsel %vm4717, %v4734, %v4735
      %v4737 = vrot.slane %v4735, 2
      %v4738 = vrot.slane %v4536, 7
      %v4739 = vsel %vm4717, %v4737, %v4738
      %v4740 = vrot.slane %v4537, 7
      %v4741 = vrot.slane %v4740, 2
      %v4742 = vrot.slane %v4538, 7
      %v4743 = vsel %vm4717, %v4741, %v4742
      %v4744 = vrot.slane %v4742, 2
      %v4745 = vrot.slane %v4539, 7
      %v4746 = vsel %vm4717, %v4744, %v4745
      %v4747 = vrot.slane %v4745, 2
      %v4748 = vrot.slane %v4466, 7
      %v4749 = vsel %vm4717, %v4747, %v4748
      %v4750 = vrot.slane %v4748, 2
      %v4751 = vrot.slane %v4540, 7
      %v4752 = vsel %vm4717, %v4750, %v4751
      %v4753 = vrot.slane %v4751, 2
      %v4754 = vrot.slane %v4541, 7
      %v4755 = vsel %vm4717, %v4753, %v4754
      %v4756 = vrot.slane %v4754, 2
      %v4757 = vrot.slane %v4542, 7
      %v4758 = vsel %vm4717, %v4756, %v4757
      %v4759 = vrot.slane %v4757, 2
      %v4760 = vrot.slane %v4467, 7
      %v4761 = vsel %vm4717, %v4759, %v4760
      %v4762 = vrot.slane %v4543, 7
      %v4763 = vrot.slane %v4762, 2
      %v4764 = vrot.slane %v4544, 7
      %v4765 = vsel %vm4717, %v4763, %v4764
      %v4766 = vrot.slane %v4764, 2
      %v4767 = vrot.slane %v4468, 7
      %v4768 = vsel %vm4717, %v4766, %v4767
      %v4769 = vrot.slane %v4767, 2
      %v4770 = vrot.slane %v4545, 7
      %v4771 = vsel %vm4717, %v4769, %v4770
      %v4772 = vrot.slane %v4770, 2
      %v4773 = vrot.slane %v4546, 7
      %v4774 = vsel %vm4717, %v4772, %v4773
      %v4775 = vrot.slane %v4773, 2
      %v4776 = vrot.slane %v4547, 7
      %v4777 = vsel %vm4717, %v4775, %v4776
      %v4778 = vrot.slane %v4776, 2
      %v4779 = vrot.slane %v4469, 7
      %v4780 = vsel %vm4717, %v4778, %v4779
      %v4781 = vrot.slane %v4779, 2
      %v4782 = vrot.slane %v4548, 7
      %v4783 = vsel %vm4717, %v4781, %v4782
      %v4784 = vrot.slane %v4549, 7
      %v4785 = vrot.slane %v4784, 2
      %v4786 = vrot.slane %v4470, 7
      %v4787 = vsel %vm4717, %v4785, %v4786
      %v4788 = vrot.slane %v4786, 2
      %v4789 = vrot.slane %v4550, 7
      %v4790 = vsel %vm4717, %v4788, %v4789
      %v4791 = vrot.slane %v4789, 2
      %v4792 = vrot.slane %v4551, 7
      %v4793 = vsel %vm4717, %v4791, %v4792
      %v4794 = vrot.slane %v4792, 2
      %v4795 = vrot.slane %v4552, 7
      %v4796 = vsel %vm4717, %v4794, %v4795
      %v4797 = vrot.slane %v4795, 2
      %v4798 = vrot.slane %v4471, 7
      %v4799 = vsel %vm4717, %v4797, %v4798
      %v4800 = vrot.slane %v4798, 2
      %v4801 = vrot.slane %v4553, 7
      %v4802 = vsel %vm4717, %v4800, %v4801
      %v4803 = vrot.slane %v4801, 2
      %v4804 = vrot.slane %v4554, 7
      %v4805 = vsel %vm4717, %v4803, %v4804
      %v4806 = vrot.slane %v4472, 7
      %v4807 = vrot.slane %v4806, 2
      %v4808 = vrot.slane %v4555, 7
      %v4809 = vsel %vm4717, %v4807, %v4808
      %v4810 = vrot.slane %v4808, 2
      %v4811 = vrot.slane %v4556, 7
      %v4812 = vsel %vm4717, %v4810, %v4811
      %v4813 = vrot.slane %v4811, 2
      %v4814 = vrot.slane %v4557, 7
      %v4815 = vsel %vm4717, %v4813, %v4814
      %v4816 = vrot.slane %v4814, 2
      %v4817 = vrot.slane %v4473, 7
      %v4818 = vsel %vm4717, %v4816, %v4817
      %v4819 = vrot.slane %v4817, 2
      %v4820 = vrot.slane %v4558, 7
      %v4821 = vsel %vm4717, %v4819, %v4820
      %v4822 = vrot.slane %v4820, 2
      %v4823 = vrot.slane %v4559, 7
      %v4824 = vsel %vm4717, %v4822, %v4823
      %v4825 = vrot.slane %v4823, 2
      %v4826 = vrot.slane %v4560, 7
      %v4827 = vsel %vm4717, %v4825, %v4826
      %v4828 = vrot.slane %v4561, 7
      %v4829 = vrot.slane %v4828, 2
      %v4830 = vrot.slane %v4562, 7
      %v4831 = vsel %vm4717, %v4829, %v4830
      %v4832 = vrot.slane %v4830, 2
      %v4833 = vrot.slane %v4563, 7
      %v4834 = vsel %vm4717, %v4832, %v4833
      %v4835 = vrot.slane %v4833, 2
      %v4836 = vrot.slane %v4475, 7
      %v4837 = vsel %vm4717, %v4835, %v4836
      %v4838 = vrot.slane %v4836, 2
      %v4839 = vrot.slane %v4564, 7
      %v4840 = vsel %vm4717, %v4838, %v4839
      %v4841 = vrot.slane %v4839, 2
      %v4842 = vrot.slane %v4565, 7
      %v4843 = vsel %vm4717, %v4841, %v4842
      %v4844 = vrot.slane %v4842, 2
      %v4845 = vrot.slane %v4566, 7
      %v4846 = vsel %vm4717, %v4844, %v4845
      %v4847 = vrot.slane %v4845, 2
      %v4848 = vrot.slane %v4476, 7
      %v4849 = vsel %vm4717, %v4847, %v4848
      %v4850 = vrot.slane %v4567, 7
      %v4851 = vrot.slane %v4850, 2
      %v4852 = vrot.slane %v4568, 7
      %v4853 = vsel %vm4717, %v4851, %v4852
      %v4854 = vrot.slane %v4852, 2
      %v4855 = vrot.slane %v4477, 7
      %v4856 = vsel %vm4717, %v4854, %v4855
      %v4857 = vrot.slane %v4855, 2
      %v4858 = vrot.slane %v4569, 7
      %v4859 = vsel %vm4717, %v4857, %v4858
      %v4860 = vrot.slane %v4858, 2
      %v4861 = vrot.slane %v4570, 7
      %v4862 = vsel %vm4717, %v4860, %v4861
      %v4863 = vrot.slane %v4861, 2
      %v4864 = vrot.slane %v4571, 7
      %v4865 = vsel %vm4717, %v4863, %v4864
      %v4866 = vrot.slane %v4864, 2
      %v4867 = vrot.slane %v4478, 7
      %v4868 = vsel %vm4717, %v4866, %v4867
      %v4869 = vrot.slane %v4867, 2
      %v4870 = vrot.slane %v4572, 7
      %v4871 = vsel %vm4717, %v4869, %v4870
      %v4872 = vrot.slane %v4573, 7
      %v4873 = vrot.slane %v4872, 2
      %v4874 = vrot.slane %v4479, 7
      %v4875 = vsel %vm4717, %v4873, %v4874
      %v4876 = vrot.slane %v4874, 2
      %v4877 = vrot.slane %v4574, 7
      %v4878 = vsel %vm4717, %v4876, %v4877
      %v4879 = vrot.slane %v4877, 2
      %v4880 = vrot.slane %v4575, 7
      %v4881 = vsel %vm4717, %v4879, %v4880
      %v4882 = vrot.slane %v4880, 2
      %v4883 = vrot.slane %v4576, 7
      %v4884 = vsel %vm4717, %v4882, %v4883
      %v4885 = vrot.slane %v4883, 2
      %v4886 = vrot.slane %v4480, 7
      %v4887 = vsel %vm4717, %v4885, %v4886
      %v4888 = vrot.slane %v4886, 2
      %v4889 = vrot.slane %v4577, 7
      %v4890 = vsel %vm4717, %v4888, %v4889
      %v4891 = vrot.slane %v4889, 2
      %v4892 = vrot.slane %v4578, 7
      %v4893 = vsel %vm4717, %v4891, %v4892
      %v4894 = vrot.slane %v4481, 7
      %v4895 = vrot.slane %v4894, 2
      %v4896 = vrot.slane %v4579, 7
      %v4897 = vsel %vm4717, %v4895, %v4896
      %v4898 = vrot.slane %v4896, 2
      %v4899 = vrot.slane %v4580, 7
      %v4900 = vsel %vm4717, %v4898, %v4899
      %v4901 = vrot.slane %v4899, 2
      %v4902 = vrot.slane %v4581, 7
      %v4903 = vsel %vm4717, %v4901, %v4902
      %v4904 = vrot.slane %v4902, 2
      %v4905 = vrot.slane %v4482, 7
      %v4906 = vsel %vm4717, %v4904, %v4905
      %v4907 = vrot.slane %v4905, 2
      %v4908 = vrot.slane %v4582, 7
      %v4909 = vsel %vm4717, %v4907, %v4908
      %v4910 = vrot.slane %v4908, 2
      %v4911 = vrot.slane %v4583, 7
      %v4912 = vsel %vm4717, %v4910, %v4911
      %v4913 = vrot.slane %v4911, 2
      %v4914 = vrot.slane %v4584, 7
      %v4915 = vsel %vm4717, %v4913, %v4914
      %v4916 = vrot.slane %v4585, 7
      %v4917 = vrot.slane %v4916, 2
      %v4918 = vrot.slane %v4586, 7
      %v4919 = vsel %vm4717, %v4917, %v4918
      %v4920 = vrot.slane %v4918, 2
      %v4921 = vrot.slane %v4587, 7
      %v4922 = vsel %vm4717, %v4920, %v4921
      %v4923 = vrot.slane %v4921, 2
      %v4924 = vrot.slane %v4484, 7
      %v4925 = vsel %vm4717, %v4923, %v4924
      %v4926 = vrot.slane %v4924, 2
      %v4927 = vrot.slane %v4588, 7
      %v4928 = vsel %vm4717, %v4926, %v4927
      %v4929 = vrot.slane %v4927, 2
      %v4930 = vrot.slane %v4589, 7
      %v4931 = vsel %vm4717, %v4929, %v4930
      %v4932 = vrot.slane %v4930, 2
      %v4933 = vrot.slane %v4590, 7
      %v4934 = vsel %vm4717, %v4932, %v4933
      %v4935 = vrot.slane %v4933, 2
      %v4936 = vrot.slane %v4485, 7
      %v4937 = vsel %vm4717, %v4935, %v4936
      %v4938 = vrot.slane %v4591, 7
      %v4939 = vrot.slane %v4938, 2
      %v4940 = vrot.slane %v4592, 7
      %v4941 = vsel %vm4717, %v4939, %v4940
      %v4942 = vrot.slane %v4940, 2
      %v4943 = vrot.slane %v4486, 7
      %v4944 = vsel %vm4717, %v4942, %v4943
      %v4945 = vrot.slane %v4943, 2
      %v4946 = vrot.slane %v4593, 7
      %v4947 = vsel %vm4717, %v4945, %v4946
      %v4948 = vrot.slane %v4946, 2
      %v4949 = vrot.slane %v4594, 7
      %v4950 = vsel %vm4717, %v4948, %v4949
      %v4951 = vrot.slane %v4949, 2
      %v4952 = vrot.slane %v4595, 7
      %v4953 = vsel %vm4717, %v4951, %v4952
      %v4954 = vrot.slane %v4952, 2
      %v4955 = vrot.slane %v4487, 7
      %v4956 = vsel %vm4717, %v4954, %v4955
      %v4957 = vrot.slane %v4955, 2
      %v4958 = vrot.slane %v4596, 7
      %v4959 = vsel %vm4717, %v4957, %v4958
      %v4960 = vrot.slane %v4597, 7
      %v4961 = vrot.slane %v4960, 2
      %v4962 = vrot.slane %v4488, 7
      %v4963 = vsel %vm4717, %v4961, %v4962
      %v4964 = vrot.slane %v4962, 2
      %v4965 = vrot.slane %v4598, 7
      %v4966 = vsel %vm4717, %v4964, %v4965
      %v4967 = vrot.slane %v4965, 2
      %v4968 = vrot.slane %v4599, 7
      %v4969 = vsel %vm4717, %v4967, %v4968
      %v4970 = vrot.slane %v4968, 2
      %v4971 = vrot.slane %v4600, 7
      %v4972 = vsel %vm4717, %v4970, %v4971
      %v4973 = vrot.slane %v4971, 2
      %v4974 = vrot.slane %v4489, 7
      %v4975 = vsel %vm4717, %v4973, %v4974
      %v4976 = vrot.slane %v4974, 2
      %v4977 = vrot.slane %v4601, 7
      %v4978 = vsel %vm4717, %v4976, %v4977
      %v4979 = vrot.slane %v4977, 2
      %v4980 = vrot.slane %v4602, 7
      %v4981 = vsel %vm4717, %v4979, %v4980
      %v4982 = vrot.slane %v4490, 7
      %v4983 = vrot.slane %v4982, 2
      %v4984 = vrot.slane %v4603, 7
      %v4985 = vsel %vm4717, %v4983, %v4984
      %v4986 = vrot.slane %v4984, 2
      %v4987 = vrot.slane %v4604, 7
      %v4988 = vsel %vm4717, %v4986, %v4987
      %v4989 = vrot.slane %v4987, 2
      %v4990 = vrot.slane %v4605, 7
      %v4991 = vsel %vm4717, %v4989, %v4990
      %v4992 = vrot.slane %v4990, 2
      %v4993 = vrot.slane %v4491, 7
      %v4994 = vsel %vm4717, %v4992, %v4993
      %v4995 = vrot.slane %v4993, 2
      %v4996 = vrot.slane %v4606, 7
      %v4997 = vsel %vm4717, %v4995, %v4996
      %v4998 = vrot.slane %v4996, 2
      %v4999 = vrot.slane %v4607, 7
      %v5000 = vsel %vm4717, %v4998, %v4999
      %v5001 = vrot.slane %v4999, 2
      %v5002 = vrot.slane %v4608, 7
      %v5003 = vsel %vm4717, %v5001, %v5002
      %v5004 = vrot.slane %v4609, 7
      %v5005 = vrot.slane %v5004, 2
      %v5006 = vrot.slane %v4610, 7
      %v5007 = vsel %vm4717, %v5005, %v5006
      %v5008 = vrot.slane %v5006, 2
      %v5009 = vrot.slane %v4611, 7
      %v5010 = vsel %vm4717, %v5008, %v5009
      %v5011 = vrot.slane %v5009, 2
      %v5012 = vrot.slane %v4493, 7
      %v5013 = vsel %vm4717, %v5011, %v5012
      %v5014 = vrot.slane %v5012, 2
      %v5015 = vrot.slane %v4612, 7
      %v5016 = vsel %vm4717, %v5014, %v5015
      %v5017 = vrot.slane %v5015, 2
      %v5018 = vrot.slane %v4613, 7
      %v5019 = vsel %vm4717, %v5017, %v5018
      %v5020 = vrot.slane %v5018, 2
      %v5021 = vrot.slane %v4614, 7
      %v5022 = vsel %vm4717, %v5020, %v5021
      %v5023 = vrot.slane %v5021, 2
      %v5024 = vrot.slane %v4494, 7
      %v5025 = vsel %vm4717, %v5023, %v5024
      %v5026 = vrot.slane %v4615, 7
      %v5027 = vrot.slane %v5026, 2
      %v5028 = vrot.slane %v4616, 7
      %v5029 = vsel %vm4717, %v5027, %v5028
      %v5030 = vrot.slane %v5028, 2
      %v5031 = vrot.slane %v4495, 7
      %v5032 = vsel %vm4717, %v5030, %v5031
      %v5033 = vrot.slane %v5031, 2
      %v5034 = vrot.slane %v4617, 7
      %v5035 = vsel %vm4717, %v5033, %v5034
      %v5036 = vrot.slane %v5034, 2
      %v5037 = vrot.slane %v4618, 7
      %v5038 = vsel %vm4717, %v5036, %v5037
      %v5039 = vrot.slane %v5037, 2
      %v5040 = vrot.slane %v4619, 7
      %v5041 = vsel %vm4717, %v5039, %v5040
      %v5042 = vrot.slane %v5040, 2
      %v5043 = vrot.slane %v4496, 7
      %v5044 = vsel %vm4717, %v5042, %v5043
      %v5045 = vrot.slane %v5043, 2
      %v5046 = vrot.slane %v4620, 7
      %v5047 = vsel %vm4717, %v5045, %v5046
      %v5153 = vmax.f32 %v4463, %v4721
      %v5154 = vmax.f32 %v4531, %v4724
      %v5155 = vmax.f32 %v4532, %v4727
      %v5156 = vmax.f32 %v4533, %v4730
      %v5157 = vmax.f32 %v4464, %v4733
      %v5158 = vmax.f32 %v4534, %v4736
      %v5159 = vmax.f32 %v4535, %v4739
      %v5160 = vmax.f32 %v4537, %v4743
      %v5161 = vmax.f32 %v4538, %v4746
      %v5162 = vmax.f32 %v4539, %v4749
      %v5163 = vmax.f32 %v4466, %v4752
      %v5164 = vmax.f32 %v4540, %v4755
      %v5165 = vmax.f32 %v4541, %v4758
      %v5166 = vmax.f32 %v4542, %v4761
      %v5167 = vmax.f32 %v4543, %v4765
      %v5168 = vmax.f32 %v4544, %v4768
      %v5169 = vmax.f32 %v4468, %v4771
      %v5170 = vmax.f32 %v4545, %v4774
      %v5171 = vmax.f32 %v4546, %v4777
      %v5172 = vmax.f32 %v4547, %v4780
      %v5173 = vmax.f32 %v4469, %v4783
      %v5174 = vmax.f32 %v4549, %v4787
      %v5175 = vmax.f32 %v4470, %v4790
      %v5176 = vmax.f32 %v4550, %v4793
      %v5177 = vmax.f32 %v4551, %v4796
      %v5178 = vmax.f32 %v4552, %v4799
      %v5179 = vmax.f32 %v4471, %v4802
      %v5180 = vmax.f32 %v4553, %v4805
      %v5181 = vmax.f32 %v4472, %v4809
      %v5182 = vmax.f32 %v4555, %v4812
      %v5183 = vmax.f32 %v4556, %v4815
      %v5184 = vmax.f32 %v4557, %v4818
      %v5185 = vmax.f32 %v4473, %v4821
      %v5186 = vmax.f32 %v4558, %v4824
      %v5187 = vmax.f32 %v4559, %v4827
      %v5188 = vmax.f32 %v4561, %v4831
      %v5189 = vmax.f32 %v4562, %v4834
      %v5190 = vmax.f32 %v4563, %v4837
      %v5191 = vmax.f32 %v4475, %v4840
      %v5192 = vmax.f32 %v4564, %v4843
      %v5193 = vmax.f32 %v4565, %v4846
      %v5194 = vmax.f32 %v4566, %v4849
      %v5195 = vmax.f32 %v4567, %v4853
      %v5196 = vmax.f32 %v4568, %v4856
      %v5197 = vmax.f32 %v4477, %v4859
      %v5198 = vmax.f32 %v4569, %v4862
      %v5199 = vmax.f32 %v4570, %v4865
      %v5200 = vmax.f32 %v4571, %v4868
      %v5201 = vmax.f32 %v4478, %v4871
      %v5202 = vmax.f32 %v4573, %v4875
      %v5203 = vmax.f32 %v4479, %v4878
      %v5204 = vmax.f32 %v4574, %v4881
      %v5205 = vmax.f32 %v4575, %v4884
      %v5206 = vmax.f32 %v4576, %v4887
      %v5207 = vmax.f32 %v4480, %v4890
      %v5208 = vmax.f32 %v4577, %v4893
      %v5209 = vmax.f32 %v4481, %v4897
      %v5210 = vmax.f32 %v4579, %v4900
      %v5211 = vmax.f32 %v4580, %v4903
      %v5212 = vmax.f32 %v4581, %v4906
      %v5213 = vmax.f32 %v4482, %v4909
      %v5214 = vmax.f32 %v4582, %v4912
      %v5215 = vmax.f32 %v4583, %v4915
      %v5216 = vmax.f32 %v4585, %v4919
      %v5217 = vmax.f32 %v4586, %v4922
      %v5218 = vmax.f32 %v4587, %v4925
      %v5219 = vmax.f32 %v4484, %v4928
      %v5220 = vmax.f32 %v4588, %v4931
      %v5221 = vmax.f32 %v4589, %v4934
      %v5222 = vmax.f32 %v4590, %v4937
      %v5223 = vmax.f32 %v4591, %v4941
      %v5224 = vmax.f32 %v4592, %v4944
      %v5225 = vmax.f32 %v4486, %v4947
      %v5226 = vmax.f32 %v4593, %v4950
      %v5227 = vmax.f32 %v4594, %v4953
      %v5228 = vmax.f32 %v4595, %v4956
      %v5229 = vmax.f32 %v4487, %v4959
      %v5230 = vmax.f32 %v4597, %v4963
      %v5231 = vmax.f32 %v4488, %v4966
      %v5232 = vmax.f32 %v4598, %v4969
      %v5233 = vmax.f32 %v4599, %v4972
      %v5234 = vmax.f32 %v4600, %v4975
      %v5235 = vmax.f32 %v4489, %v4978
      %v5236 = vmax.f32 %v4601, %v4981
      %v5237 = vmax.f32 %v4490, %v4985
      %v5238 = vmax.f32 %v4603, %v4988
      %v5239 = vmax.f32 %v4604, %v4991
      %v5240 = vmax.f32 %v4605, %v4994
      %v5241 = vmax.f32 %v4491, %v4997
      %v5242 = vmax.f32 %v4606, %v5000
      %v5243 = vmax.f32 %v4607, %v5003
      %v5244 = vmax.f32 %v4609, %v5007
      %v5245 = vmax.f32 %v4610, %v5010
      %v5246 = vmax.f32 %v4611, %v5013
      %v5247 = vmax.f32 %v4493, %v5016
      %v5248 = vmax.f32 %v4612, %v5019
      %v5249 = vmax.f32 %v4613, %v5022
      %v5250 = vmax.f32 %v4614, %v5025
      %v5251 = vmax.f32 %v4615, %v5029
      %v5252 = vmax.f32 %v4616, %v5032
      %v5253 = vmax.f32 %v4495, %v5035
      %v5254 = vmax.f32 %v4617, %v5038
      %v5255 = vmax.f32 %v4618, %v5041
      %v5256 = vmax.f32 %v4619, %v5044
      %v5257 = vmax.f32 %v4496, %v5047
      %v5258 = vmax.f32 %v5153, %v4531
      %v5259 = vmax.f32 %v5154, %v4532
      %v5260 = vmax.f32 %v5155, %v4533
      %v5261 = vmax.f32 %v5156, %v4464
      %v5262 = vmax.f32 %v5157, %v4534
      %v5263 = vmax.f32 %v5158, %v4535
      %v5264 = vmax.f32 %v5159, %v4536
      %v5265 = vmax.f32 %v5160, %v4538
      %v5266 = vmax.f32 %v5161, %v4539
      %v5267 = vmax.f32 %v5162, %v4466
      %v5268 = vmax.f32 %v5163, %v4540
      %v5269 = vmax.f32 %v5164, %v4541
      %v5270 = vmax.f32 %v5165, %v4542
      %v5271 = vmax.f32 %v5166, %v4467
      %v5272 = vmax.f32 %v5167, %v4544
      %v5273 = vmax.f32 %v5168, %v4468
      %v5274 = vmax.f32 %v5169, %v4545
      %v5275 = vmax.f32 %v5170, %v4546
      %v5276 = vmax.f32 %v5171, %v4547
      %v5277 = vmax.f32 %v5172, %v4469
      %v5278 = vmax.f32 %v5173, %v4548
      %v5279 = vmax.f32 %v5174, %v4470
      %v5280 = vmax.f32 %v5175, %v4550
      %v5281 = vmax.f32 %v5176, %v4551
      %v5282 = vmax.f32 %v5177, %v4552
      %v5283 = vmax.f32 %v5178, %v4471
      %v5284 = vmax.f32 %v5179, %v4553
      %v5285 = vmax.f32 %v5180, %v4554
      %v5286 = vmax.f32 %v5181, %v4555
      %v5287 = vmax.f32 %v5182, %v4556
      %v5288 = vmax.f32 %v5183, %v4557
      %v5289 = vmax.f32 %v5184, %v4473
      %v5290 = vmax.f32 %v5185, %v4558
      %v5291 = vmax.f32 %v5186, %v4559
      %v5292 = vmax.f32 %v5187, %v4560
      %v5293 = vmax.f32 %v5188, %v4562
      %v5294 = vmax.f32 %v5189, %v4563
      %v5295 = vmax.f32 %v5190, %v4475
      %v5296 = vmax.f32 %v5191, %v4564
      %v5297 = vmax.f32 %v5192, %v4565
      %v5298 = vmax.f32 %v5193, %v4566
      %v5299 = vmax.f32 %v5194, %v4476
      %v5300 = vmax.f32 %v5195, %v4568
      %v5301 = vmax.f32 %v5196, %v4477
      %v5302 = vmax.f32 %v5197, %v4569
      %v5303 = vmax.f32 %v5198, %v4570
      %v5304 = vmax.f32 %v5199, %v4571
      %v5305 = vmax.f32 %v5200, %v4478
      %v5306 = vmax.f32 %v5201, %v4572
      %v5307 = vmax.f32 %v5202, %v4479
      %v5308 = vmax.f32 %v5203, %v4574
      %v5309 = vmax.f32 %v5204, %v4575
      %v5310 = vmax.f32 %v5205, %v4576
      %v5311 = vmax.f32 %v5206, %v4480
      %v5312 = vmax.f32 %v5207, %v4577
      %v5313 = vmax.f32 %v5208, %v4578
      %v5314 = vmax.f32 %v5209, %v4579
      %v5315 = vmax.f32 %v5210, %v4580
      %v5316 = vmax.f32 %v5211, %v4581
      %v5317 = vmax.f32 %v5212, %v4482
      %v5318 = vmax.f32 %v5213, %v4582
      %v5319 = vmax.f32 %v5214, %v4583
      %v5320 = vmax.f32 %v5215, %v4584
      %v5321 = vmax.f32 %v5216, %v4586
      %v5322 = vmax.f32 %v5217, %v4587
      %v5323 = vmax.f32 %v5218, %v4484
      %v5324 = vmax.f32 %v5219, %v4588
      %v5325 = vmax.f32 %v5220, %v4589
      %v5326 = vmax.f32 %v5221, %v4590
      %v5327 = vmax.f32 %v5222, %v4485
      %v5328 = vmax.f32 %v5223, %v4592
      %v5329 = vmax.f32 %v5224, %v4486
      %v5330 = vmax.f32 %v5225, %v4593
      %v5331 = vmax.f32 %v5226, %v4594
      %v5332 = vmax.f32 %v5227, %v4595
      %v5333 = vmax.f32 %v5228, %v4487
      %v5334 = vmax.f32 %v5229, %v4596
      %v5335 = vmax.f32 %v5230, %v4488
      %v5336 = vmax.f32 %v5231, %v4598
      %v5337 = vmax.f32 %v5232, %v4599
      %v5338 = vmax.f32 %v5233, %v4600
      %v5339 = vmax.f32 %v5234, %v4489
      %v5340 = vmax.f32 %v5235, %v4601
      %v5341 = vmax.f32 %v5236, %v4602
      %v5342 = vmax.f32 %v5237, %v4603
      %v5343 = vmax.f32 %v5238, %v4604
      %v5344 = vmax.f32 %v5239, %v4605
      %v5345 = vmax.f32 %v5240, %v4491
      %v5346 = vmax.f32 %v5241, %v4606
      %v5347 = vmax.f32 %v5242, %v4607
      %v5348 = vmax.f32 %v5243, %v4608
      %v5349 = vmax.f32 %v5244, %v4610
      %v5350 = vmax.f32 %v5245, %v4611
      %v5351 = vmax.f32 %v5246, %v4493
      %v5352 = vmax.f32 %v5247, %v4612
      %v5353 = vmax.f32 %v5248, %v4613
      %v5354 = vmax.f32 %v5249, %v4614
      %v5355 = vmax.f32 %v5250, %v4494
      %v5356 = vmax.f32 %v5251, %v4616
      %v5357 = vmax.f32 %v5252, %v4495
      %v5358 = vmax.f32 %v5253, %v4617
      %v5359 = vmax.f32 %v5254, %v4618
      %v5360 = vmax.f32 %v5255, %v4619
      %v5361 = vmax.f32 %v5256, %v4496
      %v5362 = vmax.f32 %v5257, %v4620
      %v5363 = vmax.f32 %v5258, %v5265
      %v5364 = vmax.f32 %v5259, %v5266
      %v5365 = vmax.f32 %v5260, %v5267
      %v5366 = vmax.f32 %v5261, %v5268
      %v5367 = vmax.f32 %v5262, %v5269
      %v5368 = vmax.f32 %v5263, %v5270
      %v5369 = vmax.f32 %v5264, %v5271
      %v5370 = vmax.f32 %v5272, %v5279
      %v5371 = vmax.f32 %v5273, %v5280
      %v5372 = vmax.f32 %v5274, %v5281
      %v5373 = vmax.f32 %v5275, %v5282
      %v5374 = vmax.f32 %v5276, %v5283
      %v5375 = vmax.f32 %v5277, %v5284
      %v5376 = vmax.f32 %v5278, %v5285
      %v5377 = vmax.f32 %v5286, %v5293
      %v5378 = vmax.f32 %v5287, %v5294
      %v5379 = vmax.f32 %v5288, %v5295
      %v5380 = vmax.f32 %v5289, %v5296
      %v5381 = vmax.f32 %v5290, %v5297
      %v5382 = vmax.f32 %v5291, %v5298
      %v5383 = vmax.f32 %v5292, %v5299
      %v5384 = vmax.f32 %v5300, %v5307
      %v5385 = vmax.f32 %v5301, %v5308
      %v5386 = vmax.f32 %v5302, %v5309
      %v5387 = vmax.f32 %v5303, %v5310
      %v5388 = vmax.f32 %v5304, %v5311
      %v5389 = vmax.f32 %v5305, %v5312
      %v5390 = vmax.f32 %v5306, %v5313
      %v5391 = vmax.f32 %v5314, %v5321
      %v5392 = vmax.f32 %v5315, %v5322
      %v5393 = vmax.f32 %v5316, %v5323
      %v5394 = vmax.f32 %v5317, %v5324
      %v5395 = vmax.f32 %v5318, %v5325
      %v5396 = vmax.f32 %v5319, %v5326
      %v5397 = vmax.f32 %v5320, %v5327
      %v5398 = vmax.f32 %v5328, %v5335
      %v5399 = vmax.f32 %v5329, %v5336
      %v5400 = vmax.f32 %v5330, %v5337
      %v5401 = vmax.f32 %v5331, %v5338
      %v5402 = vmax.f32 %v5332, %v5339
      %v5403 = vmax.f32 %v5333, %v5340
      %v5404 = vmax.f32 %v5334, %v5341
      %v5405 = vmax.f32 %v5342, %v5349
      %v5406 = vmax.f32 %v5343, %v5350
      %v5407 = vmax.f32 %v5344, %v5351
      %v5408 = vmax.f32 %v5345, %v5352
      %v5409 = vmax.f32 %v5346, %v5353
      %v5410 = vmax.f32 %v5347, %v5354
      %v5411 = vmax.f32 %v5348, %v5355
      %v5412 = vmax.f32 %v5363, %v5272
      %v5413 = vmax.f32 %v5364, %v5273
      %v5414 = vmax.f32 %v5365, %v5274
      %v5415 = vmax.f32 %v5366, %v5275
      %v5416 = vmax.f32 %v5367, %v5276
      %v5417 = vmax.f32 %v5368, %v5277
      %v5418 = vmax.f32 %v5369, %v5278
      %v5419 = vmax.f32 %v5370, %v5286
      %v5420 = vmax.f32 %v5371, %v5287
      %v5421 = vmax.f32 %v5372, %v5288
      %v5422 = vmax.f32 %v5373, %v5289
      %v5423 = vmax.f32 %v5374, %v5290
      %v5424 = vmax.f32 %v5375, %v5291
      %v5425 = vmax.f32 %v5376, %v5292
      %v5426 = vmax.f32 %v5377, %v5300
      %v5427 = vmax.f32 %v5378, %v5301
      %v5428 = vmax.f32 %v5379, %v5302
      %v5429 = vmax.f32 %v5380, %v5303
      %v5430 = vmax.f32 %v5381, %v5304
      %v5431 = vmax.f32 %v5382, %v5305
      %v5432 = vmax.f32 %v5383, %v5306
      %v5433 = vmax.f32 %v5384, %v5314
      %v5434 = vmax.f32 %v5385, %v5315
      %v5435 = vmax.f32 %v5386, %v5316
      %v5436 = vmax.f32 %v5387, %v5317
      %v5437 = vmax.f32 %v5388, %v5318
      %v5438 = vmax.f32 %v5389, %v5319
      %v5439 = vmax.f32 %v5390, %v5320
      %v5440 = vmax.f32 %v5391, %v5328
      %v5441 = vmax.f32 %v5392, %v5329
      %v5442 = vmax.f32 %v5393, %v5330
      %v5443 = vmax.f32 %v5394, %v5331
      %v5444 = vmax.f32 %v5395, %v5332
      %v5445 = vmax.f32 %v5396, %v5333
      %v5446 = vmax.f32 %v5397, %v5334
      %v5447 = vmax.f32 %v5398, %v5342
      %v5448 = vmax.f32 %v5399, %v5343
      %v5449 = vmax.f32 %v5400, %v5344
      %v5450 = vmax.f32 %v5401, %v5345
      %v5451 = vmax.f32 %v5402, %v5346
      %v5452 = vmax.f32 %v5403, %v5347
      %v5453 = vmax.f32 %v5404, %v5348
      %v5454 = vmax.f32 %v5405, %v5356
      %v5455 = vmax.f32 %v5406, %v5357
      %v5456 = vmax.f32 %v5407, %v5358
      %v5457 = vmax.f32 %v5408, %v5359
      %v5458 = vmax.f32 %v5409, %v5360
      %v5459 = vmax.f32 %v5410, %v5361
      %v5460 = vmax.f32 %v5411, %v5362
      %v5461 = vpack.c.bf16 %v5412, %v5412
      %v5462 = vpack.c.bf16 %v5413, %v5413
      %v5463 = vpack.c.bf16 %v5414, %v5414
      %v5464 = vpack.c.bf16 %v5415, %v5415
      %v5465 = vpack.c.bf16 %v5416, %v5416
      %v5466 = vpack.c.bf16 %v5417, %v5417
      %v5467 = vpack.c.bf16 %v5418, %v5418
      %v5468 = vpack.c.bf16 %v5419, %v5419
      %v5469 = vpack.c.bf16 %v5420, %v5420
      %v5470 = vpack.c.bf16 %v5421, %v5421
      %v5471 = vpack.c.bf16 %v5422, %v5422
      %v5472 = vpack.c.bf16 %v5423, %v5423
      %v5473 = vpack.c.bf16 %v5424, %v5424
      %v5474 = vpack.c.bf16 %v5425, %v5425
      %v5475 = vpack.c.bf16 %v5426, %v5426
      %v5476 = vpack.c.bf16 %v5427, %v5427
      %v5477 = vpack.c.bf16 %v5428, %v5428
      %v5478 = vpack.c.bf16 %v5429, %v5429
      %v5479 = vpack.c.bf16 %v5430, %v5430
      %v5480 = vpack.c.bf16 %v5431, %v5431
      %v5481 = vpack.c.bf16 %v5432, %v5432
      %v5482 = vpack.c.bf16 %v5433, %v5433
      %v5483 = vpack.c.bf16 %v5434, %v5434
      %v5484 = vpack.c.bf16 %v5435, %v5435
      %v5485 = vpack.c.bf16 %v5436, %v5436
      %v5486 = vpack.c.bf16 %v5437, %v5437
      %v5487 = vpack.c.bf16 %v5438, %v5438
      %v5488 = vpack.c.bf16 %v5439, %v5439
      %v5489 = vpack.c.bf16 %v5440, %v5440
      %v5490 = vpack.c.bf16 %v5441, %v5441
      %v5491 = vpack.c.bf16 %v5442, %v5442
      %v5492 = vpack.c.bf16 %v5443, %v5443
      %v5493 = vpack.c.bf16 %v5444, %v5444
      %v5494 = vpack.c.bf16 %v5445, %v5445
      %v5495 = vpack.c.bf16 %v5446, %v5446
      %v5496 = vpack.c.bf16 %v5447, %v5447
      %v5497 = vpack.c.bf16 %v5448, %v5448
      %v5498 = vpack.c.bf16 %v5449, %v5449
      %v5499 = vpack.c.bf16 %v5450, %v5450
      %v5500 = vpack.c.bf16 %v5451, %v5451
      %v5501 = vpack.c.bf16 %v5452, %v5452
      %v5502 = vpack.c.bf16 %v5453, %v5453
      %v5503 = vpack.c.bf16 %v5454, %v5454
      %v5504 = vpack.c.bf16 %v5455, %v5455
      %v5505 = vpack.c.bf16 %v5456, %v5456
      %v5506 = vpack.c.bf16 %v5457, %v5457
      %v5507 = vpack.c.bf16 %v5458, %v5458
      %v5508 = vpack.c.bf16 %v5459, %v5459
      %v5509 = vpack.c.bf16 %v5460, %v5460
      %v5559 = vunpack.c.l.b16 %v5461
      %v5560 = vunpack.c.l.b16 %v5462
      %v5561 = vunpack.c.l.b16 %v5463
      %v5562 = vunpack.c.l.b16 %v5464
      %v5563 = vunpack.c.l.b16 %v5465
      %v5564 = vunpack.c.l.b16 %v5466
      %v5565 = vunpack.c.l.b16 %v5467
      %v5566 = vunpack.c.l.b16 %v5468
      %v5567 = vunpack.c.l.b16 %v5469
      %v5568 = vunpack.c.l.b16 %v5470
      %v5569 = vunpack.c.l.b16 %v5471
      %v5570 = vunpack.c.l.b16 %v5472
      %v5571 = vunpack.c.l.b16 %v5473
      %v5572 = vunpack.c.l.b16 %v5474
      %v5573 = vunpack.c.l.b16 %v5475
      %v5574 = vunpack.c.l.b16 %v5476
      %v5575 = vunpack.c.l.b16 %v5477
      %v5576 = vunpack.c.l.b16 %v5478
      %v5577 = vunpack.c.l.b16 %v5479
      %v5578 = vunpack.c.l.b16 %v5480
      %v5579 = vunpack.c.l.b16 %v5481
      %v5580 = vunpack.c.l.b16 %v5482
      %v5581 = vunpack.c.l.b16 %v5483
      %v5582 = vunpack.c.l.b16 %v5484
      %v5583 = vunpack.c.l.b16 %v5485
      %v5584 = vunpack.c.l.b16 %v5486
      %v5585 = vunpack.c.l.b16 %v5487
      %v5586 = vunpack.c.l.b16 %v5488
      %v5587 = vunpack.c.l.b16 %v5489
      %v5588 = vunpack.c.l.b16 %v5490
      %v5589 = vunpack.c.l.b16 %v5491
      %v5590 = vunpack.c.l.b16 %v5492
      %v5591 = vunpack.c.l.b16 %v5493
      %v5592 = vunpack.c.l.b16 %v5494
      %v5593 = vunpack.c.l.b16 %v5495
      %v5594 = vunpack.c.l.b16 %v5496
      %v5595 = vunpack.c.l.b16 %v5497
      %v5596 = vunpack.c.l.b16 %v5498
      %v5597 = vunpack.c.l.b16 %v5499
      %v5598 = vunpack.c.l.b16 %v5500
      %v5599 = vunpack.c.l.b16 %v5501
      %v5600 = vunpack.c.l.b16 %v5502
      %v5601 = vunpack.c.l.b16 %v5503
      %v5602 = vunpack.c.l.b16 %v5504
      %v5603 = vunpack.c.l.b16 %v5505
      %v5604 = vunpack.c.l.b16 %v5506
      %v5605 = vunpack.c.l.b16 %v5507
      %v5606 = vunpack.c.l.b16 %v5508
      %v5607 = vunpack.c.l.b16 %v5509
      %v5608 = vrot.slane %v5560, 7
      %vm5609 = vcmask 1041409
      %v5610 = vsel %vm5609, %v5608, %v5559
      %v5611 = vrot.slane %v5561, 6
      %v5612 = vsel %vm4712, %v5611, %v5610
      %v5613 = vrot.slane %v5562, 5
      %vm5614 = vcmask 1043459
      %v5615 = vsel %vm5614, %v5613, %v5612
      %v5616 = vrot.slane %v5563, 4
      %v5617 = vsel %vm4714, %v5616, %v5615
      %v5618 = vrot.slane %v5564, 3
      %vm5619 = vcmask 1045509
      %v5620 = vsel %vm5619, %v5618, %v5617
      %v5621 = vrot.slane %v5565, 2
      %v5622 = vsel %vm4716, %v5621, %v5620
      %v5623 = vrot.slane %v5567, 7
      %v5624 = vsel %vm5609, %v5623, %v5566
      %v5625 = vrot.slane %v5568, 6
      %v5626 = vsel %vm4712, %v5625, %v5624
      %v5627 = vrot.slane %v5569, 5
      %v5628 = vsel %vm5614, %v5627, %v5626
      %v5629 = vrot.slane %v5570, 4
      %v5630 = vsel %vm4714, %v5629, %v5628
      %v5631 = vrot.slane %v5571, 3
      %v5632 = vsel %vm5619, %v5631, %v5630
      %v5633 = vrot.slane %v5572, 2
      %v5634 = vsel %vm4716, %v5633, %v5632
      %v5635 = vrot.slane %v5574, 7
      %v5636 = vsel %vm5609, %v5635, %v5573
      %v5637 = vrot.slane %v5575, 6
      %v5638 = vsel %vm4712, %v5637, %v5636
      %v5639 = vrot.slane %v5576, 5
      %v5640 = vsel %vm5614, %v5639, %v5638
      %v5641 = vrot.slane %v5577, 4
      %v5642 = vsel %vm4714, %v5641, %v5640
      %v5643 = vrot.slane %v5578, 3
      %v5644 = vsel %vm5619, %v5643, %v5642
      %v5645 = vrot.slane %v5579, 2
      %v5646 = vsel %vm4716, %v5645, %v5644
      %v5647 = vrot.slane %v5581, 7
      %v5648 = vsel %vm5609, %v5647, %v5580
      %v5649 = vrot.slane %v5582, 6
      %v5650 = vsel %vm4712, %v5649, %v5648
      %v5651 = vrot.slane %v5583, 5
      %v5652 = vsel %vm5614, %v5651, %v5650
      %v5653 = vrot.slane %v5584, 4
      %v5654 = vsel %vm4714, %v5653, %v5652
      %v5655 = vrot.slane %v5585, 3
      %v5656 = vsel %vm5619, %v5655, %v5654
      %v5657 = vrot.slane %v5586, 2
      %v5658 = vsel %vm4716, %v5657, %v5656
      %v5659 = vrot.slane %v5588, 7
      %v5660 = vsel %vm5609, %v5659, %v5587
      %v5661 = vrot.slane %v5589, 6
      %v5662 = vsel %vm4712, %v5661, %v5660
      %v5663 = vrot.slane %v5590, 5
      %v5664 = vsel %vm5614, %v5663, %v5662
      %v5665 = vrot.slane %v5591, 4
      %v5666 = vsel %vm4714, %v5665, %v5664
      %v5667 = vrot.slane %v5592, 3
      %v5668 = vsel %vm5619, %v5667, %v5666
      %v5669 = vrot.slane %v5593, 2
      %v5670 = vsel %vm4716, %v5669, %v5668
      %v5671 = vrot.slane %v5595, 7
      %v5672 = vsel %vm5609, %v5671, %v5594
      %v5673 = vrot.slane %v5596, 6
      %v5674 = vsel %vm4712, %v5673, %v5672
      %v5675 = vrot.slane %v5597, 5
      %v5676 = vsel %vm5614, %v5675, %v5674
      %v5677 = vrot.slane %v5598, 4
      %v5678 = vsel %vm4714, %v5677, %v5676
      %v5679 = vrot.slane %v5599, 3
      %v5680 = vsel %vm5619, %v5679, %v5678
      %v5681 = vrot.slane %v5600, 2
      %v5682 = vsel %vm4716, %v5681, %v5680
      %v5683 = vrot.slane %v5602, 7
      %v5684 = vsel %vm5609, %v5683, %v5601
      %v5685 = vrot.slane %v5603, 6
      %v5686 = vsel %vm4712, %v5685, %v5684
      %v5687 = vrot.slane %v5604, 5
      %v5688 = vsel %vm5614, %v5687, %v5686
      %v5689 = vrot.slane %v5605, 4
      %v5690 = vsel %vm4714, %v5689, %v5688
      %v5691 = vrot.slane %v5606, 3
      %v5692 = vsel %vm5619, %v5691, %v5690
      %v5693 = vrot.slane %v5607, 2
      %v5694 = vsel %vm4716, %v5693, %v5692
      %v5695 = vpack.c.b16 %v5622, %v5622
      %v5696 = vpack.c.b16 %v5634, %v5634
      %v5697 = vpack.c.b16 %v5646, %v5646
      %v5698 = vpack.c.b16 %v5658, %v5658
      %v5699 = vpack.c.b16 %v5670, %v5670
      %v5700 = vpack.c.b16 %v5682, %v5682
      %v5701 = vpack.c.b16 %v5694, %v5694
      %vm5709 = vcmask 1043456
      %vm5710 = vsmask.f32 3328
      %vm5711 = vmand %vm5709, %vm5710
      %v5712 = vld [vmem:[%s221] sm:$0xf]
      %v5713 = vsel %vm5711, %v5695, %v5712
      %5714 = vst [vmem:[%s221] sm:$0xf] %v5713
      %v5715 = vld [vmem:[%s221 + $0x4] sm:$0xf]
      %v5716 = vsel %vm5711, %v5696, %v5715
      %5717 = vst [vmem:[%s221 + $0x4] sm:$0xf] %v5716
      %v5718 = vld [vmem:[%s221 + $0x8] sm:$0xf]
      %v5719 = vsel %vm5711, %v5697, %v5718
      %5720 = vst [vmem:[%s221 + $0x8] sm:$0xf] %v5719
      %v5721 = vld [vmem:[%s221 + $0xc] sm:$0xf]
      %v5722 = vsel %vm5711, %v5698, %v5721
      %5723 = vst [vmem:[%s221 + $0xc] sm:$0xf] %v5722
      %v5724 = vld [vmem:[%s221 + $0x10] sm:$0xf]
      %v5725 = vsel %vm5711, %v5699, %v5724
      %5726 = vst [vmem:[%s221 + $0x10] sm:$0xf] %v5725
      %v5727 = vld [vmem:[%s221 + $0x14] sm:$0xf]
      %v5728 = vsel %vm5711, %v5700, %v5727
      %5729 = vst [vmem:[%s221 + $0x14] sm:$0xf] %v5728
      %v5730 = vld [vmem:[%s221 + $0x18] sm:$0xf]
      %v5731 = vsel %vm5711, %v5701, %v5730
      %5732 = vst [vmem:[%s221 + $0x18] sm:$0xf] %v5731
      %p5733 = scmp.lt.s32.totalorder %s18, 1
      %s5734 = scalar_select %p5733, %s18, 1
      %p5735 = scmp.lt.s32.totalorder %s19, 0
      %s5736 = scalar_select %p5735, %s19, 0
      %s5737 = smul.addr %s5734, 7
      %s5738 = sadd.s32 %s5736, %s5737
      %s5739 = smul.addr %s5738, 4
      %s5740 = scalar_lea.vmem %s3, %s5739
      // Predicated region
      $region33: #{tpu_custom_call.1} parent=31 // pred_check
        %p5741 = pneg %p124
      $region34: #{tpu_custom_call.1} parent=31 // pred_check_branch
        %5743 = sbr.rel (%p5741) target = $region36
      $region35: #{tpu_custom_call.1} parent=31 // pred_region
        _
      $region36: #{tpu_custom_call.1} parent=31 // pred_fallthru
        _
    $region32: #{tpu_custom_call.1} parent=5 // pred_fallthru
      _
    %p5744 = scmp.le.s32.totalorder 2, %s9
    // Predicated region
    $region37: #{tpu_custom_call.1} parent=5 // pred_check
      %p5745 = pneg %p5744
    $region38: #{tpu_custom_call.1} parent=5 // pred_check_branch
      %5747 = sbr.rel (%p5745) target = $region40
    $region39: #{tpu_custom_call.1} parent=5 // pred_region
      %s5748 = ssub.s32 %s9, 2
      // Predicated region
      $region41: #{tpu_custom_call.1} parent=39 // pred_check
        %p5749 = pneg %p130
      $region42: #{tpu_custom_call.1} parent=39 // pred_check_branch
        %5751 = sbr.rel (%p5749) target = $region44
      $region43: #{tpu_custom_call.1} parent=39 // pred_region
        %p5752 = scmp.lt.s32.totalorder %s20, 1
        %s5753 = scalar_select %p5752, %s20, 1
        %p5754 = scmp.lt.s32.totalorder %s21, 0
        %s5755 = scalar_select %p5754, %s21, 0
        %s5756 = smul.addr %s5753, 7
        %s5757 = sadd.s32 %s5755, %s5756
        %s5758 = smul.addr %s5757, 4
        %s5759 = scalar_lea.vmem %s3, %s5758
      $region44: #{tpu_custom_call.1} parent=39 // pred_fallthru
        _
    $region40: #{tpu_custom_call.1} parent=5 // pred_fallthru
      _
  $region6: #{tpu_custom_call.1} parent=0 // loop_footer
    %s13 = sadd.s32 1, %s9
  $region7: #{tpu_custom_call.1} parent=0 // loop_footer_branch
    %8 = sbr.rel target = $region3
  $region8: #{tpu_custom_call.1} parent=0 // loop_exit
    _

</llo_original>
